<compile_context>
chip_gen: v7x
topology: tpu7x:2x2x1
jax: 0.10.0
libtpu: 0.0.40
codegen_flags: <defaults>
</compile_context>

<pallas_src>
import jax
import jax.numpy as jnp
from jax.experimental import pallas as pl
from jax.experimental.pallas import tpu as pltpu


# 32 MiB scoped VMEM is safe on every generation (v7x default scoped limit);
# bump towards 64 MiB on v5e/v6e if tiles are enlarged.
_VMEM_LIMIT = 32 * 1024 * 1024


def _row_tile(m, cap):
    """Row-tile size: whole array if it fits, else `cap` (multiple of 8)."""
    return m if m <= cap else cap


# ----------------------------------------------------------------------------- #
# Generic row-tiled linear (bf16 matmul, f32 accumulate)
# ----------------------------------------------------------------------------- #
def _linear_bias_kernel(x_ref, w_ref, b_ref, o_ref):
    o_ref[...] = (
        jnp.dot(x_ref[...].astype(jnp.bfloat16), w_ref[...],
                preferred_element_type=jnp.float32)
        + b_ref[...]
    )


def _linear_kernel(x_ref, w_ref, o_ref):
    o_ref[...] = jnp.dot(x_ref[...].astype(jnp.bfloat16), w_ref[...],
                         preferred_element_type=jnp.float32)


def pallas_linear(x, w, b=None, *, tile_m=512):
    """y = x @ w (+ b);  x: [..., K], w: (K, N) bf16, b: (N,) f32."""
    lead = x.shape[:-1]
    K = x.shape[-1]
    N = w.shape[-1]
    x2 = x.reshape(-1, K)
    M = x2.shape[0]
    tm = _row_tile(M, tile_m)
    grid = (pl.cdiv(M, tm),)
    row_spec = pl.BlockSpec((tm, K), lambda i: (i, 0))
    out_spec = pl.BlockSpec((tm, N), lambda i: (i, 0))
    w_spec = pl.BlockSpec((K, N), lambda i: (0, 0))
    cp = pltpu.CompilerParams(dimension_semantics=("parallel",),
                              vmem_limit_bytes=_VMEM_LIMIT)
    if b is not None:
        out = pl.pallas_call(
            _linear_bias_kernel,
            out_shape=jax.ShapeDtypeStruct((M, N), jnp.float32),
            grid=grid,
            in_specs=[row_spec, w_spec, pl.BlockSpec((1, N), lambda i: (0, 0))],
            out_specs=out_spec,
            compiler_params=cp,
        )(x2, w, b.reshape(1, N))
    else:
        out = pl.pallas_call(
            _linear_kernel,
            out_shape=jax.ShapeDtypeStruct((M, N), jnp.float32),
            grid=grid,
            in_specs=[row_spec, w_spec],
            out_specs=out_spec,
            compiler_params=cp,
        )(x2, w)
    return out.reshape(lead + (N,))


# ----------------------------------------------------------------------------- #
# blk_trans:  Linear(768,2d) + ReLU + (Dropout=id) + Linear(2d,d) + LayerNorm(d)
# ----------------------------------------------------------------------------- #
def _blk_trans_kernel(x_ref, w1_ref, b1_ref, w2_ref, b2_ref, g_ref, beta_ref, o_ref):
    h = jnp.dot(x_ref[...].astype(jnp.bfloat16), w1_ref[...],
                preferred_element_type=jnp.float32) + b1_ref[...]
    h = jnp.maximum(h, 0.0)
    y = jnp.dot(h.astype(jnp.bfloat16), w2_ref[...],
                preferred_element_type=jnp.float32) + b2_ref[...]
    mu = jnp.mean(y, axis=-1, keepdims=True)
    var = jnp.mean(jnp.square(y - mu), axis=-1, keepdims=True)
    o_ref[...] = (y - mu) * jax.lax.rsqrt(var + 1e-5) * g_ref[...] + beta_ref[...]


def blk_trans(p, x, *, tile_m=512):
    lead = x.shape[:-1]
    Din = x.shape[-1]
    H = p["w1"].shape[1]
    D = p["w2"].shape[1]
    x2 = x.reshape(-1, Din)
    M = x2.shape[0]
    tm = _row_tile(M, tile_m)
    out = pl.pallas_call(
        _blk_trans_kernel,
        out_shape=jax.ShapeDtypeStruct((M, D), jnp.float32),
        grid=(pl.cdiv(M, tm),),
        in_specs=[
            pl.BlockSpec((tm, Din), lambda i: (i, 0)),
            pl.BlockSpec((Din, H), lambda i: (0, 0)),
            pl.BlockSpec((1, H), lambda i: (0, 0)),
            pl.BlockSpec((H, D), lambda i: (0, 0)),
            pl.BlockSpec((1, D), lambda i: (0, 0)),
            pl.BlockSpec((1, D), lambda i: (0, 0)),
            pl.BlockSpec((1, D), lambda i: (0, 0)),
        ],
        out_specs=pl.BlockSpec((tm, D), lambda i: (i, 0)),
        compiler_params=pltpu.CompilerParams(dimension_semantics=("parallel",),
                                             vmem_limit_bytes=_VMEM_LIMIT),
    )(x2, p["w1"], p["b1"].reshape(1, -1), p["w2"], p["b2"].reshape(1, -1),
      p["gamma"].reshape(1, -1), p["beta"].reshape(1, -1))
    return out.reshape(lead + (D,))


# ----------------------------------------------------------------------------- #
# Fused GRU recurrence (single pallas_call, h carried in VMEM scratch)
# ----------------------------------------------------------------------------- #
def _make_gru_scan_kernel(d):
    def kernel(xg_ref, wh_ref, bh_ref, o_ref, h_scr):
        @pl.when(pl.program_id(0) == 0)
        def _():
            h_scr[...] = jnp.zeros_like(h_scr)

        h = h_scr[...]                       # (B, d) f32
        gx = xg_ref[0]                       # (B, 3d) f32 (precomputed x-gates)
        gh = jnp.dot(h.astype(jnp.bfloat16), wh_ref[...],
                     preferred_element_type=jnp.float32) + bh_ref[...]
        r = jax.nn.sigmoid(gx[:, :d] + gh[:, :d])
        z = jax.nn.sigmoid(gx[:, d:2 * d] + gh[:, d:2 * d])
        n = jnp.tanh(gx[:, 2 * d:] + r * gh[:, 2 * d:])
        h_new = (1.0 - z) * n + z * h
        h_scr[...] = h_new
        o_ref[0] = h_new

    return kernel


def gru_scan(xg_sbd, wh, bh):
    S, B, D3 = xg_sbd.shape
    d = D3 // 3
    return pl.pallas_call(
        _make_gru_scan_kernel(d),
        out_shape=jax.ShapeDtypeStruct((S, B, d), jnp.float32),
        grid=(S,),
        in_specs=[
            pl.BlockSpec((1, B, D3), lambda t: (t, 0, 0)),
            pl.BlockSpec((d, D3), lambda t: (0, 0)),
            pl.BlockSpec((1, D3), lambda t: (0, 0)),
        ],
        out_specs=pl.BlockSpec((1, B, d), lambda t: (t, 0, 0)),
        scratch_shapes=[pltpu.VMEM((B, d), jnp.float32)],
        compiler_params=pltpu.CompilerParams(dimension_semantics=("arbitrary",),
                                             vmem_limit_bytes=_VMEM_LIMIT),
    )(xg_sbd, wh, bh.reshape(1, -1))


def ehr_encoder(params, input_seqs, lengths):
    # TODO(synk): GRUSelf source not provided; approximated as per-visit code-embedding
    # sum followed by a single-layer GRU (hidden at lengths-1 = encoder_vec).
    emb = jnp.take(params["ehr_embed"], input_seqs, axis=0)      # (B, S, C, D) bf16
    visit = jnp.sum(emb.astype(jnp.float32), axis=2)             # (B, S, D) f32
    B, S, D = visit.shape
    # transpose the narrow (B,S,D) tensor once; the 3x wider gate tensor is then
    # produced directly in (S,B,3D) layout and never transposed.
    visit_t = visit.transpose(1, 0, 2)                            # (S, B, D)
    xg = pallas_linear(visit_t.reshape(S * B, D), params["gru_wx"], params["gru_bx"])
    xg = xg.reshape(S, B, 3 * D)
    v_all = gru_scan(xg, params["gru_wh"], params["gru_bh"]).transpose(1, 0, 2)
    encoder_vec = v_all[jnp.arange(B), jnp.clip(lengths - 1, 0, S - 1)]
    return encoder_vec, v_all                                     # (B,D), (B,S,D)


# ----------------------------------------------------------------------------- #
# Multi-head cross attention with hoisted (batch-invariant) K / V
# ----------------------------------------------------------------------------- #
def _make_mha_kernel(num_heads, d_head):
    scale = 1.0 / float(d_head) ** 0.5

    def kernel(q_ref, k_ref, v_ref, wq_ref, bq_ref, wo_ref, bo_ref, o_ref):
        q = q_ref[0].astype(jnp.bfloat16)                               # (Sq, D)
        Q = jnp.dot(q, wq_ref[...], preferred_element_type=jnp.float32) + bq_ref[...]
        K = k_ref[...].astype(jnp.bfloat16)                             # (Skv, D)
        V = v_ref[...].astype(jnp.bfloat16)
        Sq, D = Q.shape
        out = jnp.zeros((Sq, D), jnp.float32)
        for h in range(num_heads):
            sl = slice(h * d_head, (h + 1) * d_head)
            s = jax.lax.dot_general(
                Q[:, sl].astype(jnp.bfloat16), K[:, sl],
                (((1,), (1,)), ((), ())),
                preferred_element_type=jnp.float32) * scale             # (Sq, Skv)
            s = s - jnp.max(s, axis=-1, keepdims=True)
            e = jnp.exp(s)
            p_attn = e / jnp.sum(e, axis=-1, keepdims=True)
            head = jnp.dot(p_attn.astype(jnp.bfloat16), V[:, sl],
                           preferred_element_type=jnp.float32)          # (Sq, d_head)
            # accumulate the output projection head-wise into a full-width value
            out = out + jnp.dot(head.astype(jnp.bfloat16), wo_ref[sl, :],
                                preferred_element_type=jnp.float32)
        o_ref[0] = out + bo_ref[...]

    return kernel


def mha(p, q, k_pre, v_pre, num_heads):
    # TODO(synk): Attention class definition not provided; implemented as standard
    # multi-head cross attention (query=q, key=value=target vectors).
    B, Sq, D = q.shape
    Skv = k_pre.shape[0]
    d_head = D // num_heads

    def wspec(shape):
        return pl.BlockSpec(shape, lambda b: (0,) * len(shape))

    return pl.pallas_call(
        _make_mha_kernel(num_heads, d_head),
        out_shape=jax.ShapeDtypeStruct((B, Sq, D), jnp.float32),
        grid=(B,),
        in_specs=[pl.BlockSpec((1, Sq, D), lambda b: (b, 0, 0)),
                  wspec((Skv, D)), wspec((Skv, D)),
                  wspec((D, D)), wspec((1, D)),
                  wspec((D, D)), wspec((1, D))],
        out_specs=pl.BlockSpec((1, Sq, D), lambda b: (b, 0, 0)),
        compiler_params=pltpu.CompilerParams(dimension_semantics=("parallel",),
                                             vmem_limit_bytes=_VMEM_LIMIT),
    )(q, k_pre, v_pre, p["wq"], p["bq"].reshape(1, -1),
      p["wo"], p["bo"].reshape(1, -1))


# ----------------------------------------------------------------------------- #
# Fused att_mlp + softmax + masked_fill  ->  (bs, seq, num_blk) scores
# (row-tiled over bs*seq with "parallel" semantics)
# ----------------------------------------------------------------------------- #
def _make_att_score_kernel(nb, d):
    def kernel(tva_ref, vt_ref, w1a_ref, w1b_ref, b1_ref, w2_ref, m_ref, o_ref):
        tva = tva_ref[...].astype(jnp.bfloat16)                        # (tm, d)
        ha = jnp.dot(tva, w1a_ref[...],
                     preferred_element_type=jnp.float32) + b1_ref[...]  # (tm, d)
        vt = vt_ref[...]                                                # (tm, nb*d)
        w2 = w2_ref[...]                                                # (1, d)
        cols = []
        for j in range(nb):
            vj = vt[:, j * d:(j + 1) * d].astype(jnp.bfloat16)
            hj = jnp.tanh(ha + jnp.dot(vj, w1b_ref[...],
                                       preferred_element_type=jnp.float32))
            cols.append(jnp.sum(hj * w2, axis=-1, keepdims=True))       # (tm, 1)
        s = jnp.concatenate(cols, axis=-1)                              # (tm, nb)
        s = s - jnp.max(s, axis=-1, keepdims=True)
        e = jnp.exp(s)
        p = e / jnp.sum(e, axis=-1, keepdims=True)
        # reference applies masked_fill(mask==0, 0) on the softmax OUTPUT (no renorm)
        o_ref[...] = p * m_ref[...]

    return kernel


def att_scores(params, transformed_v_all, v_text_all, masks_txt, *, tile_r=256):
    bs, S, Nb, d = v_text_all.shape
    R = bs * S
    tva2 = transformed_v_all.reshape(R, d)
    vt2 = v_text_all.reshape(R, Nb * d)
    m2 = masks_txt.astype(jnp.float32).reshape(R, Nb)
    w1 = params["att_mlp_w1"]                                 # (2d, d) bf16
    tr = _row_tile(R, tile_r)
    out = pl.pallas_call(
        _make_att_score_kernel(Nb, d),
        out_shape=jax.ShapeDtypeStruct((R, Nb), jnp.float32),
        grid=(pl.cdiv(R, tr),),
        in_specs=[pl.BlockSpec((tr, d), lambda i: (i, 0)),
                  pl.BlockSpec((tr, Nb * d), lambda i: (i, 0)),
                  pl.BlockSpec((d, d), lambda i: (0, 0)),
                  pl.BlockSpec((d, d), lambda i: (0, 0)),
                  pl.BlockSpec((1, d), lambda i: (0, 0)),
                  pl.BlockSpec((1, d), lambda i: (0, 0)),
                  pl.BlockSpec((tr, Nb), lambda i: (i, 0))],
        out_specs=pl.BlockSpec((tr, Nb), lambda i: (i, 0)),
        compiler_params=pltpu.CompilerParams(dimension_semantics=("parallel",),
                                             vmem_limit_bytes=_VMEM_LIMIT),
    )(tva2, vt2, w1[:d], w1[d:], params["att_mlp_b1"].reshape(1, -1),
      params["att_mlp_w2"].reshape(1, -1), m2)
    return out.reshape(bs, S, Nb)


# ----------------------------------------------------------------------------- #
# Fused final stage: masked max-pool(time) + max-pool(memory) + output MLP
# (tiled over batch with "parallel" semantics; one (B,3d)@(3d,2) matmul)
# ----------------------------------------------------------------------------- #
def _final_kernel(tva_ref, lm_ref, mem_ref, enc_ref, ow_ref, ob_ref, o_ref):
    neg = jnp.float32(-1e30)
    tva = tva_ref[...]                                                  # (tb, S, d)
    lm = lm_ref[...]                                                    # (tb, S)
    # TODO(synk): MaxPoolLayer assumed to be length-masked max over the time axis.
    v_final = jnp.max(jnp.where(lm[:, :, None] > 0, tva, neg), axis=1)  # (tb, d)
    mem_max = jnp.max(mem_ref[...], axis=1)                             # (tb, d)
    cat = jnp.concatenate([v_final, mem_max, enc_ref[...]], axis=-1)    # (tb, 3d)
    o_ref[...] = jnp.dot(cat.astype(jnp.bfloat16), ow_ref[...],
                         preferred_element_type=jnp.float32) + ob_ref[...]


def final_output(params, transformed_v_all, len_mask, mem_vecs, enc_vec, *, tile_b=128):
    bs, S, d = transformed_v_all.shape
    mem = mem_vecs.shape[1]
    tb = _row_tile(bs, tile_b)
    return pl.pallas_call(
        _final_kernel,
        out_shape=jax.ShapeDtypeStruct((bs, 2), jnp.float32),
        grid=(pl.cdiv(bs, tb),),
        in_specs=[pl.BlockSpec((tb, S, d), lambda i: (i, 0, 0)),
                  pl.BlockSpec((tb, S), lambda i: (i, 0)),
                  pl.BlockSpec((tb, mem, d), lambda i: (i, 0, 0)),
                  pl.BlockSpec((tb, d), lambda i: (i, 0)),
                  pl.BlockSpec((3 * d, 2), lambda i: (0, 0)),
                  pl.BlockSpec((1, 2), lambda i: (0, 0))],
        out_specs=pl.BlockSpec((tb, 2), lambda i: (i, 0)),
        compiler_params=pltpu.CompilerParams(dimension_semantics=("parallel",),
                                             vmem_limit_bytes=_VMEM_LIMIT),
    )(transformed_v_all, len_mask, mem_vecs, enc_vec,
      params["out_w"], params["out_b"].reshape(1, -1))


# ----------------------------------------------------------------------------- #
# Full forward
# ----------------------------------------------------------------------------- #
def text_decoder_forward(params, cfg, input_seqs, masks_ehr, input_txt, masks_txt,
                         lengths, time_step, code_mask):
    d = cfg["d_model"]
    mem_size = cfg["mem_size"]
    mu_size = cfg["mem_update_size"]

    encoder_vec, v_all = ehr_encoder(params, input_seqs, lengths)
    bs, S, Nb = input_txt.shape
    T = params["target_disease_vectors"].shape[0]

    # ---- blk_trans precompute: target-disease vectors + the frozen block vocab ----
    # (blk_emb is frozen; for a large vocab, gather the unique candidate ids instead.)
    merged = jnp.concatenate([params["target_disease_vectors"], params["blk_emb"]],
                             axis=0)
    merged_out = blk_trans(params["blk_trans"], merged)
    tdv = merged_out[:T]                                             # (T, d)
    blk_vecs = merged_out[T:]                                        # (V, d)

    # ---- target-disease cross attention (K/V hoisted, batch-invariant) ----
    pa = params["target_att"]
    k_pre = pallas_linear(tdv, pa["wk"], pa["bk"])                   # (T, d)
    v_pre = pallas_linear(tdv, pa["wv"], pa["bv"])                   # (T, d)
    transformed_v_all = mha(pa, v_all, k_pre, v_pre,
                            cfg["target_att_heads"])                 # (bs, S, d)

    # ---- text-block vectors via vocab gather (no per-token blk_trans recompute) ----
    v_text_all = jnp.take(blk_vecs, input_txt, axis=0)               # (bs, S, Nb, d)

    att_score = att_scores(params, transformed_v_all, v_text_all, masks_txt)

    _, indices = jax.lax.top_k(att_score, mu_size)                   # (bs, S, mu)
    selected_txt_ids = jnp.take_along_axis(input_txt, indices, axis=2)
    selected_masks = jnp.take_along_axis(masks_txt, indices, axis=2)

    # ---- memory-update loop: hoisted query projection + precomputed block keys ----
    q_all = pallas_linear((transformed_v_all + v_all).reshape(bs * S, d),
                          params["mem_wq"]).reshape(bs, S, d)
    blk_keys = pallas_linear(blk_vecs, params["mem_wk"])             # (V, d)
    scale = float(d) ** 0.5
    # TODO(synk): MemoryUpdate.linear_v is computed but never used in the reference
    # forward; it is skipped here.

    memory = []
    mem_input = selected_txt_ids[:, 0]
    mem_mask_input = selected_masks[:, 0]
    for i in range(S):
        if mem_input.shape[1] > mem_size:
            keys = jnp.take(blk_keys, mem_input, axis=0)             # (bs, L, d)
            energy = jnp.einsum("bld,bd->bl", keys, q_all[:, i]) / scale
            attn = jax.nn.softmax(energy, axis=-1)
            attn = jnp.where(mem_mask_input == 0, 0.0, attn)         # mask after softmax
            _, idx = jax.lax.top_k(attn, mem_size)
            mem_output = jnp.take_along_axis(mem_input, idx, axis=1)
            mem_mask_output = jnp.take_along_axis(mem_mask_input, idx, axis=1)
        else:
            mem_output = mem_input
            mem_mask_output = mem_mask_input
        memory.append(mem_output)
        if i < S - 1:
            mem_input = jnp.concatenate(
                [mem_output, selected_txt_ids[:, i + 1]], axis=1)
            mem_mask_input = jnp.concatenate(
                [mem_mask_output, selected_masks[:, i + 1]], axis=1)

    len_mask = (jnp.arange(S)[None, :] < lengths[:, None]).astype(jnp.float32)

    mem_stack = jnp.stack(memory[1:], axis=1)                        # (bs, S-1, mem)
    # NOTE: the (lengths - 2) gather assumes lengths >= 2, as in the reference model.
    gidx = jnp.clip(lengths - 2, 0, S - 2).astype(jnp.int32)[:, None, None]
    gidx = jnp.broadcast_to(gidx, (bs, 1, mem_size))
    memory_final = jnp.take_along_axis(mem_stack, gidx, axis=1)[:, 0]

    mem_vecs = jnp.take(blk_vecs, memory_final, axis=0)              # (bs, mem, d)
    output = final_output(params, transformed_v_all, len_mask, mem_vecs, encoder_vec)
    return output, memory_final


# ----------------------------------------------------------------------------- #
# Deterministic parameter init (matmul weights stored bf16, biases/LN in f32)
# ----------------------------------------------------------------------------- #
def init_params(key, cfg):
    d = cfg["d_model"]
    ks = jax.random.split(key, 24)

    def g(k, shape, s=0.05, dtype=jnp.float32):
        return (jax.random.normal(k, shape, jnp.float32) * s).astype(dtype)

    bf = jnp.bfloat16
    params = {
        "ehr_embed": g(ks[0], (cfg["vocab_size"], d), dtype=bf),
        "gru_wx": g(ks[1], (d, 3 * d), dtype=bf),
        "gru_wh": g(ks[2], (d, 3 * d), dtype=bf),
        "gru_bx": g(ks[3], (3 * d,)),
        "gru_bh": g(ks[4], (3 * d,)),
        "blk_emb": g(ks[5], (cfg["n_blk_vocab"], 768), dtype=bf),   # frozen in torch
        "blk_trans": {
            "w1": g(ks[6], (768, 2 * d), dtype=bf),
            "b1": g(ks[7], (2 * d,)),
            "w2": g(ks[8], (2 * d, d), dtype=bf),
            "b2": g(ks[9], (d,)),
            "gamma": jnp.ones((d,), jnp.float32),
            "beta": jnp.zeros((d,), jnp.float32),
        },
        "target_disease_vectors": g(ks[10], (cfg["n_targets"], 768), dtype=bf),
        "target_att": {
            "wq": g(ks[11], (d, d), dtype=bf), "wk": g(ks[12], (d, d), dtype=bf),
            "wv": g(ks[13], (d, d), dtype=bf), "wo": g(ks[14], (d, d), dtype=bf),
            "bq": jnp.zeros((d,), jnp.float32), "bk": jnp.zeros((d,), jnp.float32),
            "bv": jnp.zeros((d,), jnp.float32), "bo": jnp.zeros((d,), jnp.float32),
        },
        "att_mlp_w1": g(ks[15], (2 * d, d), dtype=bf),
        "att_mlp_b1": g(ks[16], (d,)),
        "att_mlp_w2": g(ks[17], (d,)),        # Linear(d, 1, bias=False).weight as a row
        "mem_wq": g(ks[18], (d, d), dtype=bf),
        "mem_wk": g(ks[19], (d, d), dtype=bf),
        "out_w": g(ks[20], (3 * d, 2), dtype=bf),
        "out_b": g(ks[21], (2,)),
    }
    return params


# ----------------------------------------------------------------------------- #
# Main
# ----------------------------------------------------------------------------- #
if __name__ == "__main__":
    cfg = dict(
        vocab_size=20, d_model=32, num_layers=1, num_heads=4, max_pos=50,
        target_att_heads=4, mem_size=3, mem_update_size=2,
        n_blk_vocab=30, n_targets=8,
    )
    bs, seq_length, num_codes, num_blk_pervisit = 2, 4, 5, 6

    key = jax.random.PRNGKey(0)
    kp, k1, k2, k3, k4 = jax.random.split(key, 5)
    params = init_params(kp, cfg)

    input_seqs = jax.random.randint(k1, (bs, seq_length, num_codes), 0,
                                    cfg["vocab_size"], jnp.int32)
    masks_ehr = jnp.ones((bs, seq_length, num_codes), jnp.int32)          # unused in forward
    input_txt = jax.random.randint(k2, (bs, seq_length, num_blk_pervisit), 0,
                                   cfg["n_blk_vocab"], jnp.int32)
    masks_txt = jax.random.randint(k3, (bs, seq_length, num_blk_pervisit), 0, 2, jnp.int32)
    masks_txt = masks_txt.at[:, :, 0].set(1)                              # >=1 valid block/visit
    lengths = jax.random.randint(k4, (bs,), 2, seq_length + 1, jnp.int32)  # >=2 (ref requirement)
    time_step = jnp.zeros((bs, seq_length), jnp.int32)                    # unused in forward
    code_mask = jnp.ones((bs, seq_length, num_codes), jnp.int32)          # unused in forward

    fwd = jax.jit(lambda p, a, b, c, e, f, g, h:
                  text_decoder_forward(p, cfg, a, b, c, e, f, g, h))
    output, memory_final = fwd(params, input_seqs, masks_ehr, input_txt, masks_txt,
                               lengths, time_step, code_mask)
    output = jax.block_until_ready(output)
    memory_final = jax.block_until_ready(memory_final)

    assert output.shape == (bs, 2)
    assert memory_final.shape == (bs, cfg["mem_size"])
    print("KERNEL_OK")
</pallas_src>

<mosaic_0001>
module attributes {stable_mosaic.version = 11 : i64} {
  func.func @_blk_trans_kernel(%arg0: i32, %arg1: memref<38x768xbf16, #tpu.memory_space<vmem>>, %arg2: memref<768x64xbf16, #tpu.memory_space<vmem>>, %arg3: memref<1x64xf32, #tpu.memory_space<vmem>>, %arg4: memref<64x32xbf16, #tpu.memory_space<vmem>>, %arg5: memref<1x32xf32, #tpu.memory_space<vmem>>, %arg6: memref<1x32xf32, #tpu.memory_space<vmem>>, %arg7: memref<1x32xf32, #tpu.memory_space<vmem>>, %arg8: memref<38x32xf32, #tpu.memory_space<vmem>>) attributes {dimension_semantics = [#tpu.dimension_semantics<parallel>], iteration_bounds = array<i64: 1>, scalar_prefetch = 0 : i64, scratch_operands = 0 : i64, tpu.core_type = #tpu.core_type<tc>, window_params = [{transform_indices = @transform_0, window_bounds = array<i64: 38, 768>}, {pipeline_mode = #tpu.pipeline_mode<synchronous>, transform_indices = @transform_1, window_bounds = array<i64: 768, 64>}, {pipeline_mode = #tpu.pipeline_mode<synchronous>, transform_indices = @transform_2, window_bounds = array<i64: 1, 64>}, {pipeline_mode = #tpu.pipeline_mode<synchronous>, transform_indices = @transform_3, window_bounds = array<i64: 64, 32>}, {pipeline_mode = #tpu.pipeline_mode<synchronous>, transform_indices = @transform_4, window_bounds = array<i64: 1, 32>}, {pipeline_mode = #tpu.pipeline_mode<synchronous>, transform_indices = @transform_5, window_bounds = array<i64: 1, 32>}, {pipeline_mode = #tpu.pipeline_mode<synchronous>, transform_indices = @transform_6, window_bounds = array<i64: 1, 32>}, {transform_indices = @transform_7, window_bounds = array<i64: 38, 32>}]} {
    %c0 = arith.constant 0 : index
    %c0_0 = arith.constant 0 : index
    %0 = vector.load %arg1[%c0, %c0_0] : memref<38x768xbf16, #tpu.memory_space<vmem>>, vector<38x768xbf16>
    %c0_1 = arith.constant 0 : index
    %c0_2 = arith.constant 0 : index
    %1 = vector.load %arg2[%c0_1, %c0_2] : memref<768x64xbf16, #tpu.memory_space<vmem>>, vector<768x64xbf16>
    %cst = arith.constant dense<0.000000e+00> : vector<38x64xf32>
    %2 = tpu.matmul %0, %1, %cst {dimension_numbers = #tpu.dot_dimension_numbers<[1], [0], [0], [1], [0, 0, 1, 1], [], []>} : vector<38x768xbf16>, vector<768x64xbf16>, vector<38x64xf32> -> vector<38x64xf32>
    %c0_3 = arith.constant 0 : index
    %c0_4 = arith.constant 0 : index
    %3 = vector.load %arg3[%c0_3, %c0_4] : memref<1x64xf32, #tpu.memory_space<vmem>>, vector<1x64xf32>
    %4 = vector.broadcast %3 : vector<1x64xf32> to vector<38x64xf32>
    %5 = arith.addf %2, %4 : vector<38x64xf32>
    %cst_5 = arith.constant 0.000000e+00 : f32
    %6 = vector.broadcast %cst_5 : f32 to vector<38x64xf32>
    %7 = arith.maximumf %5, %6 : vector<38x64xf32>
    %8 = arith.truncf %7 : vector<38x64xf32> to vector<38x64xbf16>
    %c0_6 = arith.constant 0 : index
    %c0_7 = arith.constant 0 : index
    %9 = vector.load %arg4[%c0_6, %c0_7] : memref<64x32xbf16, #tpu.memory_space<vmem>>, vector<64x32xbf16>
    %cst_8 = arith.constant dense<0.000000e+00> : vector<38x32xf32>
    %10 = tpu.matmul %8, %9, %cst_8 {dimension_numbers = #tpu.dot_dimension_numbers<[1], [0], [0], [1], [0, 0, 1, 1], [], []>} : vector<38x64xbf16>, vector<64x32xbf16>, vector<38x32xf32> -> vector<38x32xf32>
    %c0_9 = arith.constant 0 : index
    %c0_10 = arith.constant 0 : index
    %11 = vector.load %arg5[%c0_9, %c0_10] : memref<1x32xf32, #tpu.memory_space<vmem>>, vector<1x32xf32>
    %12 = vector.broadcast %11 : vector<1x32xf32> to vector<38x32xf32>
    %13 = arith.addf %10, %12 : vector<38x32xf32>
    %cst_11 = arith.constant dense<0.000000e+00> : vector<38xf32>
    %14 = vector.multi_reduction <add>, %13, %cst_11 [1] : vector<38x32xf32> to vector<38xf32>
    %15 = vector.shape_cast %14 : vector<38xf32> to vector<38x1xf32>
    %cst_12 = arith.constant 3.200000e+01 : f32
    %16 = vector.broadcast %cst_12 : f32 to vector<38x1xf32>
    %17 = arith.divf %15, %16 : vector<38x1xf32>
    %18 = vector.broadcast %17 : vector<38x1xf32> to vector<38x32xf32>
    %19 = arith.subf %13, %18 : vector<38x32xf32>
    %20 = arith.mulf %19, %19 : vector<38x32xf32>
    %cst_13 = arith.constant dense<0.000000e+00> : vector<38xf32>
    %21 = vector.multi_reduction <add>, %20, %cst_13 [1] : vector<38x32xf32> to vector<38xf32>
    %22 = vector.shape_cast %21 : vector<38xf32> to vector<38x1xf32>
    %cst_14 = arith.constant 3.200000e+01 : f32
    %23 = vector.broadcast %cst_14 : f32 to vector<38x1xf32>
    %24 = arith.divf %22, %23 : vector<38x1xf32>
    %25 = vector.broadcast %17 : vector<38x1xf32> to vector<38x32xf32>
    %26 = arith.subf %13, %25 : vector<38x32xf32>
    %cst_15 = arith.constant 9.99999974E-6 : f32
    %27 = vector.broadcast %cst_15 : f32 to vector<38x1xf32>
    %28 = arith.addf %24, %27 : vector<38x1xf32>
    %29 = math.rsqrt %28 : vector<38x1xf32>
    %30 = vector.broadcast %29 : vector<38x1xf32> to vector<38x32xf32>
    %31 = arith.mulf %26, %30 : vector<38x32xf32>
    %c0_16 = arith.constant 0 : index
    %c0_17 = arith.constant 0 : index
    %32 = vector.load %arg6[%c0_16, %c0_17] : memref<1x32xf32, #tpu.memory_space<vmem>>, vector<1x32xf32>
    %33 = vector.broadcast %32 : vector<1x32xf32> to vector<38x32xf32>
    %34 = arith.mulf %31, %33 : vector<38x32xf32>
    %c0_18 = arith.constant 0 : index
    %c0_19 = arith.constant 0 : index
    %35 = vector.load %arg7[%c0_18, %c0_19] : memref<1x32xf32, #tpu.memory_space<vmem>>, vector<1x32xf32>
    %36 = vector.broadcast %35 : vector<1x32xf32> to vector<38x32xf32>
    %37 = arith.addf %34, %36 : vector<38x32xf32>
    %c0_20 = arith.constant 0 : index
    %c0_21 = arith.constant 0 : index
    %38 = vector.load %arg8[%c0_20, %c0_21] : memref<38x32xf32, #tpu.memory_space<vmem>>, vector<38x32xf32>
    tpu.vector_store %arg8[%c0_20, %c0_21], %37 {strides = array<i32>} : memref<38x32xf32, #tpu.memory_space<vmem>>, vector<38x32xf32>,
    return
  }
  func.func @transform_0(%arg0: i32) -> (i32, i32) {
    %c0_i32 = arith.constant 0 : i32
    %c0_i32_0 = arith.constant 0 : i32
    return %arg0, %c0_i32 : i32, i32
  }
  func.func @transform_1(%arg0: i32) -> (i32, i32) {
    %c0_i32 = arith.constant 0 : i32
    %c0_i32_0 = arith.constant 0 : i32
    %c0_i32_1 = arith.constant 0 : i32
    return %c0_i32, %c0_i32_0 : i32, i32
  }
  func.func @transform_2(%arg0: i32) -> (i32, i32) {
    %c0_i32 = arith.constant 0 : i32
    %c0_i32_0 = arith.constant 0 : i32
    %c0_i32_1 = arith.constant 0 : i32
    return %c0_i32, %c0_i32_0 : i32, i32
  }
  func.func @transform_3(%arg0: i32) -> (i32, i32) {
    %c0_i32 = arith.constant 0 : i32
    %c0_i32_0 = arith.constant 0 : i32
    %c0_i32_1 = arith.constant 0 : i32
    return %c0_i32, %c0_i32_0 : i32, i32
  }
  func.func @transform_4(%arg0: i32) -> (i32, i32) {
    %c0_i32 = arith.constant 0 : i32
    %c0_i32_0 = arith.constant 0 : i32
    %c0_i32_1 = arith.constant 0 : i32
    return %c0_i32, %c0_i32_0 : i32, i32
  }
  func.func @transform_5(%arg0: i32) -> (i32, i32) {
    %c0_i32 = arith.constant 0 : i32
    %c0_i32_0 = arith.constant 0 : i32
    %c0_i32_1 = arith.constant 0 : i32
    return %c0_i32, %c0_i32_0 : i32, i32
  }
  func.func @transform_6(%arg0: i32) -> (i32, i32) {
    %c0_i32 = arith.constant 0 : i32
    %c0_i32_0 = arith.constant 0 : i32
    %c0_i32_1 = arith.constant 0 : i32
    return %c0_i32, %c0_i32_0 : i32, i32
  }
  func.func @transform_7(%arg0: i32) -> (i32, i32) {
    %c0_i32 = arith.constant 0 : i32
    %c0_i32_0 = arith.constant 0 : i32
    return %arg0, %c0_i32 : i32, i32
  }
}

module attributes {stable_mosaic.version = 11 : i64} {
  func.func @_linear_bias_kernel(%arg0: i32, %arg1: memref<8x32xf32, #tpu.memory_space<vmem>>, %arg2: memref<32x32xbf16, #tpu.memory_space<vmem>>, %arg3: memref<1x32xf32, #tpu.memory_space<vmem>>, %arg4: memref<8x32xf32, #tpu.memory_space<vmem>>) attributes {dimension_semantics = [#tpu.dimension_semantics<parallel>], iteration_bounds = array<i64: 1>, scalar_prefetch = 0 : i64, scratch_operands = 0 : i64, tpu.core_type = #tpu.core_type<tc>, window_params = [{transform_indices = @transform_0, window_bounds = array<i64: 8, 32>}, {pipeline_mode = #tpu.pipeline_mode<synchronous>, transform_indices = @transform_1, window_bounds = array<i64: 32, 32>}, {pipeline_mode = #tpu.pipeline_mode<synchronous>, transform_indices = @transform_2, window_bounds = array<i64: 1, 32>}, {transform_indices = @transform_3, window_bounds = array<i64: 8, 32>}]} {
    %c0 = arith.constant 0 : index
    %c0_0 = arith.constant 0 : index
    %0 = vector.load %arg1[%c0, %c0_0] : memref<8x32xf32, #tpu.memory_space<vmem>>, vector<8x32xf32>
    %1 = arith.truncf %0 : vector<8x32xf32> to vector<8x32xbf16>
    %c0_1 = arith.constant 0 : index
    %c0_2 = arith.constant 0 : index
    %2 = vector.load %arg2[%c0_1, %c0_2] : memref<32x32xbf16, #tpu.memory_space<vmem>>, vector<32x32xbf16>
    %cst = arith.constant dense<0.000000e+00> : vector<8x32xf32>
    %3 = tpu.matmul %1, %2, %cst {dimension_numbers = #tpu.dot_dimension_numbers<[1], [0], [0], [1], [0, 0, 1, 1], [], []>} : vector<8x32xbf16>, vector<32x32xbf16>, vector<8x32xf32> -> vector<8x32xf32>
    %c0_3 = arith.constant 0 : index
    %c0_4 = arith.constant 0 : index
    %4 = vector.load %arg3[%c0_3, %c0_4] : memref<1x32xf32, #tpu.memory_space<vmem>>, vector<1x32xf32>
    %5 = vector.broadcast %4 : vector<1x32xf32> to vector<8x32xf32>
    %6 = arith.addf %3, %5 : vector<8x32xf32>
    %c0_5 = arith.constant 0 : index
    %c0_6 = arith.constant 0 : index
    %7 = vector.load %arg4[%c0_5, %c0_6] : memref<8x32xf32, #tpu.memory_space<vmem>>, vector<8x32xf32>
    tpu.vector_store %arg4[%c0_5, %c0_6], %6 {strides = array<i32>} : memref<8x32xf32, #tpu.memory_space<vmem>>, vector<8x32xf32>,
    return
  }
  func.func @transform_0(%arg0: i32) -> (i32, i32) {
    %c0_i32 = arith.constant 0 : i32
    %c0_i32_0 = arith.constant 0 : i32
    return %arg0, %c0_i32 : i32, i32
  }
  func.func @transform_1(%arg0: i32) -> (i32, i32) {
    %c0_i32 = arith.constant 0 : i32
    %c0_i32_0 = arith.constant 0 : i32
    %c0_i32_1 = arith.constant 0 : i32
    return %c0_i32, %c0_i32_0 : i32, i32
  }
  func.func @transform_2(%arg0: i32) -> (i32, i32) {
    %c0_i32 = arith.constant 0 : i32
    %c0_i32_0 = arith.constant 0 : i32
    %c0_i32_1 = arith.constant 0 : i32
    return %c0_i32, %c0_i32_0 : i32, i32
  }
  func.func @transform_3(%arg0: i32) -> (i32, i32) {
    %c0_i32 = arith.constant 0 : i32
    %c0_i32_0 = arith.constant 0 : i32
    return %arg0, %c0_i32 : i32, i32
  }
}

module attributes {stable_mosaic.version = 11 : i64} {
  func.func @_linear_bias_kernel(%arg0: i32, %arg1: memref<8x32xf32, #tpu.memory_space<vmem>>, %arg2: memref<32x96xbf16, #tpu.memory_space<vmem>>, %arg3: memref<1x96xf32, #tpu.memory_space<vmem>>, %arg4: memref<8x96xf32, #tpu.memory_space<vmem>>) attributes {dimension_semantics = [#tpu.dimension_semantics<parallel>], iteration_bounds = array<i64: 1>, scalar_prefetch = 0 : i64, scratch_operands = 0 : i64, tpu.core_type = #tpu.core_type<tc>, window_params = [{transform_indices = @transform_0, window_bounds = array<i64: 8, 32>}, {pipeline_mode = #tpu.pipeline_mode<synchronous>, transform_indices = @transform_1, window_bounds = array<i64: 32, 96>}, {pipeline_mode = #tpu.pipeline_mode<synchronous>, transform_indices = @transform_2, window_bounds = array<i64: 1, 96>}, {transform_indices = @transform_3, window_bounds = array<i64: 8, 96>}]} {
    %c0 = arith.constant 0 : index
    %c0_0 = arith.constant 0 : index
    %0 = vector.load %arg1[%c0, %c0_0] : memref<8x32xf32, #tpu.memory_space<vmem>>, vector<8x32xf32>
    %1 = arith.truncf %0 : vector<8x32xf32> to vector<8x32xbf16>
    %c0_1 = arith.constant 0 : index
    %c0_2 = arith.constant 0 : index
    %2 = vector.load %arg2[%c0_1, %c0_2] : memref<32x96xbf16, #tpu.memory_space<vmem>>, vector<32x96xbf16>
    %cst = arith.constant dense<0.000000e+00> : vector<8x96xf32>
    %3 = tpu.matmul %1, %2, %cst {dimension_numbers = #tpu.dot_dimension_numbers<[1], [0], [0], [1], [0, 0, 1, 1], [], []>} : vector<8x32xbf16>, vector<32x96xbf16>, vector<8x96xf32> -> vector<8x96xf32>
    %c0_3 = arith.constant 0 : index
    %c0_4 = arith.constant 0 : index
    %4 = vector.load %arg3[%c0_3, %c0_4] : memref<1x96xf32, #tpu.memory_space<vmem>>, vector<1x96xf32>
    %5 = vector.broadcast %4 : vector<1x96xf32> to vector<8x96xf32>
    %6 = arith.addf %3, %5 : vector<8x96xf32>
    %c0_5 = arith.constant 0 : index
    %c0_6 = arith.constant 0 : index
    %7 = vector.load %arg4[%c0_5, %c0_6] : memref<8x96xf32, #tpu.memory_space<vmem>>, vector<8x96xf32>
    tpu.vector_store %arg4[%c0_5, %c0_6], %6 {strides = array<i32>} : memref<8x96xf32, #tpu.memory_space<vmem>>, vector<8x96xf32>,
    return
  }
  func.func @transform_0(%arg0: i32) -> (i32, i32) {
    %c0_i32 = arith.constant 0 : i32
    %c0_i32_0 = arith.constant 0 : i32
    return %arg0, %c0_i32 : i32, i32
  }
  func.func @transform_1(%arg0: i32) -> (i32, i32) {
    %c0_i32 = arith.constant 0 : i32
    %c0_i32_0 = arith.constant 0 : i32
    %c0_i32_1 = arith.constant 0 : i32
    return %c0_i32, %c0_i32_0 : i32, i32
  }
  func.func @transform_2(%arg0: i32) -> (i32, i32) {
    %c0_i32 = arith.constant 0 : i32
    %c0_i32_0 = arith.constant 0 : i32
    %c0_i32_1 = arith.constant 0 : i32
    return %c0_i32, %c0_i32_0 : i32, i32
  }
  func.func @transform_3(%arg0: i32) -> (i32, i32) {
    %c0_i32 = arith.constant 0 : i32
    %c0_i32_0 = arith.constant 0 : i32
    return %arg0, %c0_i32 : i32, i32
  }
}

module attributes {stable_mosaic.version = 11 : i64} {
  func.func @kernel(%arg0: i32, %arg1: memref<1x2x96xf32, #tpu.memory_space<vmem>>, %arg2: memref<32x96xbf16, #tpu.memory_space<vmem>>, %arg3: memref<1x96xf32, #tpu.memory_space<vmem>>, %arg4: memref<1x2x32xf32, #tpu.memory_space<vmem>>, %arg5: memref<2x32xf32, #tpu.memory_space<vmem>>) attributes {dimension_semantics = [#tpu.dimension_semantics<arbitrary>], iteration_bounds = array<i64: 4>, scalar_prefetch = 0 : i64, scratch_operands = 1 : i64, tpu.core_type = #tpu.core_type<tc>, window_params = [{transform_indices = @transform_0, window_bounds = array<i64: 1, 2, 96>}, {pipeline_mode = #tpu.pipeline_mode<synchronous>, transform_indices = @transform_1, window_bounds = array<i64: 32, 96>}, {pipeline_mode = #tpu.pipeline_mode<synchronous>, transform_indices = @transform_2, window_bounds = array<i64: 1, 96>}, {transform_indices = @transform_3, window_bounds = array<i64: 1, 2, 32>}]} {
    %c0_i32 = arith.constant 0 : i32
    %0 = arith.cmpi eq, %arg0, %c0_i32 : i32
    %1 = arith.extui %0 : i1 to i32
    %c0_i32_0 = arith.constant 0 : i32
    %2 = arith.cmpi ne, %1, %c0_i32_0 : i32
    scf.if %2 {
      %cst_17 = arith.constant 0.000000e+00 : f32
      %42 = vector.broadcast %cst_17 : f32 to vector<2x32xf32>
      %c0_18 = arith.constant 0 : index
      %c0_19 = arith.constant 0 : index
      %43 = vector.load %arg5[%c0_18, %c0_19] : memref<2x32xf32, #tpu.memory_space<vmem>>, vector<2x32xf32>
      tpu.vector_store %arg5[%c0_18, %c0_19], %42 {strides = array<i32>} : memref<2x32xf32, #tpu.memory_space<vmem>>, vector<2x32xf32>,
    } else {
    }
    %c0 = arith.constant 0 : index
    %c0_1 = arith.constant 0 : index
    %3 = vector.load %arg5[%c0, %c0_1] : memref<2x32xf32, #tpu.memory_space<vmem>>, vector<2x32xf32>
    %c0_2 = arith.constant 0 : index
    %c0_3 = arith.constant 0 : index
    %c0_4 = arith.constant 0 : index
    %4 = vector.load %arg1[%c0_2, %c0_3, %c0_4] : memref<1x2x96xf32, #tpu.memory_space<vmem>>, vector<1x2x96xf32>
    %5 = vector.shape_cast %4 : vector<1x2x96xf32> to vector<2x96xf32>
    %6 = arith.truncf %3 : vector<2x32xf32> to vector<2x32xbf16>
    %c0_5 = arith.constant 0 : index
    %c0_6 = arith.constant 0 : index
    %7 = vector.load %arg2[%c0_5, %c0_6] : memref<32x96xbf16, #tpu.memory_space<vmem>>, vector<32x96xbf16>
    %cst = arith.constant dense<0.000000e+00> : vector<2x96xf32>
    %8 = tpu.matmul %6, %7, %cst {dimension_numbers = #tpu.dot_dimension_numbers<[1], [0], [0], [1], [0, 0, 1, 1], [], []>} : vector<2x32xbf16>, vector<32x96xbf16>, vector<2x96xf32> -> vector<2x96xf32>
    %c0_7 = arith.constant 0 : index
    %c0_8 = arith.constant 0 : index
    %9 = vector.load %arg3[%c0_7, %c0_8] : memref<1x96xf32, #tpu.memory_space<vmem>>, vector<1x96xf32>
    %10 = vector.broadcast %9 : vector<1x96xf32> to vector<2x96xf32>
    %11 = arith.addf %8, %10 : vector<2x96xf32>
    %12 = vector.extract_strided_slice %5 {offsets = [0, 0], sizes = [2, 32], strides = [1, 1]} : vector<2x96xf32> to vector<2x32xf32>
    %13 = vector.extract_strided_slice %11 {offsets = [0, 0], sizes = [2, 32], strides = [1, 1]} : vector<2x96xf32> to vector<2x32xf32>
    %14 = arith.addf %12, %13 : vector<2x32xf32>
    %15 = arith.negf %14 : vector<2x32xf32>
    %16 = math.exp %15 : vector<2x32xf32>
    %cst_9 = arith.constant 1.000000e+00 : f32
    %17 = vector.broadcast %cst_9 : f32 to vector<2x32xf32>
    %18 = arith.addf %17, %16 : vector<2x32xf32>
    %19 = arith.divf %17, %18 : vector<2x32xf32>
    %20 = vector.extract_strided_slice %5 {offsets = [0, 32], sizes = [2, 32], strides = [1, 1]} : vector<2x96xf32> to vector<2x32xf32>
    %21 = vector.extract_strided_slice %11 {offsets = [0, 32], sizes = [2, 32], strides = [1, 1]} : vector<2x96xf32> to vector<2x32xf32>
    %22 = arith.addf %20, %21 : vector<2x32xf32>
    %23 = arith.negf %22 : vector<2x32xf32>
    %24 = math.exp %23 : vector<2x32xf32>
    %cst_10 = arith.constant 1.000000e+00 : f32
    %25 = vector.broadcast %cst_10 : f32 to vector<2x32xf32>
    %26 = arith.addf %25, %24 : vector<2x32xf32>
    %27 = arith.divf %25, %26 : vector<2x32xf32>
    %28 = vector.extract_strided_slice %5 {offsets = [0, 64], sizes = [2, 32], strides = [1, 1]} : vector<2x96xf32> to vector<2x32xf32>
    %29 = vector.extract_strided_slice %11 {offsets = [0, 64], sizes = [2, 32], strides = [1, 1]} : vector<2x96xf32> to vector<2x32xf32>
    %30 = arith.mulf %19, %29 : vector<2x32xf32>
    %31 = arith.addf %28, %30 : vector<2x32xf32>
    %32 = math.tanh %31 : vector<2x32xf32>
    %cst_11 = arith.constant 1.000000e+00 : f32
    %33 = vector.broadcast %cst_11 : f32 to vector<2x32xf32>
    %34 = arith.subf %33, %27 : vector<2x32xf32>
    %35 = arith.mulf %34, %32 : vector<2x32xf32>
    %36 = arith.mulf %27, %3 : vector<2x32xf32>
    %37 = arith.addf %35, %36 : vector<2x32xf32>
    %c0_12 = arith.constant 0 : index
    %c0_13 = arith.constant 0 : index
    %38 = vector.load %arg5[%c0_12, %c0_13] : memref<2x32xf32, #tpu.memory_space<vmem>>, vector<2x32xf32>
    tpu.vector_store %arg5[%c0_12, %c0_13], %37 {strides = array<i32>} : memref<2x32xf32, #tpu.memory_space<vmem>>, vector<2x32xf32>,
    %c0_14 = arith.constant 0 : index
    %c0_15 = arith.constant 0 : index
    %c0_16 = arith.constant 0 : index
    %39 = vector.load %arg4[%c0_14, %c0_15, %c0_16] : memref<1x2x32xf32, #tpu.memory_space<vmem>>, vector<1x2x32xf32>
    %40 = vector.shape_cast %39 : vector<1x2x32xf32> to vector<2x32xf32>
    %41 = vector.shape_cast %37 : vector<2x32xf32> to vector<1x2x32xf32>
    tpu.vector_store %arg4[%c0_14, %c0_15, %c0_16], %41 {strides = array<i32>} : memref<1x2x32xf32, #tpu.memory_space<vmem>>, vector<1x2x32xf32>,
    return
  }
  func.func @transform_0(%arg0: i32) -> (i32, i32, i32) {
    %c0_i32 = arith.constant 0 : i32
    %c0_i32_0 = arith.constant 0 : i32
    %c0_i32_1 = arith.constant 0 : i32
    return %arg0, %c0_i32, %c0_i32_0 : i32, i32, i32
  }
  func.func @transform_1(%arg0: i32) -> (i32, i32) {
    %c0_i32 = arith.constant 0 : i32
    %c0_i32_0 = arith.constant 0 : i32
    %c0_i32_1 = arith.constant 0 : i32
    return %c0_i32, %c0_i32_0 : i32, i32
  }
  func.func @transform_2(%arg0: i32) -> (i32, i32) {
    %c0_i32 = arith.constant 0 : i32
    %c0_i32_0 = arith.constant 0 : i32
    %c0_i32_1 = arith.constant 0 : i32
    return %c0_i32, %c0_i32_0 : i32, i32
  }
  func.func @transform_3(%arg0: i32) -> (i32, i32, i32) {
    %c0_i32 = arith.constant 0 : i32
    %c0_i32_0 = arith.constant 0 : i32
    %c0_i32_1 = arith.constant 0 : i32
    return %arg0, %c0_i32, %c0_i32_0 : i32, i32, i32
  }
}

module attributes {stable_mosaic.version = 11 : i64} {
  func.func @kernel(%arg0: i32, %arg1: memref<1x4x32xf32, #tpu.memory_space<vmem>>, %arg2: memref<8x32xf32, #tpu.memory_space<vmem>>, %arg3: memref<8x32xf32, #tpu.memory_space<vmem>>, %arg4: memref<32x32xbf16, #tpu.memory_space<vmem>>, %arg5: memref<1x32xf32, #tpu.memory_space<vmem>>, %arg6: memref<32x32xbf16, #tpu.memory_space<vmem>>, %arg7: memref<1x32xf32, #tpu.memory_space<vmem>>, %arg8: memref<1x4x32xf32, #tpu.memory_space<vmem>>) attributes {dimension_semantics = [#tpu.dimension_semantics<parallel>], iteration_bounds = array<i64: 2>, scalar_prefetch = 0 : i64, scratch_operands = 0 : i64, tpu.core_type = #tpu.core_type<tc>, window_params = [{transform_indices = @transform_0, window_bounds = array<i64: 1, 4, 32>}, {pipeline_mode = #tpu.pipeline_mode<synchronous>, transform_indices = @transform_1, window_bounds = array<i64: 8, 32>}, {pipeline_mode = #tpu.pipeline_mode<synchronous>, transform_indices = @transform_2, window_bounds = array<i64: 8, 32>}, {pipeline_mode = #tpu.pipeline_mode<synchronous>, transform_indices = @transform_3, window_bounds = array<i64: 32, 32>}, {pipeline_mode = #tpu.pipeline_mode<synchronous>, transform_indices = @transform_4, window_bounds = array<i64: 1, 32>}, {pipeline_mode = #tpu.pipeline_mode<synchronous>, transform_indices = @transform_5, window_bounds = array<i64: 32, 32>}, {pipeline_mode = #tpu.pipeline_mode<synchronous>, transform_indices = @transform_6, window_bounds = array<i64: 1, 32>}, {transform_indices = @transform_7, window_bounds = array<i64: 1, 4, 32>}]} {
    %c0 = arith.constant 0 : index
    %c0_0 = arith.constant 0 : index
    %c0_1 = arith.constant 0 : index
    %0 = vector.load %arg1[%c0, %c0_0, %c0_1] : memref<1x4x32xf32, #tpu.memory_space<vmem>>, vector<1x4x32xf32>
    %1 = vector.shape_cast %0 : vector<1x4x32xf32> to vector<4x32xf32>
    %2 = arith.truncf %1 : vector<4x32xf32> to vector<4x32xbf16>
    %c0_2 = arith.constant 0 : index
    %c0_3 = arith.constant 0 : index
    %3 = vector.load %arg4[%c0_2, %c0_3] : memref<32x32xbf16, #tpu.memory_space<vmem>>, vector<32x32xbf16>
    %cst = arith.constant dense<0.000000e+00> : vector<4x32xf32>
    %4 = tpu.matmul %2, %3, %cst {dimension_numbers = #tpu.dot_dimension_numbers<[1], [0], [0], [1], [0, 0, 1, 1], [], []>} : vector<4x32xbf16>, vector<32x32xbf16>, vector<4x32xf32> -> vector<4x32xf32>
    %c0_4 = arith.constant 0 : index
    %c0_5 = arith.constant 0 : index
    %5 = vector.load %arg5[%c0_4, %c0_5] : memref<1x32xf32, #tpu.memory_space<vmem>>, vector<1x32xf32>
    %6 = vector.broadcast %5 : vector<1x32xf32> to vector<4x32xf32>
    %7 = arith.addf %4, %6 : vector<4x32xf32>
    %c0_6 = arith.constant 0 : index
    %c0_7 = arith.constant 0 : index
    %8 = vector.load %arg2[%c0_6, %c0_7] : memref<8x32xf32, #tpu.memory_space<vmem>>, vector<8x32xf32>
    %9 = arith.truncf %8 : vector<8x32xf32> to vector<8x32xbf16>
    %c0_8 = arith.constant 0 : index
    %c0_9 = arith.constant 0 : index
    %10 = vector.load %arg3[%c0_8, %c0_9] : memref<8x32xf32, #tpu.memory_space<vmem>>, vector<8x32xf32>
    %11 = arith.truncf %10 : vector<8x32xf32> to vector<8x32xbf16>
    %cst_10 = arith.constant 0.000000e+00 : f32
    %12 = vector.broadcast %cst_10 : f32 to vector<4x32xf32>
    %13 = vector.extract_strided_slice %7 {offsets = [0, 0], sizes = [4, 8], strides = [1, 1]} : vector<4x32xf32> to vector<4x8xf32>
    %14 = arith.truncf %13 : vector<4x8xf32> to vector<4x8xbf16>
    %15 = vector.extract_strided_slice %9 {offsets = [0, 0], sizes = [8, 8], strides = [1, 1]} : vector<8x32xbf16> to vector<8x8xbf16>
    %cst_11 = arith.constant dense<0.000000e+00> : vector<4x8xf32>
    %16 = tpu.matmul %14, %15, %cst_11 {dimension_numbers = #tpu.dot_dimension_numbers<[1], [1], [0], [0], [0, 0, 1, 0], [], []>} : vector<4x8xbf16>, vector<8x8xbf16>, vector<4x8xf32> -> vector<4x8xf32>
    %cst_12 = arith.constant 0.353553385 : f32
    %17 = vector.broadcast %cst_12 : f32 to vector<4x8xf32>
    %18 = arith.mulf %16, %17 : vector<4x8xf32>
    %cst_13 = arith.constant dense<0xFF800000> : vector<4xf32>
    %19 = vector.multi_reduction <maximumf>, %18, %cst_13 [1] : vector<4x8xf32> to vector<4xf32>
    %20 = vector.shape_cast %19 : vector<4xf32> to vector<4x1xf32>
    %21 = vector.broadcast %20 : vector<4x1xf32> to vector<4x8xf32>
    %22 = arith.subf %18, %21 : vector<4x8xf32>
    %23 = math.exp %22 : vector<4x8xf32>
    %cst_14 = arith.constant dense<0.000000e+00> : vector<4xf32>
    %24 = vector.multi_reduction <add>, %23, %cst_14 [1] : vector<4x8xf32> to vector<4xf32>
    %25 = vector.shape_cast %24 : vector<4xf32> to vector<4x1xf32>
    %26 = vector.broadcast %25 : vector<4x1xf32> to vector<4x8xf32>
    %27 = arith.divf %23, %26 : vector<4x8xf32>
    %28 = arith.truncf %27 : vector<4x8xf32> to vector<4x8xbf16>
    %29 = vector.extract_strided_slice %11 {offsets = [0, 0], sizes = [8, 8], strides = [1, 1]} : vector<8x32xbf16> to vector<8x8xbf16>
    %cst_15 = arith.constant dense<0.000000e+00> : vector<4x8xf32>
    %30 = tpu.matmul %28, %29, %cst_15 {dimension_numbers = #tpu.dot_dimension_numbers<[1], [0], [0], [1], [0, 0, 1, 1], [], []>} : vector<4x8xbf16>, vector<8x8xbf16>, vector<4x8xf32> -> vector<4x8xf32>
    %31 = arith.truncf %30 : vector<4x8xf32> to vector<4x8xbf16>
    %c0_16 = arith.constant 0 : index
    %c0_17 = arith.constant 0 : index
    %32 = vector.load %arg6[%c0_16, %c0_17] : memref<32x32xbf16, #tpu.memory_space<vmem>>, vector<8x32xbf16>
    %cst_18 = arith.constant dense<0.000000e+00> : vector<4x32xf32>
    %33 = tpu.matmul %31, %32, %cst_18 {dimension_numbers = #tpu.dot_dimension_numbers<[1], [0], [0], [1], [0, 0, 1, 1], [], []>} : vector<4x8xbf16>, vector<8x32xbf16>, vector<4x32xf32> -> vector<4x32xf32>
    %34 = arith.addf %12, %33 : vector<4x32xf32>
    %35 = vector.extract_strided_slice %7 {offsets = [0, 8], sizes = [4, 8], strides = [1, 1]} : vector<4x32xf32> to vector<4x8xf32>
    %36 = arith.truncf %35 : vector<4x8xf32> to vector<4x8xbf16>
    %37 = vector.extract_strided_slice %9 {offsets = [0, 8], sizes = [8, 8], strides = [1, 1]} : vector<8x32xbf16> to vector<8x8xbf16>
    %cst_19 = arith.constant dense<0.000000e+00> : vector<4x8xf32>
    %38 = tpu.matmul %36, %37, %cst_19 {dimension_numbers = #tpu.dot_dimension_numbers<[1], [1], [0], [0], [0, 0, 1, 0], [], []>} : vector<4x8xbf16>, vector<8x8xbf16>, vector<4x8xf32> -> vector<4x8xf32>
    %cst_20 = arith.constant 0.353553385 : f32
    %39 = vector.broadcast %cst_20 : f32 to vector<4x8xf32>
    %40 = arith.mulf %38, %39 : vector<4x8xf32>
    %cst_21 = arith.constant dense<0xFF800000> : vector<4xf32>
    %41 = vector.multi_reduction <maximumf>, %40, %cst_21 [1] : vector<4x8xf32> to vector<4xf32>
    %42 = vector.shape_cast %41 : vector<4xf32> to vector<4x1xf32>
    %43 = vector.broadcast %42 : vector<4x1xf32> to vector<4x8xf32>
    %44 = arith.subf %40, %43 : vector<4x8xf32>
    %45 = math.exp %44 : vector<4x8xf32>
    %cst_22 = arith.constant dense<0.000000e+00> : vector<4xf32>
    %46 = vector.multi_reduction <add>, %45, %cst_22 [1] : vector<4x8xf32> to vector<4xf32>
    %47 = vector.shape_cast %46 : vector<4xf32> to vector<4x1xf32>
    %48 = vector.broadcast %47 : vector<4x1xf32> to vector<4x8xf32>
    %49 = arith.divf %45, %48 : vector<4x8xf32>
    %50 = arith.truncf %49 : vector<4x8xf32> to vector<4x8xbf16>
    %51 = vector.extract_strided_slice %11 {offsets = [0, 8], sizes = [8, 8], strides = [1, 1]} : vector<8x32xbf16> to vector<8x8xbf16>
    %cst_23 = arith.constant dense<0.000000e+00> : vector<4x8xf32>
    %52 = tpu.matmul %50, %51, %cst_23 {dimension_numbers = #tpu.dot_dimension_numbers<[1], [0], [0], [1], [0, 0, 1, 1], [], []>} : vector<4x8xbf16>, vector<8x8xbf16>, vector<4x8xf32> -> vector<4x8xf32>
    %53 = arith.truncf %52 : vector<4x8xf32> to vector<4x8xbf16>
    %c8 = arith.constant 8 : index
    %c0_24 = arith.constant 0 : index
    %54 = vector.load %arg6[%c8, %c0_24] : memref<32x32xbf16, #tpu.memory_space<vmem>>, vector<8x32xbf16>
    %cst_25 = arith.constant dense<0.000000e+00> : vector<4x32xf32>
    %55 = tpu.matmul %53, %54, %cst_25 {dimension_numbers = #tpu.dot_dimension_numbers<[1], [0], [0], [1], [0, 0, 1, 1], [], []>} : vector<4x8xbf16>, vector<8x32xbf16>, vector<4x32xf32> -> vector<4x32xf32>
    %56 = arith.addf %34, %55 : vector<4x32xf32>
    %57 = vector.extract_strided_slice %7 {offsets = [0, 16], sizes = [4, 8], strides = [1, 1]} : vector<4x32xf32> to vector<4x8xf32>
    %58 = arith.truncf %57 : vector<4x8xf32> to vector<4x8xbf16>
    %59 = vector.extract_strided_slice %9 {offsets = [0, 16], sizes = [8, 8], strides = [1, 1]} : vector<8x32xbf16> to vector<8x8xbf16>
    %cst_26 = arith.constant dense<0.000000e+00> : vector<4x8xf32>
    %60 = tpu.matmul %58, %59, %cst_26 {dimension_numbers = #tpu.dot_dimension_numbers<[1], [1], [0], [0], [0, 0, 1, 0], [], []>} : vector<4x8xbf16>, vector<8x8xbf16>, vector<4x8xf32> -> vector<4x8xf32>
    %cst_27 = arith.constant 0.353553385 : f32
    %61 = vector.broadcast %cst_27 : f32 to vector<4x8xf32>
    %62 = arith.mulf %60, %61 : vector<4x8xf32>
    %cst_28 = arith.constant dense<0xFF800000> : vector<4xf32>
    %63 = vector.multi_reduction <maximumf>, %62, %cst_28 [1] : vector<4x8xf32> to vector<4xf32>
    %64 = vector.shape_cast %63 : vector<4xf32> to vector<4x1xf32>
    %65 = vector.broadcast %64 : vector<4x1xf32> to vector<4x8xf32>
    %66 = arith.subf %62, %65 : vector<4x8xf32>
    %67 = math.exp %66 : vector<4x8xf32>
    %cst_29 = arith.constant dense<0.000000e+00> : vector<4xf32>
    %68 = vector.multi_reduction <add>, %67, %cst_29 [1] : vector<4x8xf32> to vector<4xf32>
    %69 = vector.shape_cast %68 : vector<4xf32> to vector<4x1xf32>
    %70 = vector.broadcast %69 : vector<4x1xf32> to vector<4x8xf32>
    %71 = arith.divf %67, %70 : vector<4x8xf32>
    %72 = arith.truncf %71 : vector<4x8xf32> to vector<4x8xbf16>
    %73 = vector.extract_strided_slice %11 {offsets = [0, 16], sizes = [8, 8], strides = [1, 1]} : vector<8x32xbf16> to vector<8x8xbf16>
    %cst_30 = arith.constant dense<0.000000e+00> : vector<4x8xf32>
    %74 = tpu.matmul %72, %73, %cst_30 {dimension_numbers = #tpu.dot_dimension_numbers<[1], [0], [0], [1], [0, 0, 1, 1], [], []>} : vector<4x8xbf16>, vector<8x8xbf16>, vector<4x8xf32> -> vector<4x8xf32>
    %75 = arith.truncf %74 : vector<4x8xf32> to vector<4x8xbf16>
    %c16 = arith.constant 16 : index
    %c0_31 = arith.constant 0 : index
    %76 = vector.load %arg6[%c16, %c0_31] : memref<32x32xbf16, #tpu.memory_space<vmem>>, vector<8x32xbf16>
    %cst_32 = arith.constant dense<0.000000e+00> : vector<4x32xf32>
    %77 = tpu.matmul %75, %76, %cst_32 {dimension_numbers = #tpu.dot_dimension_numbers<[1], [0], [0], [1], [0, 0, 1, 1], [], []>} : vector<4x8xbf16>, vector<8x32xbf16>, vector<4x32xf32> -> vector<4x32xf32>
    %78 = arith.addf %56, %77 : vector<4x32xf32>
    %79 = vector.extract_strided_slice %7 {offsets = [0, 24], sizes = [4, 8], strides = [1, 1]} : vector<4x32xf32> to vector<4x8xf32>
    %80 = arith.truncf %79 : vector<4x8xf32> to vector<4x8xbf16>
    %81 = vector.extract_strided_slice %9 {offsets = [0, 24], sizes = [8, 8], strides = [1, 1]} : vector<8x32xbf16> to vector<8x8xbf16>
    %cst_33 = arith.constant dense<0.000000e+00> : vector<4x8xf32>
    %82 = tpu.matmul %80, %81, %cst_33 {dimension_numbers = #tpu.dot_dimension_numbers<[1], [1], [0], [0], [0, 0, 1, 0], [], []>} : vector<4x8xbf16>, vector<8x8xbf16>, vector<4x8xf32> -> vector<4x8xf32>
    %cst_34 = arith.constant 0.353553385 : f32
    %83 = vector.broadcast %cst_34 : f32 to vector<4x8xf32>
    %84 = arith.mulf %82, %83 : vector<4x8xf32>
    %cst_35 = arith.constant dense<0xFF800000> : vector<4xf32>
    %85 = vector.multi_reduction <maximumf>, %84, %cst_35 [1] : vector<4x8xf32> to vector<4xf32>
    %86 = vector.shape_cast %85 : vector<4xf32> to vector<4x1xf32>
    %87 = vector.broadcast %86 : vector<4x1xf32> to vector<4x8xf32>
    %88 = arith.subf %84, %87 : vector<4x8xf32>
    %89 = math.exp %88 : vector<4x8xf32>
    %cst_36 = arith.constant dense<0.000000e+00> : vector<4xf32>
    %90 = vector.multi_reduction <add>, %89, %cst_36 [1] : vector<4x8xf32> to vector<4xf32>
    %91 = vector.shape_cast %90 : vector<4xf32> to vector<4x1xf32>
    %92 = vector.broadcast %91 : vector<4x1xf32> to vector<4x8xf32>
    %93 = arith.divf %89, %92 : vector<4x8xf32>
    %94 = arith.truncf %93 : vector<4x8xf32> to vector<4x8xbf16>
    %95 = vector.extract_strided_slice %11 {offsets = [0, 24], sizes = [8, 8], strides = [1, 1]} : vector<8x32xbf16> to vector<8x8xbf16>
    %cst_37 = arith.constant dense<0.000000e+00> : vector<4x8xf32>
    %96 = tpu.matmul %94, %95, %cst_37 {dimension_numbers = #tpu.dot_dimension_numbers<[1], [0], [0], [1], [0, 0, 1, 1], [], []>} : vector<4x8xbf16>, vector<8x8xbf16>, vector<4x8xf32> -> vector<4x8xf32>
    %97 = arith.truncf %96 : vector<4x8xf32> to vector<4x8xbf16>
    %c24 = arith.constant 24 : index
    %c0_38 = arith.constant 0 : index
    %98 = vector.load %arg6[%c24, %c0_38] : memref<32x32xbf16, #tpu.memory_space<vmem>>, vector<8x32xbf16>
    %cst_39 = arith.constant dense<0.000000e+00> : vector<4x32xf32>
    %99 = tpu.matmul %97, %98, %cst_39 {dimension_numbers = #tpu.dot_dimension_numbers<[1], [0], [0], [1], [0, 0, 1, 1], [], []>} : vector<4x8xbf16>, vector<8x32xbf16>, vector<4x32xf32> -> vector<4x32xf32>
    %100 = arith.addf %78, %99 : vector<4x32xf32>
    %c0_40 = arith.constant 0 : index
    %c0_41 = arith.constant 0 : index
    %101 = vector.load %arg7[%c0_40, %c0_41] : memref<1x32xf32, #tpu.memory_space<vmem>>, vector<1x32xf32>
    %102 = vector.broadcast %101 : vector<1x32xf32> to vector<4x32xf32>
    %103 = arith.addf %100, %102 : vector<4x32xf32>
    %c0_42 = arith.constant 0 : index
    %c0_43 = arith.constant 0 : index
    %c0_44 = arith.constant 0 : index
    %104 = vector.load %arg8[%c0_42, %c0_43, %c0_44] : memref<1x4x32xf32, #tpu.memory_space<vmem>>, vector<1x4x32xf32>
    %105 = vector.shape_cast %104 : vector<1x4x32xf32> to vector<4x32xf32>
    %106 = vector.shape_cast %103 : vector<4x32xf32> to vector<1x4x32xf32>
    tpu.vector_store %arg8[%c0_42, %c0_43, %c0_44], %106 {strides = array<i32>} : memref<1x4x32xf32, #tpu.memory_space<vmem>>, vector<1x4x32xf32>,
    return
  }
  func.func @transform_0(%arg0: i32) -> (i32, i32, i32) {
    %c0_i32 = arith.constant 0 : i32
    %c0_i32_0 = arith.constant 0 : i32
    %c0_i32_1 = arith.constant 0 : i32
    return %arg0, %c0_i32, %c0_i32_0 : i32, i32, i32
  }
  func.func @transform_1(%arg0: i32) -> (i32, i32) {
    %c0_i32 = arith.constant 0 : i32
    %c0_i32_0 = arith.constant 0 : i32
    %c0_i32_1 = arith.constant 0 : i32
    return %c0_i32, %c0_i32_0 : i32, i32
  }
  func.func @transform_2(%arg0: i32) -> (i32, i32) {
    %c0_i32 = arith.constant 0 : i32
    %c0_i32_0 = arith.constant 0 : i32
    %c0_i32_1 = arith.constant 0 : i32
    return %c0_i32, %c0_i32_0 : i32, i32
  }
  func.func @transform_3(%arg0: i32) -> (i32, i32) {
    %c0_i32 = arith.constant 0 : i32
    %c0_i32_0 = arith.constant 0 : i32
    %c0_i32_1 = arith.constant 0 : i32
    return %c0_i32, %c0_i32_0 : i32, i32
  }
  func.func @transform_4(%arg0: i32) -> (i32, i32) {
    %c0_i32 = arith.constant 0 : i32
    %c0_i32_0 = arith.constant 0 : i32
    %c0_i32_1 = arith.constant 0 : i32
    return %c0_i32, %c0_i32_0 : i32, i32
  }
  func.func @transform_5(%arg0: i32) -> (i32, i32) {
    %c0_i32 = arith.constant 0 : i32
    %c0_i32_0 = arith.constant 0 : i32
    %c0_i32_1 = arith.constant 0 : i32
    return %c0_i32, %c0_i32_0 : i32, i32
  }
  func.func @transform_6(%arg0: i32) -> (i32, i32) {
    %c0_i32 = arith.constant 0 : i32
    %c0_i32_0 = arith.constant 0 : i32
    %c0_i32_1 = arith.constant 0 : i32
    return %c0_i32, %c0_i32_0 : i32, i32
  }
  func.func @transform_7(%arg0: i32) -> (i32, i32, i32) {
    %c0_i32 = arith.constant 0 : i32
    %c0_i32_0 = arith.constant 0 : i32
    %c0_i32_1 = arith.constant 0 : i32
    return %arg0, %c0_i32, %c0_i32_0 : i32, i32, i32
  }
}

module attributes {stable_mosaic.version = 11 : i64} {
  func.func @kernel(%arg0: i32, %arg1: memref<8x32xf32, #tpu.memory_space<vmem>>, %arg2: memref<8x192xf32, #tpu.memory_space<vmem>>, %arg3: memref<32x32xbf16, #tpu.memory_space<vmem>>, %arg4: memref<32x32xbf16, #tpu.memory_space<vmem>>, %arg5: memref<1x32xf32, #tpu.memory_space<vmem>>, %arg6: memref<1x32xf32, #tpu.memory_space<vmem>>, %arg7: memref<8x6xf32, #tpu.memory_space<vmem>>, %arg8: memref<8x6xf32, #tpu.memory_space<vmem>>) attributes {dimension_semantics = [#tpu.dimension_semantics<parallel>], iteration_bounds = array<i64: 1>, scalar_prefetch = 0 : i64, scratch_operands = 0 : i64, tpu.core_type = #tpu.core_type<tc>, window_params = [{transform_indices = @transform_0, window_bounds = array<i64: 8, 32>}, {transform_indices = @transform_1, window_bounds = array<i64: 8, 192>}, {pipeline_mode = #tpu.pipeline_mode<synchronous>, transform_indices = @transform_2, window_bounds = array<i64: 32, 32>}, {pipeline_mode = #tpu.pipeline_mode<synchronous>, transform_indices = @transform_3, window_bounds = array<i64: 32, 32>}, {pipeline_mode = #tpu.pipeline_mode<synchronous>, transform_indices = @transform_4, window_bounds = array<i64: 1, 32>}, {pipeline_mode = #tpu.pipeline_mode<synchronous>, transform_indices = @transform_5, window_bounds = array<i64: 1, 32>}, {transform_indices = @transform_6, window_bounds = array<i64: 8, 6>}, {transform_indices = @transform_7, window_bounds = array<i64: 8, 6>}]} {
    %c0 = arith.constant 0 : index
    %c0_0 = arith.constant 0 : index
    %0 = vector.load %arg1[%c0, %c0_0] : memref<8x32xf32, #tpu.memory_space<vmem>>, vector<8x32xf32>
    %1 = arith.truncf %0 : vector<8x32xf32> to vector<8x32xbf16>
    %c0_1 = arith.constant 0 : index
    %c0_2 = arith.constant 0 : index
    %2 = vector.load %arg3[%c0_1, %c0_2] : memref<32x32xbf16, #tpu.memory_space<vmem>>, vector<32x32xbf16>
    %cst = arith.constant dense<0.000000e+00> : vector<8x32xf32>
    %3 = tpu.matmul %1, %2, %cst {dimension_numbers = #tpu.dot_dimension_numbers<[1], [0], [0], [1], [0, 0, 1, 1], [], []>} : vector<8x32xbf16>, vector<32x32xbf16>, vector<8x32xf32> -> vector<8x32xf32>
    %c0_3 = arith.constant 0 : index
    %c0_4 = arith.constant 0 : index
    %4 = vector.load %arg5[%c0_3, %c0_4] : memref<1x32xf32, #tpu.memory_space<vmem>>, vector<1x32xf32>
    %5 = vector.broadcast %4 : vector<1x32xf32> to vector<8x32xf32>
    %6 = arith.addf %3, %5 : vector<8x32xf32>
    %c0_5 = arith.constant 0 : index
    %c0_6 = arith.constant 0 : index
    %7 = vector.load %arg2[%c0_5, %c0_6] : memref<8x192xf32, #tpu.memory_space<vmem>>, vector<8x192xf32>
    %c0_7 = arith.constant 0 : index
    %c0_8 = arith.constant 0 : index
    %8 = vector.load %arg6[%c0_7, %c0_8] : memref<1x32xf32, #tpu.memory_space<vmem>>, vector<1x32xf32>
    %9 = vector.extract_strided_slice %7 {offsets = [0, 0], sizes = [8, 32], strides = [1, 1]} : vector<8x192xf32> to vector<8x32xf32>
    %10 = arith.truncf %9 : vector<8x32xf32> to vector<8x32xbf16>
    %c0_9 = arith.constant 0 : index
    %c0_10 = arith.constant 0 : index
    %11 = vector.load %arg4[%c0_9, %c0_10] : memref<32x32xbf16, #tpu.memory_space<vmem>>, vector<32x32xbf16>
    %cst_11 = arith.constant dense<0.000000e+00> : vector<8x32xf32>
    %12 = tpu.matmul %10, %11, %cst_11 {dimension_numbers = #tpu.dot_dimension_numbers<[1], [0], [0], [1], [0, 0, 1, 1], [], []>} : vector<8x32xbf16>, vector<32x32xbf16>, vector<8x32xf32> -> vector<8x32xf32>
    %13 = arith.addf %6, %12 : vector<8x32xf32>
    %14 = math.tanh %13 : vector<8x32xf32>
    %15 = vector.broadcast %8 : vector<1x32xf32> to vector<8x32xf32>
    %16 = arith.mulf %14, %15 : vector<8x32xf32>
    %cst_12 = arith.constant dense<0.000000e+00> : vector<8xf32>
    %17 = vector.multi_reduction <add>, %16, %cst_12 [1] : vector<8x32xf32> to vector<8xf32>
    %18 = vector.shape_cast %17 : vector<8xf32> to vector<8x1xf32>
    %19 = vector.extract_strided_slice %7 {offsets = [0, 32], sizes = [8, 32], strides = [1, 1]} : vector<8x192xf32> to vector<8x32xf32>
    %20 = arith.truncf %19 : vector<8x32xf32> to vector<8x32xbf16>
    %c0_13 = arith.constant 0 : index
    %c0_14 = arith.constant 0 : index
    %21 = vector.load %arg4[%c0_13, %c0_14] : memref<32x32xbf16, #tpu.memory_space<vmem>>, vector<32x32xbf16>
    %cst_15 = arith.constant dense<0.000000e+00> : vector<8x32xf32>
    %22 = tpu.matmul %20, %21, %cst_15 {dimension_numbers = #tpu.dot_dimension_numbers<[1], [0], [0], [1], [0, 0, 1, 1], [], []>} : vector<8x32xbf16>, vector<32x32xbf16>, vector<8x32xf32> -> vector<8x32xf32>
    %23 = arith.addf %6, %22 : vector<8x32xf32>
    %24 = math.tanh %23 : vector<8x32xf32>
    %25 = vector.broadcast %8 : vector<1x32xf32> to vector<8x32xf32>
    %26 = arith.mulf %24, %25 : vector<8x32xf32>
    %cst_16 = arith.constant dense<0.000000e+00> : vector<8xf32>
    %27 = vector.multi_reduction <add>, %26, %cst_16 [1] : vector<8x32xf32> to vector<8xf32>
    %28 = vector.shape_cast %27 : vector<8xf32> to vector<8x1xf32>
    %29 = vector.extract_strided_slice %7 {offsets = [0, 64], sizes = [8, 32], strides = [1, 1]} : vector<8x192xf32> to vector<8x32xf32>
    %30 = arith.truncf %29 : vector<8x32xf32> to vector<8x32xbf16>
    %c0_17 = arith.constant 0 : index
    %c0_18 = arith.constant 0 : index
    %31 = vector.load %arg4[%c0_17, %c0_18] : memref<32x32xbf16, #tpu.memory_space<vmem>>, vector<32x32xbf16>
    %cst_19 = arith.constant dense<0.000000e+00> : vector<8x32xf32>
    %32 = tpu.matmul %30, %31, %cst_19 {dimension_numbers = #tpu.dot_dimension_numbers<[1], [0], [0], [1], [0, 0, 1, 1], [], []>} : vector<8x32xbf16>, vector<32x32xbf16>, vector<8x32xf32> -> vector<8x32xf32>
    %33 = arith.addf %6, %32 : vector<8x32xf32>
    %34 = math.tanh %33 : vector<8x32xf32>
    %35 = vector.broadcast %8 : vector<1x32xf32> to vector<8x32xf32>
    %36 = arith.mulf %34, %35 : vector<8x32xf32>
    %cst_20 = arith.constant dense<0.000000e+00> : vector<8xf32>
    %37 = vector.multi_reduction <add>, %36, %cst_20 [1] : vector<8x32xf32> to vector<8xf32>
    %38 = vector.shape_cast %37 : vector<8xf32> to vector<8x1xf32>
    %39 = vector.extract_strided_slice %7 {offsets = [0, 96], sizes = [8, 32], strides = [1, 1]} : vector<8x192xf32> to vector<8x32xf32>
    %40 = arith.truncf %39 : vector<8x32xf32> to vector<8x32xbf16>
    %c0_21 = arith.constant 0 : index
    %c0_22 = arith.constant 0 : index
    %41 = vector.load %arg4[%c0_21, %c0_22] : memref<32x32xbf16, #tpu.memory_space<vmem>>, vector<32x32xbf16>
    %cst_23 = arith.constant dense<0.000000e+00> : vector<8x32xf32>
    %42 = tpu.matmul %40, %41, %cst_23 {dimension_numbers = #tpu.dot_dimension_numbers<[1], [0], [0], [1], [0, 0, 1, 1], [], []>} : vector<8x32xbf16>, vector<32x32xbf16>, vector<8x32xf32> -> vector<8x32xf32>
    %43 = arith.addf %6, %42 : vector<8x32xf32>
    %44 = math.tanh %43 : vector<8x32xf32>
    %45 = vector.broadcast %8 : vector<1x32xf32> to vector<8x32xf32>
    %46 = arith.mulf %44, %45 : vector<8x32xf32>
    %cst_24 = arith.constant dense<0.000000e+00> : vector<8xf32>
    %47 = vector.multi_reduction <add>, %46, %cst_24 [1] : vector<8x32xf32> to vector<8xf32>
    %48 = vector.shape_cast %47 : vector<8xf32> to vector<8x1xf32>
    %49 = vector.extract_strided_slice %7 {offsets = [0, 128], sizes = [8, 32], strides = [1, 1]} : vector<8x192xf32> to vector<8x32xf32>
    %50 = arith.truncf %49 : vector<8x32xf32> to vector<8x32xbf16>
    %c0_25 = arith.constant 0 : index
    %c0_26 = arith.constant 0 : index
    %51 = vector.load %arg4[%c0_25, %c0_26] : memref<32x32xbf16, #tpu.memory_space<vmem>>, vector<32x32xbf16>
    %cst_27 = arith.constant dense<0.000000e+00> : vector<8x32xf32>
    %52 = tpu.matmul %50, %51, %cst_27 {dimension_numbers = #tpu.dot_dimension_numbers<[1], [0], [0], [1], [0, 0, 1, 1], [], []>} : vector<8x32xbf16>, vector<32x32xbf16>, vector<8x32xf32> -> vector<8x32xf32>
    %53 = arith.addf %6, %52 : vector<8x32xf32>
    %54 = math.tanh %53 : vector<8x32xf32>
    %55 = vector.broadcast %8 : vector<1x32xf32> to vector<8x32xf32>
    %56 = arith.mulf %54, %55 : vector<8x32xf32>
    %cst_28 = arith.constant dense<0.000000e+00> : vector<8xf32>
    %57 = vector.multi_reduction <add>, %56, %cst_28 [1] : vector<8x32xf32> to vector<8xf32>
    %58 = vector.shape_cast %57 : vector<8xf32> to vector<8x1xf32>
    %59 = vector.extract_strided_slice %7 {offsets = [0, 160], sizes = [8, 32], strides = [1, 1]} : vector<8x192xf32> to vector<8x32xf32>
    %60 = arith.truncf %59 : vector<8x32xf32> to vector<8x32xbf16>
    %c0_29 = arith.constant 0 : index
    %c0_30 = arith.constant 0 : index
    %61 = vector.load %arg4[%c0_29, %c0_30] : memref<32x32xbf16, #tpu.memory_space<vmem>>, vector<32x32xbf16>
    %cst_31 = arith.constant dense<0.000000e+00> : vector<8x32xf32>
    %62 = tpu.matmul %60, %61, %cst_31 {dimension_numbers = #tpu.dot_dimension_numbers<[1], [0], [0], [1], [0, 0, 1, 1], [], []>} : vector<8x32xbf16>, vector<32x32xbf16>, vector<8x32xf32> -> vector<8x32xf32>
    %63 = arith.addf %6, %62 : vector<8x32xf32>
    %64 = math.tanh %63 : vector<8x32xf32>
    %65 = vector.broadcast %8 : vector<1x32xf32> to vector<8x32xf32>
    %66 = arith.mulf %64, %65 : vector<8x32xf32>
    %cst_32 = arith.constant dense<0.000000e+00> : vector<8xf32>
    %67 = vector.multi_reduction <add>, %66, %cst_32 [1] : vector<8x32xf32> to vector<8xf32>
    %68 = vector.shape_cast %67 : vector<8xf32> to vector<8x1xf32>
    %69 = tpu.concatenate %18, %28, %38, %48, %58, %68 in 1 : vector<8x1xf32>, vector<8x1xf32>, vector<8x1xf32>, vector<8x1xf32>, vector<8x1xf32>, vector<8x1xf32> -> vector<8x6xf32>
    %cst_33 = arith.constant dense<0xFF800000> : vector<8xf32>
    %70 = vector.multi_reduction <maximumf>, %69, %cst_33 [1] : vector<8x6xf32> to vector<8xf32>
    %71 = vector.shape_cast %70 : vector<8xf32> to vector<8x1xf32>
    %72 = vector.broadcast %71 : vector<8x1xf32> to vector<8x6xf32>
    %73 = arith.subf %69, %72 : vector<8x6xf32>
    %74 = math.exp %73 : vector<8x6xf32>
    %cst_34 = arith.constant dense<0.000000e+00> : vector<8xf32>
    %75 = vector.multi_reduction <add>, %74, %cst_34 [1] : vector<8x6xf32> to vector<8xf32>
    %76 = vector.shape_cast %75 : vector<8xf32> to vector<8x1xf32>
    %77 = vector.broadcast %76 : vector<8x1xf32> to vector<8x6xf32>
    %78 = arith.divf %74, %77 : vector<8x6xf32>
    %c0_35 = arith.constant 0 : index
    %c0_36 = arith.constant 0 : index
    %79 = vector.load %arg7[%c0_35, %c0_36] : memref<8x6xf32, #tpu.memory_space<vmem>>, vector<8x6xf32>
    %80 = arith.mulf %78, %79 : vector<8x6xf32>
    %c0_37 = arith.constant 0 : index
    %c0_38 = arith.constant 0 : index
    %81 = vector.load %arg8[%c0_37, %c0_38] : memref<8x6xf32, #tpu.memory_space<vmem>>, vector<8x6xf32>
    tpu.vector_store %arg8[%c0_37, %c0_38], %80 {strides = array<i32>} : memref<8x6xf32, #tpu.memory_space<vmem>>, vector<8x6xf32>,
    return
  }
  func.func @transform_0(%arg0: i32) -> (i32, i32) {
    %c0_i32 = arith.constant 0 : i32
    %c0_i32_0 = arith.constant 0 : i32
    return %arg0, %c0_i32 : i32, i32
  }
  func.func @transform_1(%arg0: i32) -> (i32, i32) {
    %c0_i32 = arith.constant 0 : i32
    %c0_i32_0 = arith.constant 0 : i32
    return %arg0, %c0_i32 : i32, i32
  }
  func.func @transform_2(%arg0: i32) -> (i32, i32) {
    %c0_i32 = arith.constant 0 : i32
    %c0_i32_0 = arith.constant 0 : i32
    %c0_i32_1 = arith.constant 0 : i32
    return %c0_i32, %c0_i32_0 : i32, i32
  }
  func.func @transform_3(%arg0: i32) -> (i32, i32) {
    %c0_i32 = arith.constant 0 : i32
    %c0_i32_0 = arith.constant 0 : i32
    %c0_i32_1 = arith.constant 0 : i32
    return %c0_i32, %c0_i32_0 : i32, i32
  }
  func.func @transform_4(%arg0: i32) -> (i32, i32) {
    %c0_i32 = arith.constant 0 : i32
    %c0_i32_0 = arith.constant 0 : i32
    %c0_i32_1 = arith.constant 0 : i32
    return %c0_i32, %c0_i32_0 : i32, i32
  }
  func.func @transform_5(%arg0: i32) -> (i32, i32) {
    %c0_i32 = arith.constant 0 : i32
    %c0_i32_0 = arith.constant 0 : i32
    %c0_i32_1 = arith.constant 0 : i32
    return %c0_i32, %c0_i32_0 : i32, i32
  }
  func.func @transform_6(%arg0: i32) -> (i32, i32) {
    %c0_i32 = arith.constant 0 : i32
    %c0_i32_0 = arith.constant 0 : i32
    return %arg0, %c0_i32 : i32, i32
  }
  func.func @transform_7(%arg0: i32) -> (i32, i32) {
    %c0_i32 = arith.constant 0 : i32
    %c0_i32_0 = arith.constant 0 : i32
    return %arg0, %c0_i32 : i32, i32
  }
}

module attributes {stable_mosaic.version = 11 : i64} {
  func.func @_linear_kernel(%arg0: i32, %arg1: memref<30x32xf32, #tpu.memory_space<vmem>>, %arg2: memref<32x32xbf16, #tpu.memory_space<vmem>>, %arg3: memref<30x32xf32, #tpu.memory_space<vmem>>) attributes {dimension_semantics = [#tpu.dimension_semantics<parallel>], iteration_bounds = array<i64: 1>, scalar_prefetch = 0 : i64, scratch_operands = 0 : i64, tpu.core_type = #tpu.core_type<tc>, window_params = [{transform_indices = @transform_0, window_bounds = array<i64: 30, 32>}, {pipeline_mode = #tpu.pipeline_mode<synchronous>, transform_indices = @transform_1, window_bounds = array<i64: 32, 32>}, {transform_indices = @transform_2, window_bounds = array<i64: 30, 32>}]} {
    %c0 = arith.constant 0 : index
    %c0_0 = arith.constant 0 : index
    %0 = vector.load %arg1[%c0, %c0_0] : memref<30x32xf32, #tpu.memory_space<vmem>>, vector<30x32xf32>
    %1 = arith.truncf %0 : vector<30x32xf32> to vector<30x32xbf16>
    %c0_1 = arith.constant 0 : index
    %c0_2 = arith.constant 0 : index
    %2 = vector.load %arg2[%c0_1, %c0_2] : memref<32x32xbf16, #tpu.memory_space<vmem>>, vector<32x32xbf16>
    %cst = arith.constant dense<0.000000e+00> : vector<30x32xf32>
    %3 = tpu.matmul %1, %2, %cst {dimension_numbers = #tpu.dot_dimension_numbers<[1], [0], [0], [1], [0, 0, 1, 1], [], []>} : vector<30x32xbf16>, vector<32x32xbf16>, vector<30x32xf32> -> vector<30x32xf32>
    %c0_3 = arith.constant 0 : index
    %c0_4 = arith.constant 0 : index
    %4 = vector.load %arg3[%c0_3, %c0_4] : memref<30x32xf32, #tpu.memory_space<vmem>>, vector<30x32xf32>
    tpu.vector_store %arg3[%c0_3, %c0_4], %3 {strides = array<i32>} : memref<30x32xf32, #tpu.memory_space<vmem>>, vector<30x32xf32>,
    return
  }
  func.func @transform_0(%arg0: i32) -> (i32, i32) {
    %c0_i32 = arith.constant 0 : i32
    %c0_i32_0 = arith.constant 0 : i32
    return %arg0, %c0_i32 : i32, i32
  }
  func.func @transform_1(%arg0: i32) -> (i32, i32) {
    %c0_i32 = arith.constant 0 : i32
    %c0_i32_0 = arith.constant 0 : i32
    %c0_i32_1 = arith.constant 0 : i32
    return %c0_i32, %c0_i32_0 : i32, i32
  }
  func.func @transform_2(%arg0: i32) -> (i32, i32) {
    %c0_i32 = arith.constant 0 : i32
    %c0_i32_0 = arith.constant 0 : i32
    return %arg0, %c0_i32 : i32, i32
  }
}

module attributes {stable_mosaic.version = 11 : i64} {
  func.func @_linear_kernel(%arg0: i32, %arg1: memref<8x32xf32, #tpu.memory_space<vmem>>, %arg2: memref<32x32xbf16, #tpu.memory_space<vmem>>, %arg3: memref<8x32xf32, #tpu.memory_space<vmem>>) attributes {dimension_semantics = [#tpu.dimension_semantics<parallel>], iteration_bounds = array<i64: 1>, scalar_prefetch = 0 : i64, scratch_operands = 0 : i64, tpu.core_type = #tpu.core_type<tc>, window_params = [{transform_indices = @transform_0, window_bounds = array<i64: 8, 32>}, {pipeline_mode = #tpu.pipeline_mode<synchronous>, transform_indices = @transform_1, window_bounds = array<i64: 32, 32>}, {transform_indices = @transform_2, window_bounds = array<i64: 8, 32>}]} {
    %c0 = arith.constant 0 : index
    %c0_0 = arith.constant 0 : index
    %0 = vector.load %arg1[%c0, %c0_0] : memref<8x32xf32, #tpu.memory_space<vmem>>, vector<8x32xf32>
    %1 = arith.truncf %0 : vector<8x32xf32> to vector<8x32xbf16>
    %c0_1 = arith.constant 0 : index
    %c0_2 = arith.constant 0 : index
    %2 = vector.load %arg2[%c0_1, %c0_2] : memref<32x32xbf16, #tpu.memory_space<vmem>>, vector<32x32xbf16>
    %cst = arith.constant dense<0.000000e+00> : vector<8x32xf32>
    %3 = tpu.matmul %1, %2, %cst {dimension_numbers = #tpu.dot_dimension_numbers<[1], [0], [0], [1], [0, 0, 1, 1], [], []>} : vector<8x32xbf16>, vector<32x32xbf16>, vector<8x32xf32> -> vector<8x32xf32>
    %c0_3 = arith.constant 0 : index
    %c0_4 = arith.constant 0 : index
    %4 = vector.load %arg3[%c0_3, %c0_4] : memref<8x32xf32, #tpu.memory_space<vmem>>, vector<8x32xf32>
    tpu.vector_store %arg3[%c0_3, %c0_4], %3 {strides = array<i32>} : memref<8x32xf32, #tpu.memory_space<vmem>>, vector<8x32xf32>,
    return
  }
  func.func @transform_0(%arg0: i32) -> (i32, i32) {
    %c0_i32 = arith.constant 0 : i32
    %c0_i32_0 = arith.constant 0 : i32
    return %arg0, %c0_i32 : i32, i32
  }
  func.func @transform_1(%arg0: i32) -> (i32, i32) {
    %c0_i32 = arith.constant 0 : i32
    %c0_i32_0 = arith.constant 0 : i32
    %c0_i32_1 = arith.constant 0 : i32
    return %c0_i32, %c0_i32_0 : i32, i32
  }
  func.func @transform_2(%arg0: i32) -> (i32, i32) {
    %c0_i32 = arith.constant 0 : i32
    %c0_i32_0 = arith.constant 0 : i32
    return %arg0, %c0_i32 : i32, i32
  }
}

module attributes {stable_mosaic.version = 11 : i64} {
  func.func @_final_kernel(%arg0: i32, %arg1: memref<2x4x32xf32, #tpu.memory_space<vmem>>, %arg2: memref<2x4xf32, #tpu.memory_space<vmem>>, %arg3: memref<2x3x32xf32, #tpu.memory_space<vmem>>, %arg4: memref<2x32xf32, #tpu.memory_space<vmem>>, %arg5: memref<96x2xbf16, #tpu.memory_space<vmem>>, %arg6: memref<1x2xf32, #tpu.memory_space<vmem>>, %arg7: memref<2x2xf32, #tpu.memory_space<vmem>>) attributes {dimension_semantics = [#tpu.dimension_semantics<parallel>], iteration_bounds = array<i64: 1>, scalar_prefetch = 0 : i64, scratch_operands = 0 : i64, tpu.core_type = #tpu.core_type<tc>, window_params = [{transform_indices = @transform_0, window_bounds = array<i64: 2, 4, 32>}, {transform_indices = @transform_1, window_bounds = array<i64: 2, 4>}, {transform_indices = @transform_2, window_bounds = array<i64: 2, 3, 32>}, {transform_indices = @transform_3, window_bounds = array<i64: 2, 32>}, {pipeline_mode = #tpu.pipeline_mode<synchronous>, transform_indices = @transform_4, window_bounds = array<i64: 96, 2>}, {pipeline_mode = #tpu.pipeline_mode<synchronous>, transform_indices = @transform_5, window_bounds = array<i64: 1, 2>}, {transform_indices = @transform_6, window_bounds = array<i64: 2, 2>}]} {
    %c0 = arith.constant 0 : index
    %c0_0 = arith.constant 0 : index
    %c0_1 = arith.constant 0 : index
    %0 = vector.load %arg1[%c0, %c0_0, %c0_1] : memref<2x4x32xf32, #tpu.memory_space<vmem>>, vector<2x4x32xf32>
    %c0_2 = arith.constant 0 : index
    %c0_3 = arith.constant 0 : index
    %1 = vector.load %arg2[%c0_2, %c0_3] : memref<2x4xf32, #tpu.memory_space<vmem>>, vector<2x4xf32>
    %2 = vector.shape_cast %1 : vector<2x4xf32> to vector<2x4x1xf32>
    %cst = arith.constant 0.000000e+00 : f32
    %3 = vector.broadcast %cst : f32 to vector<2x4x1xf32>
    %4 = arith.cmpf ogt, %2, %3 : vector<2x4x1xf32>
    %cst_4 = arith.constant -1.000000e+30 : f32
    %5 = vector.shape_cast %4 : vector<2x4x1xi1> to vector<2x4x1xi1>
    %6 = vector.broadcast %5 : vector<2x4x1xi1> to vector<2x4x32xi1>
    %7 = vector.broadcast %cst_4 : f32 to vector<2x4x32xf32>
    %8 = arith.select %6, %0, %7 : vector<2x4x32xi1>, vector<2x4x32xf32>
    %cst_5 = arith.constant dense<0xFF800000> : vector<2x32xf32>
    %9 = vector.multi_reduction <maximumf>, %8, %cst_5 [1] : vector<2x4x32xf32> to vector<2x32xf32>
    %c0_6 = arith.constant 0 : index
    %c0_7 = arith.constant 0 : index
    %c0_8 = arith.constant 0 : index
    %10 = vector.load %arg3[%c0_6, %c0_7, %c0_8] : memref<2x3x32xf32, #tpu.memory_space<vmem>>, vector<2x3x32xf32>
    %cst_9 = arith.constant dense<0xFF800000> : vector<2x32xf32>
    %11 = vector.multi_reduction <maximumf>, %10, %cst_9 [1] : vector<2x3x32xf32> to vector<2x32xf32>
    %c0_10 = arith.constant 0 : index
    %c0_11 = arith.constant 0 : index
    %12 = vector.load %arg4[%c0_10, %c0_11] : memref<2x32xf32, #tpu.memory_space<vmem>>, vector<2x32xf32>
    %13 = tpu.concatenate %9, %11, %12 in 1 : vector<2x32xf32>, vector<2x32xf32>, vector<2x32xf32> -> vector<2x96xf32>
    %14 = arith.truncf %13 : vector<2x96xf32> to vector<2x96xbf16>
    %c0_12 = arith.constant 0 : index
    %c0_13 = arith.constant 0 : index
    %15 = vector.load %arg5[%c0_12, %c0_13] : memref<96x2xbf16, #tpu.memory_space<vmem>>, vector<96x2xbf16>
    %cst_14 = arith.constant dense<0.000000e+00> : vector<2x2xf32>
    %16 = tpu.matmul %14, %15, %cst_14 {dimension_numbers = #tpu.dot_dimension_numbers<[1], [0], [0], [1], [0, 0, 1, 1], [], []>} : vector<2x96xbf16>, vector<96x2xbf16>, vector<2x2xf32> -> vector<2x2xf32>
    %c0_15 = arith.constant 0 : index
    %c0_16 = arith.constant 0 : index
    %17 = vector.load %arg6[%c0_15, %c0_16] : memref<1x2xf32, #tpu.memory_space<vmem>>, vector<1x2xf32>
    %18 = vector.broadcast %17 : vector<1x2xf32> to vector<2x2xf32>
    %19 = arith.addf %16, %18 : vector<2x2xf32>
    %c0_17 = arith.constant 0 : index
    %c0_18 = arith.constant 0 : index
    %20 = vector.load %arg7[%c0_17, %c0_18] : memref<2x2xf32, #tpu.memory_space<vmem>>, vector<2x2xf32>
    tpu.vector_store %arg7[%c0_17, %c0_18], %19 {strides = array<i32>} : memref<2x2xf32, #tpu.memory_space<vmem>>, vector<2x2xf32>,
    return
  }
  func.func @transform_0(%arg0: i32) -> (i32, i32, i32) {
    %c0_i32 = arith.constant 0 : i32
    %c0_i32_0 = arith.constant 0 : i32
    %c0_i32_1 = arith.constant 0 : i32
    return %arg0, %c0_i32, %c0_i32_0 : i32, i32, i32
  }
  func.func @transform_1(%arg0: i32) -> (i32, i32) {
    %c0_i32 = arith.constant 0 : i32
    %c0_i32_0 = arith.constant 0 : i32
    return %arg0, %c0_i32 : i32, i32
  }
  func.func @transform_2(%arg0: i32) -> (i32, i32, i32) {
    %c0_i32 = arith.constant 0 : i32
    %c0_i32_0 = arith.constant 0 : i32
    %c0_i32_1 = arith.constant 0 : i32
    return %arg0, %c0_i32, %c0_i32_0 : i32, i32, i32
  }
  func.func @transform_3(%arg0: i32) -> (i32, i32) {
    %c0_i32 = arith.constant 0 : i32
    %c0_i32_0 = arith.constant 0 : i32
    return %arg0, %c0_i32 : i32, i32
  }
  func.func @transform_4(%arg0: i32) -> (i32, i32) {
    %c0_i32 = arith.constant 0 : i32
    %c0_i32_0 = arith.constant 0 : i32
    %c0_i32_1 = arith.constant 0 : i32
    return %c0_i32, %c0_i32_0 : i32, i32
  }
  func.func @transform_5(%arg0: i32) -> (i32, i32) {
    %c0_i32 = arith.constant 0 : i32
    %c0_i32_0 = arith.constant 0 : i32
    %c0_i32_1 = arith.constant 0 : i32
    return %c0_i32, %c0_i32_0 : i32, i32
  }
  func.func @transform_6(%arg0: i32) -> (i32, i32) {
    %c0_i32 = arith.constant 0 : i32
    %c0_i32_0 = arith.constant 0 : i32
    return %arg0, %c0_i32 : i32, i32
  }
}

</mosaic_0001>

<llo_original>
// kernel: _lambda_.13
$region0: #{_lambda_.13}
  #allocation0 [shape = 'u32[]', space=smem, size = 0x4, offset = 0x4, fixed_abs, tag = 'smem constant byte address 0x4 - core index']
  #allocation1 [shape = 'u32[144,128]{1,0:T(1,128)}', space=vmem, size = 0x12000, scoped, tag = 'internal scratch']
  %s0 = inlined_call_operand.vmem [shape: f32[8,32], index: 0, kind: input, shape index: {}]
  %s1 = inlined_call_operand.vmem [shape: bf16[32,32], index: 1, kind: input, shape index: {}]
  %s2 = inlined_call_operand.vmem [shape: f32[1,32], index: 2, kind: input, shape index: {}]
  %s3 = inlined_call_operand.vmem [shape: f32[8,32], index: 3, kind: output, shape index: {}]
  %s4 = sld [smem:[#allocation0]]
  $region22: #{_lambda_.13} parent=0
    _
  %s6 = ssub.s32 1, %s4
  %s7 = scalar_select 0, %s6, %s4
  // Predicated region
  $region2: #{_lambda_.13} parent=0 // pred_check
    _
  $region3: #{_lambda_.13} parent=0 // pred_check_branch
    %9 = sbr.rel (0) target = $region5
  $region4: #{_lambda_.13} parent=0 // pred_region
    _
  $region5: #{_lambda_.13} parent=0 // pred_fallthru
    _
  // Predicated region
  $region6: #{_lambda_.13} parent=0 // pred_check
    _
  $region7: #{_lambda_.13} parent=0 // pred_check_branch
    %11 = sbr.rel (0) target = $region9
  $region8: #{_lambda_.13} parent=0 // pred_region
    _
  $region9: #{_lambda_.13} parent=0 // pred_fallthru
    _
  // Predicated region
  $region10: #{_lambda_.13} parent=0 // pred_check
    _
  $region11: #{_lambda_.13} parent=0 // pred_check_branch
    %13 = sbr.rel (0) target = $region13
  $region12: #{_lambda_.13} parent=0 // pred_region
    _
  $region13: #{_lambda_.13} parent=0 // pred_fallthru
    _
  %v15 = vld [vmem:[%s0] sm:$0xff]
  %v16 = vpack.c.bf16 %v15, %v15
  %v17 = vld [vmem:[%s1] sm:$0xf]
  %v18 = vld [vmem:[%s1 + $0x4] sm:$0xf]
  %v19 = vld [vmem:[%s1 + $0x8] sm:$0xf]
  %v20 = vld [vmem:[%s1 + $0xc] sm:$0xf]
  %v21 = vld [vmem:[%s2] sm:$0x1]
  %v23 = vlaneseq
  %v24 = vshrl.u32 %v23, 7
  %v25 = vsub.s32 0, %v24
  %v26 = vrot.slane %v21, %v25
  %v32 = vunpack.c.l.b16 %v17
  %v33 = vunpack.c.l.b16 %v18
  %v34 = vunpack.c.l.b16 %v19
  %v35 = vunpack.c.l.b16 %v20
  %v36 = vpack.c.b16 %v33, %v32
  %v37 = vpack.c.b16 %v35, %v34
  %vm40 = vcmask 261120
  %v42 = vsel %vm40, %v16, 0
  %44 = vmatprep.subr.bf16.mxu0 0
  %45 = vmatpush1.bf16.msra.mxu0 %v36
  %46 = vmatprep.subr.bf16.mxu0 0
  %47 = vmatpush1.bf16.msra.mxu0 %v37
  %48 = vmatprep.subr.bf16.mxu0 0
  %49 = vmatpush1.bf16.msra.mxu0 0
  %50 = vmatprep.subr.bf16.mxu0 0
  %51 = vmatpush1.bf16.msra.mxu0 0
  %52 = vmatprep.subr.bf16.mxu0 0
  %53 = vmatpush1.bf16.msra.mxu0 0
  %54 = vmatprep.subr.bf16.mxu0 0
  %55 = vmatpush1.bf16.msra.mxu0 0
  %56 = vmatprep.subr.bf16.mxu0 0
  %57 = vmatpush1.bf16.msra.mxu0 0
  %58 = vmatprep.subr.bf16.mxu0 0
  %59 = vmatpush1.bf16.msra.mxu0 0
  %60 = vmatprep.subr.bf16.mxu0 0
  %61 = vmatpush1.bf16.msra.mxu0 0
  %62 = vmatprep.subr.bf16.mxu0 0
  %63 = vmatpush1.bf16.msra.mxu0 0
  %64 = vmatprep.subr.bf16.mxu0 0
  %65 = vmatpush1.bf16.msra.mxu0 0
  %66 = vmatprep.subr.bf16.mxu0 0
  %67 = vmatpush1.bf16.msra.mxu0 0
  %68 = vmatprep.subr.bf16.mxu0 0
  %69 = vmatpush1.bf16.msra.mxu0 0
  %70 = vmatprep.subr.bf16.mxu0 0
  %71 = vmatpush1.bf16.msra.mxu0 0
  %72 = vmatprep.subr.bf16.mxu0 0
  %73 = vmatpush1.bf16.msra.mxu0 0
  %74 = vmatprep.subr.bf16.mxu0 0
  %75 = vmatpush1.bf16.msra.mxu0 0
  %76 = vmatprep.mubr.bf16.mxu0 0
  %77 = vmatmul.mubr.bf16.gmra.mrb[0].mxu0 %v42
  %v78 = vpop.f32.mrb[0].mxu0
  %v79 = vadd.f32 %v26, %v78
  %v80 = vpop.f32.mrb[0].mxu0
  %v81 = vpop.f32.mrb[0].mxu0
  %v82 = vpop.f32.mrb[0].mxu0
  %83 = vdwg.mxu0
  %84 = vst.msk [vmem:[%s3] sm:$0xff] %vm40, %v79
  // Predicated region
  $region14: #{_lambda_.13} parent=0 // pred_check
    _
  $region15: #{_lambda_.13} parent=0 // pred_check_branch
    %86 = sbr.rel (0) target = $region17
  $region16: #{_lambda_.13} parent=0 // pred_region
    _
  $region17: #{_lambda_.13} parent=0 // pred_fallthru
    _
  // Predicated region
  $region18: #{_lambda_.13} parent=0 // pred_check
    _
  $region19: #{_lambda_.13} parent=0 // pred_check_branch
    %88 = sbr.rel (0) target = $region21
  $region20: #{_lambda_.13} parent=0 // pred_region
    _
  $region21: #{_lambda_.13} parent=0 // pred_fallthru
    _

// kernel: _lambda_.10
$region0: #{_lambda_.10}
  #allocation0 [shape = 'u32[]', space=smem, size = 0x4, offset = 0x4, fixed_abs, tag = 'smem constant byte address 0x4 - core index']
  #allocation1 [shape = 'u32[144,128]{1,0:T(1,128)}', space=vmem, size = 0x12000, scoped, tag = 'internal scratch']
  %s0 = inlined_call_operand.vmem [shape: f32[8,32], index: 0, kind: input, shape index: {}]
  %s1 = inlined_call_operand.vmem [shape: bf16[32,96], index: 1, kind: input, shape index: {}]
  %s2 = inlined_call_operand.vmem [shape: f32[1,96], index: 2, kind: input, shape index: {}]
  %s3 = inlined_call_operand.vmem [shape: f32[8,96], index: 3, kind: output, shape index: {}]
  %s4 = sld [smem:[#allocation0]]
  $region22: #{_lambda_.10} parent=0
    _
  %s6 = ssub.s32 1, %s4
  %s7 = scalar_select 0, %s6, %s4
  // Predicated region
  $region2: #{_lambda_.10} parent=0 // pred_check
    _
  $region3: #{_lambda_.10} parent=0 // pred_check_branch
    %9 = sbr.rel (0) target = $region5
  $region4: #{_lambda_.10} parent=0 // pred_region
    _
  $region5: #{_lambda_.10} parent=0 // pred_fallthru
    _
  // Predicated region
  $region6: #{_lambda_.10} parent=0 // pred_check
    _
  $region7: #{_lambda_.10} parent=0 // pred_check_branch
    %11 = sbr.rel (0) target = $region9
  $region8: #{_lambda_.10} parent=0 // pred_region
    _
  $region9: #{_lambda_.10} parent=0 // pred_fallthru
    _
  // Predicated region
  $region10: #{_lambda_.10} parent=0 // pred_check
    _
  $region11: #{_lambda_.10} parent=0 // pred_check_branch
    %13 = sbr.rel (0) target = $region13
  $region12: #{_lambda_.10} parent=0 // pred_region
    _
  $region13: #{_lambda_.10} parent=0 // pred_fallthru
    _
  %v15 = vld [vmem:[%s0] sm:$0xff]
  %v16 = vpack.c.bf16 %v15, %v15
  %v17 = vld [vmem:[%s1] sm:$0xf]
  %v18 = vld [vmem:[%s1 + $0x4] sm:$0xf]
  %v19 = vld [vmem:[%s1 + $0x8] sm:$0xf]
  %v20 = vld [vmem:[%s1 + $0xc] sm:$0xf]
  %v21 = vld [vmem:[%s2] sm:$0x1]
  %v23 = vlaneseq
  %v24 = vshrl.u32 %v23, 7
  %v25 = vsub.s32 0, %v24
  %v26 = vrot.slane %v21, %v25
  %v32 = vunpack.c.l.b16 %v17
  %v33 = vunpack.c.l.b16 %v18
  %v34 = vunpack.c.l.b16 %v19
  %v35 = vunpack.c.l.b16 %v20
  %v36 = vpack.c.b16 %v33, %v32
  %v37 = vpack.c.b16 %v35, %v34
  %vm40 = vcmask 261120
  %v42 = vsel %vm40, %v16, 0
  %44 = vmatprep.subr.bf16.mxu0 0
  %45 = vmatpush1.bf16.msra.mxu0 %v36
  %46 = vmatprep.subr.bf16.mxu0 0
  %47 = vmatpush1.bf16.msra.mxu0 %v37
  %48 = vmatprep.subr.bf16.mxu0 0
  %49 = vmatpush1.bf16.msra.mxu0 0
  %50 = vmatprep.subr.bf16.mxu0 0
  %51 = vmatpush1.bf16.msra.mxu0 0
  %52 = vmatprep.subr.bf16.mxu0 0
  %53 = vmatpush1.bf16.msra.mxu0 0
  %54 = vmatprep.subr.bf16.mxu0 0
  %55 = vmatpush1.bf16.msra.mxu0 0
  %56 = vmatprep.subr.bf16.mxu0 0
  %57 = vmatpush1.bf16.msra.mxu0 0
  %58 = vmatprep.subr.bf16.mxu0 0
  %59 = vmatpush1.bf16.msra.mxu0 0
  %60 = vmatprep.subr.bf16.mxu0 0
  %61 = vmatpush1.bf16.msra.mxu0 0
  %62 = vmatprep.subr.bf16.mxu0 0
  %63 = vmatpush1.bf16.msra.mxu0 0
  %64 = vmatprep.subr.bf16.mxu0 0
  %65 = vmatpush1.bf16.msra.mxu0 0
  %66 = vmatprep.subr.bf16.mxu0 0
  %67 = vmatpush1.bf16.msra.mxu0 0
  %68 = vmatprep.subr.bf16.mxu0 0
  %69 = vmatpush1.bf16.msra.mxu0 0
  %70 = vmatprep.subr.bf16.mxu0 0
  %71 = vmatpush1.bf16.msra.mxu0 0
  %72 = vmatprep.subr.bf16.mxu0 0
  %73 = vmatpush1.bf16.msra.mxu0 0
  %74 = vmatprep.subr.bf16.mxu0 0
  %75 = vmatpush1.bf16.msra.mxu0 0
  %76 = vmatprep.mubr.bf16.mxu0 0
  %77 = vmatmul.mubr.bf16.gmra.mrb[0].mxu0 %v42
  %v78 = vpop.f32.mrb[0].mxu0
  %v79 = vadd.f32 %v26, %v78
  %v80 = vpop.f32.mrb[0].mxu0
  %v81 = vpop.f32.mrb[0].mxu0
  %v82 = vpop.f32.mrb[0].mxu0
  %83 = vdwg.mxu0
  %vm84 = vcmask 785408
  %85 = vst.msk [vmem:[%s3] sm:$0xff] %vm84, %v79
  // Predicated region
  $region14: #{_lambda_.10} parent=0 // pred_check
    _
  $region15: #{_lambda_.10} parent=0 // pred_check_branch
    %87 = sbr.rel (0) target = $region17
  $region16: #{_lambda_.10} parent=0 // pred_region
    _
  $region17: #{_lambda_.10} parent=0 // pred_fallthru
    _
  // Predicated region
  $region18: #{_lambda_.10} parent=0 // pred_check
    _
  $region19: #{_lambda_.10} parent=0 // pred_check_branch
    %89 = sbr.rel (0) target = $region21
  $region20: #{_lambda_.10} parent=0 // pred_region
    _
  $region21: #{_lambda_.10} parent=0 // pred_fallthru
    _

// kernel: _lambda_.11
$region0: #{_lambda_.11}
  #allocation0 [shape = 'u32[]', space=smem, size = 0x4, offset = 0x4, fixed_abs, tag = 'smem constant byte address 0x4 - core index']
  #allocation1 [shape = 'u32[144,128]{1,0:T(1,128)}', space=vmem, size = 0x12000, scoped, tag = 'internal scratch']
  #allocation2 [shape = 'f32[2,32]{1,0:T(2,128)}', space=vmem, size = 0x400, scoped, tag = 'scratch operand']
  %s0 = inlined_call_operand.vmem [shape: f32[4,2,96], index: 0, kind: input, shape index: {}]
  %s1 = inlined_call_operand.vmem [shape: bf16[32,96], index: 1, kind: input, shape index: {}]
  %s2 = inlined_call_operand.vmem [shape: f32[1,96], index: 2, kind: input, shape index: {}]
  %s3 = inlined_call_operand.vmem [shape: f32[4,2,32], index: 3, kind: output, shape index: {}]
  %s4 = sld [smem:[#allocation0]]
  $region49: #{_lambda_.11} parent=0
    _
  %s6 = ssub.s32 1, %s4
  %s7 = scalar_select 0, %s6, %s4
  loop: start=0, step=1, limit=6
  $region2: #{_lambda_.11} parent=0 // loop_pre_header
    _
  $region3: #{_lambda_.11} parent=0 // loop_header
    %s9 = sphi 0, %s13
    %p10 = scmp.ge.s32.totalorder %s9, 6
    %s19 = sphi 0, %s21
    %s22 = sphi 0, %s19
    %s23 = sphi 0, %s22
    %s39 = sphi 0, %s23
    %s43 = sphi 0, %s43
    %s45 = sphi 0, %s43
    %s46 = sphi 0, %s45
    %s60 = sphi 0, %s46
    %s64 = sphi 0, %s64
    %s66 = sphi 0, %s64
    %s67 = sphi 0, %s66
    %s81 = sphi 0, %s67
    %s87 = sphi 0, %s89
    %s90 = sphi 0, %s87
    %s91 = sphi 0, %s90
    %s107 = sphi 0, %s91
  $region4: #{_lambda_.11} parent=0 // loop_header_branch
    %12 = sbr.rel (%p10) target = $region8
  $region5: #{_lambda_.11} parent=0 // loop_body
    %s14 = ssub.s32 %s9, 1
    %s15 = ssub.s32 %s9, 2
    %s16 = sadd.s32 %s9, 1
    %s17 = ssub.s32 %s9, %s16
    %p18 = scmp.eq.s32.totalorder %s17, 0
    %s20 = sadd.s32 %s19, 1
    %s21 = scalar_select %p18, %s19, %s20
    %p24 = pneg %p18
    %p25 = scmp.eq.s32.totalorder %s9, 3
    %p26 = por %p24, %p25
    %p27 = scmp.ne.s32.totalorder %s19, %s22
    %p28 = scmp.eq.s32.totalorder %s9, 0
    %p29 = por %p27, %p28
    %p30 = scmp.ne.s32.totalorder %s19, %s22
    %p31 = scmp.eq.s32.totalorder %s14, 3
    %p32 = por %p30, %p31
    %p33 = scmp.ne.s32.totalorder %s22, %s23
    %p34 = scmp.eq.s32.totalorder %s14, 0
    %p35 = por %p33, %p34
    %p36 = scmp.ne.s32.totalorder %s22, %s23
    %p37 = scmp.eq.s32.totalorder %s15, 3
    %p38 = por %p36, %p37
    %p40 = scmp.ne.s32.totalorder %s23, %s39
    %p41 = scmp.eq.s32.totalorder %s15, 0
    %p42 = por %p40, %p41
    %s44 = sadd.s32 %s43, 1
    %p47 = scmp.eq.s32.totalorder %s9, 3
    %p48 = scmp.ne.s32.totalorder %s43, %s45
    %p49 = scmp.eq.s32.totalorder %s9, 0
    %p50 = por %p48, %p49
    %p51 = scmp.ne.s32.totalorder %s43, %s45
    %p52 = scmp.eq.s32.totalorder %s14, 3
    %p53 = por %p51, %p52
    %p54 = scmp.ne.s32.totalorder %s45, %s46
    %p55 = scmp.eq.s32.totalorder %s14, 0
    %p56 = por %p54, %p55
    %p57 = scmp.ne.s32.totalorder %s45, %s46
    %p58 = scmp.eq.s32.totalorder %s15, 3
    %p59 = por %p57, %p58
    %p61 = scmp.ne.s32.totalorder %s46, %s60
    %p62 = scmp.eq.s32.totalorder %s15, 0
    %p63 = por %p61, %p62
    %s65 = sadd.s32 %s64, 1
    %p68 = scmp.eq.s32.totalorder %s9, 3
    %p69 = scmp.ne.s32.totalorder %s64, %s66
    %p70 = scmp.eq.s32.totalorder %s9, 0
    %p71 = por %p69, %p70
    %p72 = scmp.ne.s32.totalorder %s64, %s66
    %p73 = scmp.eq.s32.totalorder %s14, 3
    %p74 = por %p72, %p73
    %p75 = scmp.ne.s32.totalorder %s66, %s67
    %p76 = scmp.eq.s32.totalorder %s14, 0
    %p77 = por %p75, %p76
    %p78 = scmp.ne.s32.totalorder %s66, %s67
    %p79 = scmp.eq.s32.totalorder %s15, 3
    %p80 = por %p78, %p79
    %p82 = scmp.ne.s32.totalorder %s67, %s81
    %p83 = scmp.eq.s32.totalorder %s15, 0
    %p84 = por %p82, %p83
    %s85 = ssub.s32 %s9, %s16
    %p86 = scmp.eq.s32.totalorder %s85, 0
    %s88 = sadd.s32 %s87, 1
    %s89 = scalar_select %p86, %s87, %s88
    %p92 = pneg %p86
    %p93 = scmp.eq.s32.totalorder %s9, 3
    %p94 = por %p92, %p93
    %p95 = scmp.ne.s32.totalorder %s87, %s90
    %p96 = scmp.eq.s32.totalorder %s9, 0
    %p97 = por %p95, %p96
    %p98 = scmp.ne.s32.totalorder %s87, %s90
    %p99 = scmp.eq.s32.totalorder %s14, 3
    %p100 = por %p98, %p99
    %p101 = scmp.ne.s32.totalorder %s90, %s91
    %p102 = scmp.eq.s32.totalorder %s14, 0
    %p103 = por %p101, %p102
    %p104 = scmp.ne.s32.totalorder %s90, %s91
    %p105 = scmp.eq.s32.totalorder %s15, 3
    %p106 = por %p104, %p105
    %p108 = scmp.ne.s32.totalorder %s91, %s107
    %p109 = scmp.eq.s32.totalorder %s15, 0
    %p110 = por %p108, %p109
    %p111 = scmp.le.s32.totalorder 1, %s9
    %p112 = scmp.lt.s32.totalorder %s9, 5
    %p113 = pnand %p111, %p112
    %p114 = pneg %p113
    // Predicated region
    $region9: #{_lambda_.11} parent=5 // pred_check
      _
    $region10: #{_lambda_.11} parent=5 // pred_check_branch
      %116 = sbr.rel (%p113) target = $region12
    $region11: #{_lambda_.11} parent=5 // pred_region
      %s117 = ssub.s32 %s9, 1
      // Predicated region
      $region13: #{_lambda_.11} parent=11 // pred_check
        %p118 = pneg %p56
      $region14: #{_lambda_.11} parent=11 // pred_check_branch
        %120 = sbr.rel (%p118) target = $region16
      $region15: #{_lambda_.11} parent=11 // pred_region
        _
      $region16: #{_lambda_.11} parent=11 // pred_fallthru
        _
      // Predicated region
      $region17: #{_lambda_.11} parent=11 // pred_check
        %p121 = pneg %p77
      $region18: #{_lambda_.11} parent=11 // pred_check_branch
        %123 = sbr.rel (%p121) target = $region20
      $region19: #{_lambda_.11} parent=11 // pred_region
        _
      $region20: #{_lambda_.11} parent=11 // pred_fallthru
        _
    $region12: #{_lambda_.11} parent=5 // pred_fallthru
      _
    %p124 = scmp.lt.s32.totalorder %s9, 4
    // Predicated region
    $region21: #{_lambda_.11} parent=5 // pred_check
      %p125 = pneg %p124
    $region22: #{_lambda_.11} parent=5 // pred_check_branch
      %127 = sbr.rel (%p125) target = $region24
    $region23: #{_lambda_.11} parent=5 // pred_region
      // Predicated region
      $region25: #{_lambda_.11} parent=23 // pred_check
        %p128 = pneg %p29
      $region26: #{_lambda_.11} parent=23 // pred_check_branch
        %130 = sbr.rel (%p128) target = $region28
      $region27: #{_lambda_.11} parent=23 // pred_region
        %p131 = scmp.lt.s32.totalorder %s9, 3
        %s132 = scalar_select %p131, %s9, 3
        %s133 = smul.addr %s132, 2
        %s134 = scalar_lea.vmem %s0, %s133
      $region28: #{_lambda_.11} parent=23 // pred_fallthru
        _
    $region24: #{_lambda_.11} parent=5 // pred_fallthru
      _
    %p135 = scmp.le.s32.totalorder 1, %s9
    %p136 = scmp.lt.s32.totalorder %s9, 5
    %p137 = pnand %p135, %p136
    %p138 = pneg %p137
    // Predicated region
    $region29: #{_lambda_.11} parent=5 // pred_check
      _
    $region30: #{_lambda_.11} parent=5 // pred_check_branch
      %140 = sbr.rel (%p137) target = $region32
    $region31: #{_lambda_.11} parent=5 // pred_region
      %s141 = ssub.s32 %s9, 1
      %p142 = scmp.lt.s32.totalorder %s14, 3
      %s143 = scalar_select %p142, %s14, 3
      %s144 = smul.addr %s143, 2
      %s145 = scalar_lea.vmem %s0, %s144
      %p146 = pneg %p35
      %p147 = pneg %p32
      %p148 = pneg %p56
      %p149 = pneg %p53
      %p150 = pneg %p77
      %p151 = pneg %p74
      %p152 = pneg %p103
      %p153 = pneg %p100
      %p154 = scmp.lt.s32.totalorder %s14, 3
      %s155 = scalar_select %p154, %s14, 3
      %s156 = smul.addr %s155, 2
      %s157 = scalar_lea.vmem %s3, %s156
      %p158 = scmp.lt.s32.totalorder %s14, 3
      %s159 = scalar_select %p158, %s14, 3
      %s160 = smul.addr %s159, 2
      %s161 = scalar_lea.vmem %s0, %s160
      %p162 = scmp.lt.s32.totalorder %s14, 3
      %s163 = scalar_select %p162, %s14, 3
      %s164 = smul.addr %s163, 2
      %s165 = scalar_lea.vmem %s3, %s164
      %p167 = scmp.eq.s32.totalorder %s14, 0
      // Predicated region
      $region33: #{_lambda_.11} parent=31 // pred_check
        %p168 = pneg %p167
      $region34: #{_lambda_.11} parent=31 // pred_check_branch
        %170 = sbr.rel (%p168) target = $region36
      $region35: #{_lambda_.11} parent=31 // pred_region
        %vm171 = vcmask 254976
        %172 = vst.msk [vmem:[#allocation2] sm:$0x3] %vm171, 0.0
      $region36: #{_lambda_.11} parent=31 // pred_fallthru
        _
      %v173 = vld [vmem:[#allocation2] sm:$0x3]
      %v174 = vld [vmem:[%s161] sm:$0x3]
      %v175 = vpack.c.bf16 %v173, %v173
      %v176 = vld [vmem:[%s1] sm:$0xf]
      %v177 = vld [vmem:[%s1 + $0x4] sm:$0xf]
      %v178 = vld [vmem:[%s1 + $0x8] sm:$0xf]
      %v179 = vld [vmem:[%s1 + $0xc] sm:$0xf]
      %v180 = vld [vmem:[%s2] sm:$0x1]
      %v182 = vlaneseq
      %v183 = vshrl.u32 %v182, 7
      %v184 = vsub.s32 0, %v183
      %v185 = vrot.slane %v180, %v184
      %v191 = vunpack.c.l.b16 %v176
      %v192 = vunpack.c.l.b16 %v177
      %v193 = vunpack.c.l.b16 %v178
      %v194 = vunpack.c.l.b16 %v179
      %v195 = vpack.c.b16 %v192, %v191
      %v196 = vpack.c.b16 %v194, %v193
      %vm199 = vcmask 261120
      %v201 = vsel %vm199, %v175, 0
      %203 = vmatprep.subr.bf16.mxu0 0
      %204 = vmatpush1.bf16.msra.mxu0 %v195
      %205 = vmatprep.subr.bf16.mxu0 0
      %206 = vmatpush1.bf16.msra.mxu0 %v196
      %207 = vmatprep.subr.bf16.mxu0 0
      %208 = vmatpush1.bf16.msra.mxu0 0
      %209 = vmatprep.subr.bf16.mxu0 0
      %210 = vmatpush1.bf16.msra.mxu0 0
      %211 = vmatprep.subr.bf16.mxu0 0
      %212 = vmatpush1.bf16.msra.mxu0 0
      %213 = vmatprep.subr.bf16.mxu0 0
      %214 = vmatpush1.bf16.msra.mxu0 0
      %215 = vmatprep.subr.bf16.mxu0 0
      %216 = vmatpush1.bf16.msra.mxu0 0
      %217 = vmatprep.subr.bf16.mxu0 0
      %218 = vmatpush1.bf16.msra.mxu0 0
      %219 = vmatprep.subr.bf16.mxu0 0
      %220 = vmatpush1.bf16.msra.mxu0 0
      %221 = vmatprep.subr.bf16.mxu0 0
      %222 = vmatpush1.bf16.msra.mxu0 0
      %223 = vmatprep.subr.bf16.mxu0 0
      %224 = vmatpush1.bf16.msra.mxu0 0
      %225 = vmatprep.subr.bf16.mxu0 0
      %226 = vmatpush1.bf16.msra.mxu0 0
      %227 = vmatprep.subr.bf16.mxu0 0
      %228 = vmatpush1.bf16.msra.mxu0 0
      %229 = vmatprep.subr.bf16.mxu0 0
      %230 = vmatpush1.bf16.msra.mxu0 0
      %231 = vmatprep.subr.bf16.mxu0 0
      %232 = vmatpush1.bf16.msra.mxu0 0
      %233 = vmatprep.subr.bf16.mxu0 0
      %234 = vmatpush1.bf16.msra.mxu0 0
      %235 = vmatprep.mubr.bf16.mxu0 0
      %236 = vmatmul.mubr.bf16.gmra.mrb[0].mxu0 %v201
      %v237 = vpop.f32.mrb[0].mxu0
      %v238 = vadd.f32 %v185, %v237
      %v239 = vpop.f32.mrb[0].mxu0
      %v240 = vpop.f32.mrb[0].mxu0
      %v241 = vpop.f32.mrb[0].mxu0
      %242 = vdwg.mxu0
      %v243 = vadd.f32 %v174, %v238
      %v244 = vxor.u32 %v243, 2147483648
      %v245 = vmul.f32 %v244, 1.442695
      %v246 = vpow.pop %v245
      %v247 = vadd.f32 %v246, 1.0
      %v248 = vrcp.pop %v247
      %v249 = vmul.f32 1.0, %v248
      %251 = vrot.lane.b32.xlu0 %v238, 64
      %v252 = vpop.permute.xlu0 %251
      %v254 = vmul.f32 %v249, %v252
      %256 = vrot.lane.b32.xlu0 %v254, 64
      %v257 = vpop.permute.xlu0 %256
      %v259 = vadd.f32 %v174, %v257
      %v260 = vtanh.pop %v259
      %v261 = vsub.f32 1.0, %v249
      %263 = vrot.lane.b32.xlu0 %v260, 96
      %v264 = vpop.permute.xlu0 %263
      %v266 = vmul.f32 %v261, %v264
      %268 = vrot.lane.b32.xlu0 %v173, 32
      %v269 = vpop.permute.xlu0 %268
      %v271 = vmul.f32 %v249, %v269
      %v272 = vadd.f32 %v266, %v271
      %274 = vrot.lane.b32.xlu0 %v272, 96
      %v275 = vpop.permute.xlu0 %274
      %vm277 = vcmask 254976
      %278 = vst.msk [vmem:[#allocation2] sm:$0x3] %vm277, %v275
      %279 = vst.msk [vmem:[%s165] sm:$0x3] %vm277, %v275
      %p280 = scmp.lt.s32.totalorder %s14, 3
      %s281 = scalar_select %p280, %s14, 3
      %s282 = smul.addr %s281, 2
      %s283 = scalar_lea.vmem %s3, %s282
      // Predicated region
      $region37: #{_lambda_.11} parent=31 // pred_check
        %p284 = pneg %p100
      $region38: #{_lambda_.11} parent=31 // pred_check_branch
        %286 = sbr.rel (%p284) target = $region40
      $region39: #{_lambda_.11} parent=31 // pred_region
        _
      $region40: #{_lambda_.11} parent=31 // pred_fallthru
        _
    $region32: #{_lambda_.11} parent=5 // pred_fallthru
      _
    %p287 = scmp.le.s32.totalorder 2, %s9
    // Predicated region
    $region41: #{_lambda_.11} parent=5 // pred_check
      %p288 = pneg %p287
    $region42: #{_lambda_.11} parent=5 // pred_check_branch
      %290 = sbr.rel (%p288) target = $region44
    $region43: #{_lambda_.11} parent=5 // pred_region
      %s291 = ssub.s32 %s9, 2
      // Predicated region
      $region45: #{_lambda_.11} parent=43 // pred_check
        %p292 = pneg %p106
      $region46: #{_lambda_.11} parent=43 // pred_check_branch
        %294 = sbr.rel (%p292) target = $region48
      $region47: #{_lambda_.11} parent=43 // pred_region
        %p295 = scmp.lt.s32.totalorder %s15, 3
        %s296 = scalar_select %p295, %s15, 3
        %s297 = smul.addr %s296, 2
        %s298 = scalar_lea.vmem %s3, %s297
      $region48: #{_lambda_.11} parent=43 // pred_fallthru
        _
    $region44: #{_lambda_.11} parent=5 // pred_fallthru
      _
  $region6: #{_lambda_.11} parent=0 // loop_footer
    %s13 = sadd.s32 1, %s9
  $region7: #{_lambda_.11} parent=0 // loop_footer_branch
    %8 = sbr.rel target = $region3
  $region8: #{_lambda_.11} parent=0 // loop_exit
    _

// kernel: _lambda_.12
$region0: #{_lambda_.12}
  #allocation0 [shape = 'u32[]', space=smem, size = 0x4, offset = 0x4, fixed_abs, tag = 'smem constant byte address 0x4 - core index']
  #allocation1 [shape = 'u32[144,128]{1,0:T(1,128)}', space=vmem, size = 0x12000, scoped, tag = 'internal scratch']
  %s0 = inlined_call_operand.vmem [shape: bf16[38,768], index: 0, kind: input, shape index: {}]
  %s1 = inlined_call_operand.vmem [shape: bf16[768,64], index: 1, kind: input, shape index: {}]
  %s2 = inlined_call_operand.vmem [shape: f32[1,64], index: 2, kind: input, shape index: {}]
  %s3 = inlined_call_operand.vmem [shape: bf16[64,32], index: 3, kind: input, shape index: {}]
  %s4 = inlined_call_operand.vmem [shape: f32[1,32], index: 4, kind: input, shape index: {}]
  %s5 = inlined_call_operand.vmem [shape: f32[1,32], index: 5, kind: input, shape index: {}]
  %s6 = inlined_call_operand.vmem [shape: f32[1,32], index: 6, kind: input, shape index: {}]
  %s7 = inlined_call_operand.vmem [shape: f32[38,32], index: 7, kind: output, shape index: {}]
  %s8 = sld [smem:[#allocation0]]
  $region38: #{_lambda_.12} parent=0
    _
  %s10 = ssub.s32 1, %s8
  %s11 = scalar_select 0, %s10, %s8
  // Predicated region
  $region2: #{_lambda_.12} parent=0 // pred_check
    _
  $region3: #{_lambda_.12} parent=0 // pred_check_branch
    %13 = sbr.rel (0) target = $region5
  $region4: #{_lambda_.12} parent=0 // pred_region
    _
  $region5: #{_lambda_.12} parent=0 // pred_fallthru
    _
  // Predicated region
  $region6: #{_lambda_.12} parent=0 // pred_check
    _
  $region7: #{_lambda_.12} parent=0 // pred_check_branch
    %15 = sbr.rel (0) target = $region9
  $region8: #{_lambda_.12} parent=0 // pred_region
    _
  $region9: #{_lambda_.12} parent=0 // pred_fallthru
    _
  // Predicated region
  $region10: #{_lambda_.12} parent=0 // pred_check
    _
  $region11: #{_lambda_.12} parent=0 // pred_check_branch
    %17 = sbr.rel (0) target = $region13
  $region12: #{_lambda_.12} parent=0 // pred_region
    _
  $region13: #{_lambda_.12} parent=0 // pred_fallthru
    _
  // Predicated region
  $region14: #{_lambda_.12} parent=0 // pred_check
    _
  $region15: #{_lambda_.12} parent=0 // pred_check_branch
    %19 = sbr.rel (0) target = $region17
  $region16: #{_lambda_.12} parent=0 // pred_region
    _
  $region17: #{_lambda_.12} parent=0 // pred_fallthru
    _
  // Predicated region
  $region18: #{_lambda_.12} parent=0 // pred_check
    _
  $region19: #{_lambda_.12} parent=0 // pred_check_branch
    %21 = sbr.rel (0) target = $region21
  $region20: #{_lambda_.12} parent=0 // pred_region
    _
  $region21: #{_lambda_.12} parent=0 // pred_fallthru
    _
  // Predicated region
  $region22: #{_lambda_.12} parent=0 // pred_check
    _
  $region23: #{_lambda_.12} parent=0 // pred_check_branch
    %23 = sbr.rel (0) target = $region25
  $region24: #{_lambda_.12} parent=0 // pred_region
    _
  $region25: #{_lambda_.12} parent=0 // pred_fallthru
    _
  // Predicated region
  $region26: #{_lambda_.12} parent=0 // pred_check
    _
  $region27: #{_lambda_.12} parent=0 // pred_check_branch
    %25 = sbr.rel (0) target = $region29
  $region28: #{_lambda_.12} parent=0 // pred_region
    _
  $region29: #{_lambda_.12} parent=0 // pred_fallthru
    _
  %v27 = vld [vmem:[%s0] sm:$0xff]
  %v28 = vld [vmem:[%s0 + $0x8] sm:$0xff]
  %v29 = vld [vmem:[%s0 + $0x10] sm:$0xff]
  %v30 = vld [vmem:[%s0 + $0x18] sm:$0xff]
  %v31 = vld [vmem:[%s0 + $0x20] sm:$0xff]
  %v32 = vld [vmem:[%s0 + $0x28] sm:$0xff]
  %v33 = vld [vmem:[%s0 + $0x30] sm:$0xff]
  %v34 = vld [vmem:[%s0 + $0x38] sm:$0xff]
  %v35 = vld [vmem:[%s0 + $0x40] sm:$0xff]
  %v36 = vld [vmem:[%s0 + $0x48] sm:$0xff]
  %v37 = vld [vmem:[%s0 + $0x50] sm:$0xff]
  %v38 = vld [vmem:[%s0 + $0x58] sm:$0xff]
  %v39 = vld [vmem:[%s0 + $0x60] sm:$0x77]
  %v40 = vld [vmem:[%s0 + $0x68] sm:$0x77]
  %v41 = vld [vmem:[%s0 + $0x70] sm:$0x77]
  %v42 = vld [vmem:[%s1] sm:$0xf]
  %v43 = vld [vmem:[%s1 + $0x4] sm:$0xf]
  %v44 = vld [vmem:[%s1 + $0x8] sm:$0xf]
  %v45 = vld [vmem:[%s1 + $0xc] sm:$0xf]
  %v46 = vld [vmem:[%s1 + $0x10] sm:$0xf]
  %v47 = vld [vmem:[%s1 + $0x14] sm:$0xf]
  %v48 = vld [vmem:[%s1 + $0x18] sm:$0xf]
  %v49 = vld [vmem:[%s1 + $0x1c] sm:$0xf]
  %v50 = vld [vmem:[%s1 + $0x20] sm:$0xf]
  %v51 = vld [vmem:[%s1 + $0x24] sm:$0xf]
  %v52 = vld [vmem:[%s1 + $0x28] sm:$0xf]
  %v53 = vld [vmem:[%s1 + $0x2c] sm:$0xf]
  %v54 = vld [vmem:[%s1 + $0x30] sm:$0xf]
  %v55 = vld [vmem:[%s1 + $0x34] sm:$0xf]
  %v56 = vld [vmem:[%s1 + $0x38] sm:$0xf]
  %v57 = vld [vmem:[%s1 + $0x3c] sm:$0xf]
  %v58 = vld [vmem:[%s1 + $0x40] sm:$0xf]
  %v59 = vld [vmem:[%s1 + $0x44] sm:$0xf]
  %v60 = vld [vmem:[%s1 + $0x48] sm:$0xf]
  %v61 = vld [vmem:[%s1 + $0x4c] sm:$0xf]
  %v62 = vld [vmem:[%s1 + $0x50] sm:$0xf]
  %v63 = vld [vmem:[%s1 + $0x54] sm:$0xf]
  %v64 = vld [vmem:[%s1 + $0x58] sm:$0xf]
  %v65 = vld [vmem:[%s1 + $0x5c] sm:$0xf]
  %v66 = vld [vmem:[%s1 + $0x60] sm:$0xf]
  %v67 = vld [vmem:[%s1 + $0x64] sm:$0xf]
  %v68 = vld [vmem:[%s1 + $0x68] sm:$0xf]
  %v69 = vld [vmem:[%s1 + $0x6c] sm:$0xf]
  %v70 = vld [vmem:[%s1 + $0x70] sm:$0xf]
  %v71 = vld [vmem:[%s1 + $0x74] sm:$0xf]
  %v72 = vld [vmem:[%s1 + $0x78] sm:$0xf]
  %v73 = vld [vmem:[%s1 + $0x7c] sm:$0xf]
  %v74 = vld [vmem:[%s1 + $0x80] sm:$0xf]
  %v75 = vld [vmem:[%s1 + $0x84] sm:$0xf]
  %v76 = vld [vmem:[%s1 + $0x88] sm:$0xf]
  %v77 = vld [vmem:[%s1 + $0x8c] sm:$0xf]
  %v78 = vld [vmem:[%s1 + $0x90] sm:$0xf]
  %v79 = vld [vmem:[%s1 + $0x94] sm:$0xf]
  %v80 = vld [vmem:[%s1 + $0x98] sm:$0xf]
  %v81 = vld [vmem:[%s1 + $0x9c] sm:$0xf]
  %v82 = vld [vmem:[%s1 + $0xa0] sm:$0xf]
  %v83 = vld [vmem:[%s1 + $0xa4] sm:$0xf]
  %v84 = vld [vmem:[%s1 + $0xa8] sm:$0xf]
  %v85 = vld [vmem:[%s1 + $0xac] sm:$0xf]
  %v86 = vld [vmem:[%s1 + $0xb0] sm:$0xf]
  %v87 = vld [vmem:[%s1 + $0xb4] sm:$0xf]
  %v88 = vld [vmem:[%s1 + $0xb8] sm:$0xf]
  %v89 = vld [vmem:[%s1 + $0xbc] sm:$0xf]
  %v90 = vld [vmem:[%s1 + $0xc0] sm:$0xf]
  %v91 = vld [vmem:[%s1 + $0xc4] sm:$0xf]
  %v92 = vld [vmem:[%s1 + $0xc8] sm:$0xf]
  %v93 = vld [vmem:[%s1 + $0xcc] sm:$0xf]
  %v94 = vld [vmem:[%s1 + $0xd0] sm:$0xf]
  %v95 = vld [vmem:[%s1 + $0xd4] sm:$0xf]
  %v96 = vld [vmem:[%s1 + $0xd8] sm:$0xf]
  %v97 = vld [vmem:[%s1 + $0xdc] sm:$0xf]
  %v98 = vld [vmem:[%s1 + $0xe0] sm:$0xf]
  %v99 = vld [vmem:[%s1 + $0xe4] sm:$0xf]
  %v100 = vld [vmem:[%s1 + $0xe8] sm:$0xf]
  %v101 = vld [vmem:[%s1 + $0xec] sm:$0xf]
  %v102 = vld [vmem:[%s1 + $0xf0] sm:$0xf]
  %v103 = vld [vmem:[%s1 + $0xf4] sm:$0xf]
  %v104 = vld [vmem:[%s1 + $0xf8] sm:$0xf]
  %v105 = vld [vmem:[%s1 + $0xfc] sm:$0xf]
  %v106 = vld [vmem:[%s1 + $0x100] sm:$0xf]
  %v107 = vld [vmem:[%s1 + $0x104] sm:$0xf]
  %v108 = vld [vmem:[%s1 + $0x108] sm:$0xf]
  %v109 = vld [vmem:[%s1 + $0x10c] sm:$0xf]
  %v110 = vld [vmem:[%s1 + $0x110] sm:$0xf]
  %v111 = vld [vmem:[%s1 + $0x114] sm:$0xf]
  %v112 = vld [vmem:[%s1 + $0x118] sm:$0xf]
  %v113 = vld [vmem:[%s1 + $0x11c] sm:$0xf]
  %v114 = vld [vmem:[%s1 + $0x120] sm:$0xf]
  %v115 = vld [vmem:[%s1 + $0x124] sm:$0xf]
  %v116 = vld [vmem:[%s1 + $0x128] sm:$0xf]
  %v117 = vld [vmem:[%s1 + $0x12c] sm:$0xf]
  %v118 = vld [vmem:[%s1 + $0x130] sm:$0xf]
  %v119 = vld [vmem:[%s1 + $0x134] sm:$0xf]
  %v120 = vld [vmem:[%s1 + $0x138] sm:$0xf]
  %v121 = vld [vmem:[%s1 + $0x13c] sm:$0xf]
  %v122 = vld [vmem:[%s1 + $0x140] sm:$0xf]
  %v123 = vld [vmem:[%s1 + $0x144] sm:$0xf]
  %v124 = vld [vmem:[%s1 + $0x148] sm:$0xf]
  %v125 = vld [vmem:[%s1 + $0x14c] sm:$0xf]
  %v126 = vld [vmem:[%s1 + $0x150] sm:$0xf]
  %v127 = vld [vmem:[%s1 + $0x154] sm:$0xf]
  %v128 = vld [vmem:[%s1 + $0x158] sm:$0xf]
  %v129 = vld [vmem:[%s1 + $0x15c] sm:$0xf]
  %v130 = vld [vmem:[%s1 + $0x160] sm:$0xf]
  %v131 = vld [vmem:[%s1 + $0x164] sm:$0xf]
  %v132 = vld [vmem:[%s1 + $0x168] sm:$0xf]
  %v133 = vld [vmem:[%s1 + $0x16c] sm:$0xf]
  %v134 = vld [vmem:[%s1 + $0x170] sm:$0xf]
  %v135 = vld [vmem:[%s1 + $0x174] sm:$0xf]
  %v136 = vld [vmem:[%s1 + $0x178] sm:$0xf]
  %v137 = vld [vmem:[%s1 + $0x17c] sm:$0xf]
  %v138 = vld [vmem:[%s2] sm:$0x1]
  %v140 = vlaneseq
  %v141 = vshrl.u32 %v140, 7
  %v142 = vsub.s32 0, %v141
  %v143 = vrot.slane %v138, %v142
  %v160 = vunpack.c.l.b16 %v27
  %v161 = vunpack.c.h.b16 %v27
  %v162 = vunpack.c.l.b16 %v28
  %v163 = vunpack.c.h.b16 %v28
  %v164 = vunpack.c.l.b16 %v29
  %v165 = vunpack.c.h.b16 %v29
  %v166 = vunpack.c.l.b16 %v30
  %v167 = vunpack.c.h.b16 %v30
  %v168 = vunpack.c.l.b16 %v31
  %v169 = vunpack.c.h.b16 %v31
  %v170 = vunpack.c.l.b16 %v32
  %v171 = vunpack.c.h.b16 %v32
  %v172 = vunpack.c.l.b16 %v33
  %v173 = vunpack.c.h.b16 %v33
  %v174 = vunpack.c.l.b16 %v34
  %v175 = vunpack.c.h.b16 %v34
  %v176 = vunpack.c.l.b16 %v35
  %v177 = vunpack.c.h.b16 %v35
  %v178 = vunpack.c.l.b16 %v36
  %v179 = vunpack.c.h.b16 %v36
  %v180 = vunpack.c.l.b16 %v37
  %v181 = vunpack.c.h.b16 %v37
  %v182 = vunpack.c.l.b16 %v38
  %v183 = vunpack.c.h.b16 %v38
  %v184 = vunpack.c.l.b16 %v39
  %v185 = vunpack.c.h.b16 %v39
  %v186 = vunpack.c.l.b16 %v40
  %v187 = vunpack.c.h.b16 %v40
  %v188 = vunpack.c.l.b16 %v41
  %v189 = vunpack.c.h.b16 %v41
  %v190 = vpack.c.b16 %v166, %v160
  %v191 = vpack.c.b16 %v167, %v161
  %v192 = vpack.c.b16 %v168, %v162
  %v193 = vpack.c.b16 %v169, %v163
  %v194 = vpack.c.b16 %v170, %v164
  %v195 = vpack.c.b16 %v171, %v165
  %v196 = vpack.c.b16 %v178, %v172
  %v197 = vpack.c.b16 %v179, %v173
  %v198 = vpack.c.b16 %v180, %v174
  %v199 = vpack.c.b16 %v181, %v175
  %v200 = vpack.c.b16 %v182, %v176
  %v201 = vpack.c.b16 %v183, %v177
  %v202 = vpack.c.b16 %v184, %v184
  %v203 = vpack.c.b16 %v185, %v185
  %v204 = vpack.c.b16 %v186, %v186
  %v205 = vpack.c.b16 %v187, %v187
  %v206 = vpack.c.b16 %v188, %v188
  %v207 = vpack.c.b16 %v189, %v189
  %v322 = vunpack.c.l.b16 %v42
  %v323 = vunpack.c.l.b16 %v43
  %v324 = vunpack.c.l.b16 %v44
  %v325 = vunpack.c.l.b16 %v45
  %v326 = vunpack.c.l.b16 %v46
  %v327 = vunpack.c.l.b16 %v47
  %v328 = vunpack.c.l.b16 %v48
  %v329 = vunpack.c.l.b16 %v49
  %v330 = vunpack.c.l.b16 %v50
  %v331 = vunpack.c.l.b16 %v51
  %v332 = vunpack.c.l.b16 %v52
  %v333 = vunpack.c.l.b16 %v53
  %v334 = vunpack.c.l.b16 %v54
  %v335 = vunpack.c.l.b16 %v55
  %v336 = vunpack.c.l.b16 %v56
  %v337 = vunpack.c.l.b16 %v57
  %v338 = vunpack.c.l.b16 %v58
  %v339 = vunpack.c.l.b16 %v59
  %v340 = vunpack.c.l.b16 %v60
  %v341 = vunpack.c.l.b16 %v61
  %v342 = vunpack.c.l.b16 %v62
  %v343 = vunpack.c.l.b16 %v63
  %v344 = vunpack.c.l.b16 %v64
  %v345 = vunpack.c.l.b16 %v65
  %v346 = vunpack.c.l.b16 %v66
  %v347 = vunpack.c.l.b16 %v67
  %v348 = vunpack.c.l.b16 %v68
  %v349 = vunpack.c.l.b16 %v69
  %v350 = vunpack.c.l.b16 %v70
  %v351 = vunpack.c.l.b16 %v71
  %v352 = vunpack.c.l.b16 %v72
  %v353 = vunpack.c.l.b16 %v73
  %v354 = vunpack.c.l.b16 %v74
  %v355 = vunpack.c.l.b16 %v75
  %v356 = vunpack.c.l.b16 %v76
  %v357 = vunpack.c.l.b16 %v77
  %v358 = vunpack.c.l.b16 %v78
  %v359 = vunpack.c.l.b16 %v79
  %v360 = vunpack.c.l.b16 %v80
  %v361 = vunpack.c.l.b16 %v81
  %v362 = vunpack.c.l.b16 %v82
  %v363 = vunpack.c.l.b16 %v83
  %v364 = vunpack.c.l.b16 %v84
  %v365 = vunpack.c.l.b16 %v85
  %v366 = vunpack.c.l.b16 %v86
  %v367 = vunpack.c.l.b16 %v87
  %v368 = vunpack.c.l.b16 %v88
  %v369 = vunpack.c.l.b16 %v89
  %v370 = vunpack.c.l.b16 %v90
  %v371 = vunpack.c.l.b16 %v91
  %v372 = vunpack.c.l.b16 %v92
  %v373 = vunpack.c.l.b16 %v93
  %v374 = vunpack.c.l.b16 %v94
  %v375 = vunpack.c.l.b16 %v95
  %v376 = vunpack.c.l.b16 %v96
  %v377 = vunpack.c.l.b16 %v97
  %v378 = vunpack.c.l.b16 %v98
  %v379 = vunpack.c.l.b16 %v99
  %v380 = vunpack.c.l.b16 %v100
  %v381 = vunpack.c.l.b16 %v101
  %v382 = vunpack.c.l.b16 %v102
  %v383 = vunpack.c.l.b16 %v103
  %v384 = vunpack.c.l.b16 %v104
  %v385 = vunpack.c.l.b16 %v105
  %v386 = vunpack.c.l.b16 %v106
  %v387 = vunpack.c.l.b16 %v107
  %v388 = vunpack.c.l.b16 %v108
  %v389 = vunpack.c.l.b16 %v109
  %v390 = vunpack.c.l.b16 %v110
  %v391 = vunpack.c.l.b16 %v111
  %v392 = vunpack.c.l.b16 %v112
  %v393 = vunpack.c.l.b16 %v113
  %v394 = vunpack.c.l.b16 %v114
  %v395 = vunpack.c.l.b16 %v115
  %v396 = vunpack.c.l.b16 %v116
  %v397 = vunpack.c.l.b16 %v117
  %v398 = vunpack.c.l.b16 %v118
  %v399 = vunpack.c.l.b16 %v119
  %v400 = vunpack.c.l.b16 %v120
  %v401 = vunpack.c.l.b16 %v121
  %v402 = vunpack.c.l.b16 %v122
  %v403 = vunpack.c.l.b16 %v123
  %v404 = vunpack.c.l.b16 %v124
  %v405 = vunpack.c.l.b16 %v125
  %v406 = vunpack.c.l.b16 %v126
  %v407 = vunpack.c.l.b16 %v127
  %v408 = vunpack.c.l.b16 %v128
  %v409 = vunpack.c.l.b16 %v129
  %v410 = vunpack.c.l.b16 %v130
  %v411 = vunpack.c.l.b16 %v131
  %v412 = vunpack.c.l.b16 %v132
  %v413 = vunpack.c.l.b16 %v133
  %v414 = vunpack.c.l.b16 %v134
  %v415 = vunpack.c.l.b16 %v135
  %v416 = vunpack.c.l.b16 %v136
  %v417 = vunpack.c.l.b16 %v137
  %v418 = vpack.c.b16 %v323, %v322
  %v419 = vpack.c.b16 %v325, %v324
  %v420 = vpack.c.b16 %v327, %v326
  %v421 = vpack.c.b16 %v329, %v328
  %v422 = vpack.c.b16 %v331, %v330
  %v423 = vpack.c.b16 %v333, %v332
  %v424 = vpack.c.b16 %v335, %v334
  %v425 = vpack.c.b16 %v337, %v336
  %v426 = vpack.c.b16 %v339, %v338
  %v427 = vpack.c.b16 %v341, %v340
  %v428 = vpack.c.b16 %v343, %v342
  %v429 = vpack.c.b16 %v345, %v344
  %v430 = vpack.c.b16 %v347, %v346
  %v431 = vpack.c.b16 %v349, %v348
  %v432 = vpack.c.b16 %v351, %v350
  %v433 = vpack.c.b16 %v353, %v352
  %v434 = vpack.c.b16 %v355, %v354
  %v435 = vpack.c.b16 %v357, %v356
  %v436 = vpack.c.b16 %v359, %v358
  %v437 = vpack.c.b16 %v361, %v360
  %v438 = vpack.c.b16 %v363, %v362
  %v439 = vpack.c.b16 %v365, %v364
  %v440 = vpack.c.b16 %v367, %v366
  %v441 = vpack.c.b16 %v369, %v368
  %v442 = vpack.c.b16 %v371, %v370
  %v443 = vpack.c.b16 %v373, %v372
  %v444 = vpack.c.b16 %v375, %v374
  %v445 = vpack.c.b16 %v377, %v376
  %v446 = vpack.c.b16 %v379, %v378
  %v447 = vpack.c.b16 %v381, %v380
  %v448 = vpack.c.b16 %v383, %v382
  %v449 = vpack.c.b16 %v385, %v384
  %v450 = vpack.c.b16 %v387, %v386
  %v451 = vpack.c.b16 %v389, %v388
  %v452 = vpack.c.b16 %v391, %v390
  %v453 = vpack.c.b16 %v393, %v392
  %v454 = vpack.c.b16 %v395, %v394
  %v455 = vpack.c.b16 %v397, %v396
  %v456 = vpack.c.b16 %v399, %v398
  %v457 = vpack.c.b16 %v401, %v400
  %v458 = vpack.c.b16 %v403, %v402
  %v459 = vpack.c.b16 %v405, %v404
  %v460 = vpack.c.b16 %v407, %v406
  %v461 = vpack.c.b16 %v409, %v408
  %v462 = vpack.c.b16 %v411, %v410
  %v463 = vpack.c.b16 %v413, %v412
  %v464 = vpack.c.b16 %v415, %v414
  %v465 = vpack.c.b16 %v417, %v416
  %514 = vmatprep.subr.bf16.mxu0 0
  %515 = vmatpush1.bf16.msra.mxu0 %v418
  %516 = vmatprep.subr.bf16.mxu0 0
  %517 = vmatpush1.bf16.msra.mxu0 %v419
  %518 = vmatprep.subr.bf16.mxu0 0
  %519 = vmatpush1.bf16.msra.mxu0 %v420
  %520 = vmatprep.subr.bf16.mxu0 0
  %521 = vmatpush1.bf16.msra.mxu0 %v421
  %522 = vmatprep.subr.bf16.mxu0 0
  %523 = vmatpush1.bf16.msra.mxu0 %v422
  %524 = vmatprep.subr.bf16.mxu0 0
  %525 = vmatpush1.bf16.msra.mxu0 %v423
  %526 = vmatprep.subr.bf16.mxu0 0
  %527 = vmatpush1.bf16.msra.mxu0 %v424
  %528 = vmatprep.subr.bf16.mxu0 0
  %529 = vmatpush1.bf16.msra.mxu0 %v425
  %530 = vmatprep.subr.bf16.mxu0 0
  %531 = vmatpush1.bf16.msra.mxu0 %v426
  %532 = vmatprep.subr.bf16.mxu0 0
  %533 = vmatpush1.bf16.msra.mxu0 %v427
  %534 = vmatprep.subr.bf16.mxu0 0
  %535 = vmatpush1.bf16.msra.mxu0 %v428
  %536 = vmatprep.subr.bf16.mxu0 0
  %537 = vmatpush1.bf16.msra.mxu0 %v429
  %538 = vmatprep.subr.bf16.mxu0 0
  %539 = vmatpush1.bf16.msra.mxu0 %v430
  %540 = vmatprep.subr.bf16.mxu0 0
  %541 = vmatpush1.bf16.msra.mxu0 %v431
  %542 = vmatprep.subr.bf16.mxu0 0
  %543 = vmatpush1.bf16.msra.mxu0 %v432
  %544 = vmatprep.subr.bf16.mxu0 0
  %545 = vmatpush1.bf16.msra.mxu0 %v433
  %546 = vmatprep.mubr.bf16.mxu0 %v191
  %547 = vmatmul.mubr.bf16.gmra.mrb[0].mxu0 %v190
  %v548 = vpop.f32.mrb[0].mxu0
  %v549 = vadd.f32 %v143, %v548
  %v550 = vpop.f32.mrb[0].mxu0
  %v551 = vpop.f32.mrb[0].mxu0
  %v552 = vadd.f32 %v143, %v551
  %v553 = vpop.f32.mrb[0].mxu0
  %554 = vmatprep.mubr.bf16.mxu0 %v197
  %555 = vmatmul.mubr.bf16.gmra.mrb[0].mxu0 %v196
  %v556 = vpop.f32.mrb[0].mxu0
  %v557 = vadd.f32 %v143, %v556
  %v558 = vpop.f32.mrb[0].mxu0
  %v559 = vpop.f32.mrb[0].mxu0
  %v560 = vadd.f32 %v143, %v559
  %v561 = vpop.f32.mrb[0].mxu0
  %562 = vmatprep.mubr.bf16.mxu0 %v203
  %563 = vmatmul.mubr.bf16.gmra.mrb[0].mxu0 %v202
  %v564 = vpop.f32.mrb[0].mxu0
  %v565 = vadd.f32 %v143, %v564
  %v566 = vpop.f32.mrb[0].mxu0
  %v567 = vpop.f32.mrb[0].mxu0
  %v568 = vpop.f32.mrb[0].mxu0
  %569 = vdwg.mxu0
  %570 = vmatprep.subr.bf16.mxu0 0
  %571 = vmatpush1.bf16.msra.mxu0 %v434
  %572 = vmatprep.subr.bf16.mxu0 0
  %573 = vmatpush1.bf16.msra.mxu0 %v435
  %574 = vmatprep.subr.bf16.mxu0 0
  %575 = vmatpush1.bf16.msra.mxu0 %v436
  %576 = vmatprep.subr.bf16.mxu0 0
  %577 = vmatpush1.bf16.msra.mxu0 %v437
  %578 = vmatprep.subr.bf16.mxu0 0
  %579 = vmatpush1.bf16.msra.mxu0 %v438
  %580 = vmatprep.subr.bf16.mxu0 0
  %581 = vmatpush1.bf16.msra.mxu0 %v439
  %582 = vmatprep.subr.bf16.mxu0 0
  %583 = vmatpush1.bf16.msra.mxu0 %v440
  %584 = vmatprep.subr.bf16.mxu0 0
  %585 = vmatpush1.bf16.msra.mxu0 %v441
  %586 = vmatprep.subr.bf16.mxu0 0
  %587 = vmatpush1.bf16.msra.mxu0 %v442
  %588 = vmatprep.subr.bf16.mxu0 0
  %589 = vmatpush1.bf16.msra.mxu0 %v443
  %590 = vmatprep.subr.bf16.mxu0 0
  %591 = vmatpush1.bf16.msra.mxu0 %v444
  %592 = vmatprep.subr.bf16.mxu0 0
  %593 = vmatpush1.bf16.msra.mxu0 %v445
  %594 = vmatprep.subr.bf16.mxu0 0
  %595 = vmatpush1.bf16.msra.mxu0 %v446
  %596 = vmatprep.subr.bf16.mxu0 0
  %597 = vmatpush1.bf16.msra.mxu0 %v447
  %598 = vmatprep.subr.bf16.mxu0 0
  %599 = vmatpush1.bf16.msra.mxu0 %v448
  %600 = vmatprep.subr.bf16.mxu0 0
  %601 = vmatpush1.bf16.msra.mxu0 %v449
  %602 = vmatprep.mubr.bf16.mxu0 %v193
  %603 = vmatmul.mubr.bf16.gmra.mrb[0].mxu0 %v192
  %v604 = vpop.f32.mrb[0].mxu0
  %v605 = vadd.f32 %v549, %v604
  %v606 = vpop.f32.mrb[0].mxu0
  %v607 = vpop.f32.mrb[0].mxu0
  %v608 = vadd.f32 %v552, %v607
  %v609 = vpop.f32.mrb[0].mxu0
  %610 = vmatprep.mubr.bf16.mxu0 %v199
  %611 = vmatmul.mubr.bf16.gmra.mrb[0].mxu0 %v198
  %v612 = vpop.f32.mrb[0].mxu0
  %v613 = vadd.f32 %v557, %v612
  %v614 = vpop.f32.mrb[0].mxu0
  %v615 = vpop.f32.mrb[0].mxu0
  %v616 = vadd.f32 %v560, %v615
  %v617 = vpop.f32.mrb[0].mxu0
  %618 = vmatprep.mubr.bf16.mxu0 %v205
  %619 = vmatmul.mubr.bf16.gmra.mrb[0].mxu0 %v204
  %v620 = vpop.f32.mrb[0].mxu0
  %v621 = vadd.f32 %v565, %v620
  %v622 = vpop.f32.mrb[0].mxu0
  %v623 = vpop.f32.mrb[0].mxu0
  %v624 = vpop.f32.mrb[0].mxu0
  %625 = vdwg.mxu0
  %626 = vmatprep.subr.bf16.mxu0 0
  %627 = vmatpush1.bf16.msra.mxu0 %v450
  %628 = vmatprep.subr.bf16.mxu0 0
  %629 = vmatpush1.bf16.msra.mxu0 %v451
  %630 = vmatprep.subr.bf16.mxu0 0
  %631 = vmatpush1.bf16.msra.mxu0 %v452
  %632 = vmatprep.subr.bf16.mxu0 0
  %633 = vmatpush1.bf16.msra.mxu0 %v453
  %634 = vmatprep.subr.bf16.mxu0 0
  %635 = vmatpush1.bf16.msra.mxu0 %v454
  %636 = vmatprep.subr.bf16.mxu0 0
  %637 = vmatpush1.bf16.msra.mxu0 %v455
  %638 = vmatprep.subr.bf16.mxu0 0
  %639 = vmatpush1.bf16.msra.mxu0 %v456
  %640 = vmatprep.subr.bf16.mxu0 0
  %641 = vmatpush1.bf16.msra.mxu0 %v457
  %642 = vmatprep.subr.bf16.mxu0 0
  %643 = vmatpush1.bf16.msra.mxu0 %v458
  %644 = vmatprep.subr.bf16.mxu0 0
  %645 = vmatpush1.bf16.msra.mxu0 %v459
  %646 = vmatprep.subr.bf16.mxu0 0
  %647 = vmatpush1.bf16.msra.mxu0 %v460
  %648 = vmatprep.subr.bf16.mxu0 0
  %649 = vmatpush1.bf16.msra.mxu0 %v461
  %650 = vmatprep.subr.bf16.mxu0 0
  %651 = vmatpush1.bf16.msra.mxu0 %v462
  %652 = vmatprep.subr.bf16.mxu0 0
  %653 = vmatpush1.bf16.msra.mxu0 %v463
  %654 = vmatprep.subr.bf16.mxu0 0
  %655 = vmatpush1.bf16.msra.mxu0 %v464
  %656 = vmatprep.subr.bf16.mxu0 0
  %657 = vmatpush1.bf16.msra.mxu0 %v465
  %658 = vmatprep.mubr.bf16.mxu0 %v195
  %659 = vmatmul.mubr.bf16.gmra.mrb[0].mxu0 %v194
  %v660 = vpop.f32.mrb[0].mxu0
  %v661 = vadd.f32 %v605, %v660
  %v662 = vpop.f32.mrb[0].mxu0
  %v663 = vpop.f32.mrb[0].mxu0
  %v664 = vadd.f32 %v608, %v663
  %v665 = vpop.f32.mrb[0].mxu0
  %666 = vmatprep.mubr.bf16.mxu0 %v201
  %667 = vmatmul.mubr.bf16.gmra.mrb[0].mxu0 %v200
  %v668 = vpop.f32.mrb[0].mxu0
  %v669 = vadd.f32 %v613, %v668
  %v670 = vpop.f32.mrb[0].mxu0
  %v671 = vpop.f32.mrb[0].mxu0
  %v672 = vadd.f32 %v616, %v671
  %v673 = vpop.f32.mrb[0].mxu0
  %674 = vmatprep.mubr.bf16.mxu0 %v207
  %675 = vmatmul.mubr.bf16.gmra.mrb[0].mxu0 %v206
  %v676 = vpop.f32.mrb[0].mxu0
  %v677 = vadd.f32 %v621, %v676
  %v678 = vpop.f32.mrb[0].mxu0
  %v679 = vpop.f32.mrb[0].mxu0
  %v680 = vpop.f32.mrb[0].mxu0
  %681 = vdwg.mxu0
  %v682 = vmax.f32 %v661, 0.0
  %v683 = vmax.f32 %v664, 0.0
  %v684 = vmax.f32 %v669, 0.0
  %v685 = vmax.f32 %v672, 0.0
  %v686 = vmax.f32 %v677, 0.0
  %v687 = vpack.c.bf16 %v683, %v682
  %v688 = vpack.c.bf16 %v685, %v684
  %v689 = vpack.c.bf16 %v686, %v686
  %v690 = vld [vmem:[%s3] sm:$0xf]
  %v691 = vld [vmem:[%s3 + $0x4] sm:$0xf]
  %v692 = vld [vmem:[%s3 + $0x8] sm:$0xf]
  %v693 = vld [vmem:[%s3 + $0xc] sm:$0xf]
  %v694 = vld [vmem:[%s3 + $0x10] sm:$0xf]
  %v695 = vld [vmem:[%s3 + $0x14] sm:$0xf]
  %v696 = vld [vmem:[%s3 + $0x18] sm:$0xf]
  %v697 = vld [vmem:[%s3 + $0x1c] sm:$0xf]
  %v698 = vld [vmem:[%s4] sm:$0x1]
  %v700 = vlaneseq
  %v701 = vshrl.u32 %v700, 7
  %v702 = vsub.s32 0, %v701
  %v703 = vrot.slane %v698, %v702
  %v713 = vunpack.c.l.b16 %v690
  %v714 = vunpack.c.l.b16 %v691
  %v715 = vunpack.c.l.b16 %v692
  %v716 = vunpack.c.l.b16 %v693
  %v717 = vunpack.c.l.b16 %v694
  %v718 = vunpack.c.l.b16 %v695
  %v719 = vunpack.c.l.b16 %v696
  %v720 = vunpack.c.l.b16 %v697
  %v721 = vpack.c.b16 %v714, %v713
  %v722 = vpack.c.b16 %v716, %v715
  %v723 = vpack.c.b16 %v718, %v717
  %v724 = vpack.c.b16 %v720, %v719
  %vm729 = vcmask 523264
  %v731 = vsel %vm729, %v687, 0
  %v734 = vsel %vm729, %v688, 0
  %v737 = vsel %vm729, %v689, 0
  %739 = vmatprep.subr.bf16.mxu0 0
  %740 = vmatpush1.bf16.msra.mxu0 %v721
  %741 = vmatprep.subr.bf16.mxu0 0
  %742 = vmatpush1.bf16.msra.mxu0 %v722
  %743 = vmatprep.subr.bf16.mxu0 0
  %744 = vmatpush1.bf16.msra.mxu0 %v723
  %745 = vmatprep.subr.bf16.mxu0 0
  %746 = vmatpush1.bf16.msra.mxu0 %v724
  %747 = vmatprep.subr.bf16.mxu0 0
  %748 = vmatpush1.bf16.msra.mxu0 0
  %749 = vmatprep.subr.bf16.mxu0 0
  %750 = vmatpush1.bf16.msra.mxu0 0
  %751 = vmatprep.subr.bf16.mxu0 0
  %752 = vmatpush1.bf16.msra.mxu0 0
  %753 = vmatprep.subr.bf16.mxu0 0
  %754 = vmatpush1.bf16.msra.mxu0 0
  %755 = vmatprep.subr.bf16.mxu0 0
  %756 = vmatpush1.bf16.msra.mxu0 0
  %757 = vmatprep.subr.bf16.mxu0 0
  %758 = vmatpush1.bf16.msra.mxu0 0
  %759 = vmatprep.subr.bf16.mxu0 0
  %760 = vmatpush1.bf16.msra.mxu0 0
  %761 = vmatprep.subr.bf16.mxu0 0
  %762 = vmatpush1.bf16.msra.mxu0 0
  %763 = vmatprep.subr.bf16.mxu0 0
  %764 = vmatpush1.bf16.msra.mxu0 0
  %765 = vmatprep.subr.bf16.mxu0 0
  %766 = vmatpush1.bf16.msra.mxu0 0
  %767 = vmatprep.subr.bf16.mxu0 0
  %768 = vmatpush1.bf16.msra.mxu0 0
  %769 = vmatprep.subr.bf16.mxu0 0
  %770 = vmatpush1.bf16.msra.mxu0 0
  %771 = vmatprep.mubr.bf16.mxu0 0
  %772 = vmatmul.mubr.bf16.gmra.mrb[0].mxu0 %v731
  %v773 = vpop.f32.mrb[0].mxu0
  %v774 = vadd.f32 %v703, %v773
  %v775 = vpop.f32.mrb[0].mxu0
  %v776 = vpop.f32.mrb[0].mxu0
  %v777 = vadd.f32 %v703, %v776
  %v778 = vpop.f32.mrb[0].mxu0
  %779 = vmatprep.mubr.bf16.mxu0 0
  %780 = vmatmul.mubr.bf16.gmra.mrb[0].mxu0 %v734
  %v781 = vpop.f32.mrb[0].mxu0
  %v782 = vadd.f32 %v703, %v781
  %v783 = vpop.f32.mrb[0].mxu0
  %v784 = vpop.f32.mrb[0].mxu0
  %v785 = vadd.f32 %v703, %v784
  %v786 = vpop.f32.mrb[0].mxu0
  %787 = vmatprep.mubr.bf16.mxu0 0
  %788 = vmatmul.mubr.bf16.gmra.mrb[0].mxu0 %v737
  %v789 = vpop.f32.mrb[0].mxu0
  %v790 = vadd.f32 %v703, %v789
  %v791 = vpop.f32.mrb[0].mxu0
  %v792 = vpop.f32.mrb[0].mxu0
  %v793 = vpop.f32.mrb[0].mxu0
  %794 = vdwg.mxu0
  %vm795 = vcmask 261120
  %v796 = vsel %vm795, %v774, 0.0
  %797 = vadd.xlane.f32.xlu0 %v796
  %v798 = vpop.xlane.xlu0 %797
  %v799 = vsel %vm795, %v777, 0.0
  %800 = vadd.xlane.f32.xlu0 %v799
  %v801 = vpop.xlane.xlu0 %800
  %v802 = vsel %vm795, %v782, 0.0
  %803 = vadd.xlane.f32.xlu0 %v802
  %v804 = vpop.xlane.xlu0 %803
  %v805 = vsel %vm795, %v785, 0.0
  %806 = vadd.xlane.f32.xlu0 %v805
  %v807 = vpop.xlane.xlu0 %806
  %vm808 = vcmask 259072
  %v809 = vsel %vm808, %v790, 0.0
  %810 = vadd.xlane.f32.xlu0 %v809
  %v811 = vpop.xlane.xlu0 %810
  %v812 = vrcp.pop 32.0
  %v813 = vmul.f32 %v798, %v812
  %v814 = vmul.f32 %v801, %v812
  %v815 = vmul.f32 %v804, %v812
  %v816 = vmul.f32 %v807, %v812
  %v817 = vmul.f32 %v811, %v812
  %v818 = vsub.f32 %v774, %v813
  %v819 = vsub.f32 %v777, %v814
  %v820 = vsub.f32 %v782, %v815
  %v821 = vsub.f32 %v785, %v816
  %v822 = vsub.f32 %v790, %v817
  %v823 = vmul.f32 %v818, %v818
  %v824 = vmul.f32 %v819, %v819
  %v825 = vmul.f32 %v820, %v820
  %v826 = vmul.f32 %v821, %v821
  %v827 = vmul.f32 %v822, %v822
  %v828 = vsel %vm795, %v823, 0.0
  %829 = vadd.xlane.f32.xlu0 %v828
  %v830 = vpop.xlane.xlu0 %829
  %v831 = vsel %vm795, %v824, 0.0
  %832 = vadd.xlane.f32.xlu0 %v831
  %v833 = vpop.xlane.xlu0 %832
  %v834 = vsel %vm795, %v825, 0.0
  %835 = vadd.xlane.f32.xlu0 %v834
  %v836 = vpop.xlane.xlu0 %835
  %v837 = vsel %vm795, %v826, 0.0
  %838 = vadd.xlane.f32.xlu0 %v837
  %v839 = vpop.xlane.xlu0 %838
  %v840 = vsel %vm808, %v827, 0.0
  %841 = vadd.xlane.f32.xlu0 %v840
  %v842 = vpop.xlane.xlu0 %841
  %v843 = vmul.f32 %v830, %v812
  %v844 = vmul.f32 %v833, %v812
  %v845 = vmul.f32 %v836, %v812
  %v846 = vmul.f32 %v839, %v812
  %v847 = vmul.f32 %v842, %v812
  %v848 = vadd.f32 %v843, 1e-05
  %v849 = vadd.f32 %v844, 1e-05
  %v850 = vadd.f32 %v845, 1e-05
  %v851 = vadd.f32 %v846, 1e-05
  %v852 = vadd.f32 %v847, 1e-05
  %v853 = vrsqrt.pop %v848
  %v854 = vrsqrt.pop %v849
  %v855 = vrsqrt.pop %v850
  %v856 = vrsqrt.pop %v851
  %v857 = vrsqrt.pop %v852
  %v858 = vmul.f32 %v818, %v853
  %v859 = vmul.f32 %v819, %v854
  %v860 = vmul.f32 %v820, %v855
  %v861 = vmul.f32 %v821, %v856
  %v862 = vmul.f32 %v822, %v857
  %v863 = vld [vmem:[%s5] sm:$0x1]
  %v865 = vlaneseq
  %v866 = vshrl.u32 %v865, 7
  %v867 = vsub.s32 0, %v866
  %v868 = vrot.slane %v863, %v867
  %v870 = vmul.f32 %v858, %v868
  %v871 = vmul.f32 %v859, %v868
  %v872 = vmul.f32 %v860, %v868
  %v873 = vmul.f32 %v861, %v868
  %v874 = vmul.f32 %v862, %v868
  %v875 = vld [vmem:[%s6] sm:$0x1]
  %v877 = vlaneseq
  %v878 = vshrl.u32 %v877, 7
  %v879 = vsub.s32 0, %v878
  %v880 = vrot.slane %v875, %v879
  %v882 = vadd.f32 %v870, %v880
  %v883 = vadd.f32 %v871, %v880
  %v884 = vadd.f32 %v872, %v880
  %v885 = vadd.f32 %v873, %v880
  %v886 = vadd.f32 %v874, %v880
  %887 = vst.msk [vmem:[%s7] sm:$0xff] %vm795, %v882
  %888 = vst.msk [vmem:[%s7 + $0x8] sm:$0xff] %vm795, %v883
  %889 = vst.msk [vmem:[%s7 + $0x10] sm:$0xff] %vm795, %v884
  %890 = vst.msk [vmem:[%s7 + $0x18] sm:$0xff] %vm795, %v885
  %891 = vst.msk [vmem:[%s7 + $0x20] sm:$0x3f] %vm808, %v886
  // Predicated region
  $region30: #{_lambda_.12} parent=0 // pred_check
    _
  $region31: #{_lambda_.12} parent=0 // pred_check_branch
    %893 = sbr.rel (0) target = $region33
  $region32: #{_lambda_.12} parent=0 // pred_region
    _
  $region33: #{_lambda_.12} parent=0 // pred_fallthru
    _
  // Predicated region
  $region34: #{_lambda_.12} parent=0 // pred_check
    _
  $region35: #{_lambda_.12} parent=0 // pred_check_branch
    %895 = sbr.rel (0) target = $region37
  $region36: #{_lambda_.12} parent=0 // pred_region
    _
  $region37: #{_lambda_.12} parent=0 // pred_fallthru
    _

// kernel: _lambda_.16
$region0: #{_lambda_.16}
  #allocation0 [shape = 'u32[]', space=smem, size = 0x4, offset = 0x4, fixed_abs, tag = 'smem constant byte address 0x4 - core index']
  #allocation1 [shape = 'u32[144,128]{1,0:T(1,128)}', space=vmem, size = 0x12000, scoped, tag = 'internal scratch']
  %s0 = inlined_call_operand.vmem [shape: f32[8,32], index: 0, kind: input, shape index: {}]
  %s1 = inlined_call_operand.vmem [shape: f32[8,192], index: 1, kind: input, shape index: {}]
  %s2 = inlined_call_operand.vmem [shape: bf16[32,32], index: 2, kind: input, shape index: {}]
  %s3 = inlined_call_operand.vmem [shape: bf16[32,32], index: 3, kind: input, shape index: {}]
  %s4 = inlined_call_operand.vmem [shape: f32[1,32], index: 4, kind: input, shape index: {}]
  %s5 = inlined_call_operand.vmem [shape: f32[1,32], index: 5, kind: input, shape index: {}]
  %s6 = inlined_call_operand.vmem [shape: f32[8,6], index: 6, kind: input, shape index: {}]
  %s7 = inlined_call_operand.vmem [shape: f32[8,6], index: 7, kind: output, shape index: {}]
  %s8 = sld [smem:[#allocation0]]
  $region38: #{_lambda_.16} parent=0
    _
  %s10 = ssub.s32 1, %s8
  %s11 = scalar_select 0, %s10, %s8
  // Predicated region
  $region2: #{_lambda_.16} parent=0 // pred_check
    _
  $region3: #{_lambda_.16} parent=0 // pred_check_branch
    %13 = sbr.rel (0) target = $region5
  $region4: #{_lambda_.16} parent=0 // pred_region
    _
  $region5: #{_lambda_.16} parent=0 // pred_fallthru
    _
  // Predicated region
  $region6: #{_lambda_.16} parent=0 // pred_check
    _
  $region7: #{_lambda_.16} parent=0 // pred_check_branch
    %15 = sbr.rel (0) target = $region9
  $region8: #{_lambda_.16} parent=0 // pred_region
    _
  $region9: #{_lambda_.16} parent=0 // pred_fallthru
    _
  // Predicated region
  $region10: #{_lambda_.16} parent=0 // pred_check
    _
  $region11: #{_lambda_.16} parent=0 // pred_check_branch
    %17 = sbr.rel (0) target = $region13
  $region12: #{_lambda_.16} parent=0 // pred_region
    _
  $region13: #{_lambda_.16} parent=0 // pred_fallthru
    _
  // Predicated region
  $region14: #{_lambda_.16} parent=0 // pred_check
    _
  $region15: #{_lambda_.16} parent=0 // pred_check_branch
    %19 = sbr.rel (0) target = $region17
  $region16: #{_lambda_.16} parent=0 // pred_region
    _
  $region17: #{_lambda_.16} parent=0 // pred_fallthru
    _
  // Predicated region
  $region18: #{_lambda_.16} parent=0 // pred_check
    _
  $region19: #{_lambda_.16} parent=0 // pred_check_branch
    %21 = sbr.rel (0) target = $region21
  $region20: #{_lambda_.16} parent=0 // pred_region
    _
  $region21: #{_lambda_.16} parent=0 // pred_fallthru
    _
  // Predicated region
  $region22: #{_lambda_.16} parent=0 // pred_check
    _
  $region23: #{_lambda_.16} parent=0 // pred_check_branch
    %23 = sbr.rel (0) target = $region25
  $region24: #{_lambda_.16} parent=0 // pred_region
    _
  $region25: #{_lambda_.16} parent=0 // pred_fallthru
    _
  // Predicated region
  $region26: #{_lambda_.16} parent=0 // pred_check
    _
  $region27: #{_lambda_.16} parent=0 // pred_check_branch
    %25 = sbr.rel (0) target = $region29
  $region28: #{_lambda_.16} parent=0 // pred_region
    _
  $region29: #{_lambda_.16} parent=0 // pred_fallthru
    _
  %v27 = vld [vmem:[%s0] sm:$0xff]
  %v28 = vpack.c.bf16 %v27, %v27
  %v29 = vld [vmem:[%s2] sm:$0xf]
  %v30 = vld [vmem:[%s2 + $0x4] sm:$0xf]
  %v31 = vld [vmem:[%s2 + $0x8] sm:$0xf]
  %v32 = vld [vmem:[%s2 + $0xc] sm:$0xf]
  %v33 = vld [vmem:[%s4] sm:$0x1]
  %v35 = vlaneseq
  %v36 = vshrl.u32 %v35, 7
  %v37 = vsub.s32 0, %v36
  %v38 = vrot.slane %v33, %v37
  %v44 = vunpack.c.l.b16 %v29
  %v45 = vunpack.c.l.b16 %v30
  %v46 = vunpack.c.l.b16 %v31
  %v47 = vunpack.c.l.b16 %v32
  %v48 = vpack.c.b16 %v45, %v44
  %v49 = vpack.c.b16 %v47, %v46
  %vm52 = vcmask 261120
  %v54 = vsel %vm52, %v28, 0
  %56 = vmatprep.subr.bf16.mxu0 0
  %57 = vmatpush1.bf16.msra.mxu0 %v48
  %58 = vmatprep.subr.bf16.mxu0 0
  %59 = vmatpush1.bf16.msra.mxu0 %v49
  %60 = vmatprep.subr.bf16.mxu0 0
  %61 = vmatpush1.bf16.msra.mxu0 0
  %62 = vmatprep.subr.bf16.mxu0 0
  %63 = vmatpush1.bf16.msra.mxu0 0
  %64 = vmatprep.subr.bf16.mxu0 0
  %65 = vmatpush1.bf16.msra.mxu0 0
  %66 = vmatprep.subr.bf16.mxu0 0
  %67 = vmatpush1.bf16.msra.mxu0 0
  %68 = vmatprep.subr.bf16.mxu0 0
  %69 = vmatpush1.bf16.msra.mxu0 0
  %70 = vmatprep.subr.bf16.mxu0 0
  %71 = vmatpush1.bf16.msra.mxu0 0
  %72 = vmatprep.subr.bf16.mxu0 0
  %73 = vmatpush1.bf16.msra.mxu0 0
  %74 = vmatprep.subr.bf16.mxu0 0
  %75 = vmatpush1.bf16.msra.mxu0 0
  %76 = vmatprep.subr.bf16.mxu0 0
  %77 = vmatpush1.bf16.msra.mxu0 0
  %78 = vmatprep.subr.bf16.mxu0 0
  %79 = vmatpush1.bf16.msra.mxu0 0
  %80 = vmatprep.subr.bf16.mxu0 0
  %81 = vmatpush1.bf16.msra.mxu0 0
  %82 = vmatprep.subr.bf16.mxu0 0
  %83 = vmatpush1.bf16.msra.mxu0 0
  %84 = vmatprep.subr.bf16.mxu0 0
  %85 = vmatpush1.bf16.msra.mxu0 0
  %86 = vmatprep.subr.bf16.mxu0 0
  %87 = vmatpush1.bf16.msra.mxu0 0
  %88 = vmatprep.mubr.bf16.mxu0 0
  %89 = vmatmul.mubr.bf16.gmra.mrb[0].mxu0 %v54
  %v90 = vpop.f32.mrb[0].mxu0
  %v91 = vadd.f32 %v38, %v90
  %v92 = vpop.f32.mrb[0].mxu0
  %v93 = vpop.f32.mrb[0].mxu0
  %v94 = vpop.f32.mrb[0].mxu0
  %95 = vdwg.mxu0
  %v96 = vld [vmem:[%s1] sm:$0xff]
  %v97 = vld [vmem:[%s1 + $0x8] sm:$0xff]
  %v98 = vld [vmem:[%s5] sm:$0x1]
  %v99 = vpack.c.bf16 %v96, %v96
  %v100 = vld [vmem:[%s3] sm:$0xf]
  %v101 = vld [vmem:[%s3 + $0x4] sm:$0xf]
  %v102 = vld [vmem:[%s3 + $0x8] sm:$0xf]
  %v103 = vld [vmem:[%s3 + $0xc] sm:$0xf]
  %v108 = vunpack.c.l.b16 %v100
  %v109 = vunpack.c.l.b16 %v101
  %v110 = vunpack.c.l.b16 %v102
  %v111 = vunpack.c.l.b16 %v103
  %v112 = vpack.c.b16 %v109, %v108
  %v113 = vpack.c.b16 %v111, %v110
  %v117 = vsel %vm52, %v99, 0
  %119 = vmatprep.subr.bf16.mxu0 0
  %120 = vmatpush1.bf16.msra.mxu0 %v112
  %121 = vmatprep.subr.bf16.mxu0 0
  %122 = vmatpush1.bf16.msra.mxu0 %v113
  %123 = vmatprep.subr.bf16.mxu0 0
  %124 = vmatpush1.bf16.msra.mxu0 0
  %125 = vmatprep.subr.bf16.mxu0 0
  %126 = vmatpush1.bf16.msra.mxu0 0
  %127 = vmatprep.subr.bf16.mxu0 0
  %128 = vmatpush1.bf16.msra.mxu0 0
  %129 = vmatprep.subr.bf16.mxu0 0
  %130 = vmatpush1.bf16.msra.mxu0 0
  %131 = vmatprep.subr.bf16.mxu0 0
  %132 = vmatpush1.bf16.msra.mxu0 0
  %133 = vmatprep.subr.bf16.mxu0 0
  %134 = vmatpush1.bf16.msra.mxu0 0
  %135 = vmatprep.subr.bf16.mxu0 0
  %136 = vmatpush1.bf16.msra.mxu0 0
  %137 = vmatprep.subr.bf16.mxu0 0
  %138 = vmatpush1.bf16.msra.mxu0 0
  %139 = vmatprep.subr.bf16.mxu0 0
  %140 = vmatpush1.bf16.msra.mxu0 0
  %141 = vmatprep.subr.bf16.mxu0 0
  %142 = vmatpush1.bf16.msra.mxu0 0
  %143 = vmatprep.subr.bf16.mxu0 0
  %144 = vmatpush1.bf16.msra.mxu0 0
  %145 = vmatprep.subr.bf16.mxu0 0
  %146 = vmatpush1.bf16.msra.mxu0 0
  %147 = vmatprep.subr.bf16.mxu0 0
  %148 = vmatpush1.bf16.msra.mxu0 0
  %149 = vmatprep.subr.bf16.mxu0 0
  %150 = vmatpush1.bf16.msra.mxu0 0
  %151 = vmatprep.mubr.bf16.mxu0 0
  %152 = vmatmul.mubr.bf16.gmra.mrb[0].mxu0 %v117
  %v153 = vpop.f32.mrb[0].mxu0
  %v154 = vadd.f32 0.0, %v153
  %v155 = vpop.f32.mrb[0].mxu0
  %v156 = vpop.f32.mrb[0].mxu0
  %v157 = vpop.f32.mrb[0].mxu0
  %158 = vdwg.mxu0
  %v159 = vadd.f32 %v91, %v154
  %v160 = vtanh.pop %v159
  %v162 = vlaneseq
  %v163 = vshrl.u32 %v162, 7
  %v164 = vsub.s32 0, %v163
  %v165 = vrot.slane %v98, %v164
  %v167 = vmul.f32 %v160, %v165
  %v168 = vsel %vm52, %v167, 0.0
  %169 = vadd.xlane.f32.xlu0 %v168
  %v170 = vpop.xlane.xlu0 %169
  %172 = vrot.lane.b32.xlu0 %v99, 96
  %v173 = vpop.permute.xlu0 %172
  %v175 = vsel %vm52, %v173, 0
  %177 = vmatprep.subr.bf16.mxu0 0
  %178 = vmatpush1.bf16.msra.mxu0 %v112
  %179 = vmatprep.subr.bf16.mxu0 0
  %180 = vmatpush1.bf16.msra.mxu0 %v113
  %181 = vmatprep.subr.bf16.mxu0 0
  %182 = vmatpush1.bf16.msra.mxu0 0
  %183 = vmatprep.subr.bf16.mxu0 0
  %184 = vmatpush1.bf16.msra.mxu0 0
  %185 = vmatprep.subr.bf16.mxu0 0
  %186 = vmatpush1.bf16.msra.mxu0 0
  %187 = vmatprep.subr.bf16.mxu0 0
  %188 = vmatpush1.bf16.msra.mxu0 0
  %189 = vmatprep.subr.bf16.mxu0 0
  %190 = vmatpush1.bf16.msra.mxu0 0
  %191 = vmatprep.subr.bf16.mxu0 0
  %192 = vmatpush1.bf16.msra.mxu0 0
  %193 = vmatprep.subr.bf16.mxu0 0
  %194 = vmatpush1.bf16.msra.mxu0 0
  %195 = vmatprep.subr.bf16.mxu0 0
  %196 = vmatpush1.bf16.msra.mxu0 0
  %197 = vmatprep.subr.bf16.mxu0 0
  %198 = vmatpush1.bf16.msra.mxu0 0
  %199 = vmatprep.subr.bf16.mxu0 0
  %200 = vmatpush1.bf16.msra.mxu0 0
  %201 = vmatprep.subr.bf16.mxu0 0
  %202 = vmatpush1.bf16.msra.mxu0 0
  %203 = vmatprep.subr.bf16.mxu0 0
  %204 = vmatpush1.bf16.msra.mxu0 0
  %205 = vmatprep.subr.bf16.mxu0 0
  %206 = vmatpush1.bf16.msra.mxu0 0
  %207 = vmatprep.subr.bf16.mxu0 0
  %208 = vmatpush1.bf16.msra.mxu0 0
  %209 = vmatprep.mubr.bf16.mxu0 0
  %210 = vmatmul.mubr.bf16.gmra.mrb[0].mxu0 %v175
  %v211 = vpop.f32.mrb[0].mxu0
  %v212 = vadd.f32 0.0, %v211
  %v213 = vpop.f32.mrb[0].mxu0
  %v214 = vpop.f32.mrb[0].mxu0
  %v215 = vpop.f32.mrb[0].mxu0
  %216 = vdwg.mxu0
  %v217 = vadd.f32 %v91, %v212
  %v218 = vtanh.pop %v217
  %v219 = vmul.f32 %v218, %v165
  %v220 = vsel %vm52, %v219, 0.0
  %221 = vadd.xlane.f32.xlu0 %v220
  %v222 = vpop.xlane.xlu0 %221
  %223 = vrot.lane.b32.xlu0 %v99, 64
  %v224 = vpop.permute.xlu0 %223
  %v226 = vsel %vm52, %v224, 0
  %228 = vmatprep.subr.bf16.mxu0 0
  %229 = vmatpush1.bf16.msra.mxu0 %v112
  %230 = vmatprep.subr.bf16.mxu0 0
  %231 = vmatpush1.bf16.msra.mxu0 %v113
  %232 = vmatprep.subr.bf16.mxu0 0
  %233 = vmatpush1.bf16.msra.mxu0 0
  %234 = vmatprep.subr.bf16.mxu0 0
  %235 = vmatpush1.bf16.msra.mxu0 0
  %236 = vmatprep.subr.bf16.mxu0 0
  %237 = vmatpush1.bf16.msra.mxu0 0
  %238 = vmatprep.subr.bf16.mxu0 0
  %239 = vmatpush1.bf16.msra.mxu0 0
  %240 = vmatprep.subr.bf16.mxu0 0
  %241 = vmatpush1.bf16.msra.mxu0 0
  %242 = vmatprep.subr.bf16.mxu0 0
  %243 = vmatpush1.bf16.msra.mxu0 0
  %244 = vmatprep.subr.bf16.mxu0 0
  %245 = vmatpush1.bf16.msra.mxu0 0
  %246 = vmatprep.subr.bf16.mxu0 0
  %247 = vmatpush1.bf16.msra.mxu0 0
  %248 = vmatprep.subr.bf16.mxu0 0
  %249 = vmatpush1.bf16.msra.mxu0 0
  %250 = vmatprep.subr.bf16.mxu0 0
  %251 = vmatpush1.bf16.msra.mxu0 0
  %252 = vmatprep.subr.bf16.mxu0 0
  %253 = vmatpush1.bf16.msra.mxu0 0
  %254 = vmatprep.subr.bf16.mxu0 0
  %255 = vmatpush1.bf16.msra.mxu0 0
  %256 = vmatprep.subr.bf16.mxu0 0
  %257 = vmatpush1.bf16.msra.mxu0 0
  %258 = vmatprep.subr.bf16.mxu0 0
  %259 = vmatpush1.bf16.msra.mxu0 0
  %260 = vmatprep.mubr.bf16.mxu0 0
  %261 = vmatmul.mubr.bf16.gmra.mrb[0].mxu0 %v226
  %v262 = vpop.f32.mrb[0].mxu0
  %v263 = vadd.f32 0.0, %v262
  %v264 = vpop.f32.mrb[0].mxu0
  %v265 = vpop.f32.mrb[0].mxu0
  %v266 = vpop.f32.mrb[0].mxu0
  %267 = vdwg.mxu0
  %v268 = vadd.f32 %v91, %v263
  %v269 = vtanh.pop %v268
  %v270 = vmul.f32 %v269, %v165
  %v271 = vsel %vm52, %v270, 0.0
  %272 = vadd.xlane.f32.xlu0 %v271
  %v273 = vpop.xlane.xlu0 %272
  %274 = vrot.lane.b32.xlu0 %v99, 32
  %v275 = vpop.permute.xlu0 %274
  %v277 = vsel %vm52, %v275, 0
  %279 = vmatprep.subr.bf16.mxu0 0
  %280 = vmatpush1.bf16.msra.mxu0 %v112
  %281 = vmatprep.subr.bf16.mxu0 0
  %282 = vmatpush1.bf16.msra.mxu0 %v113
  %283 = vmatprep.subr.bf16.mxu0 0
  %284 = vmatpush1.bf16.msra.mxu0 0
  %285 = vmatprep.subr.bf16.mxu0 0
  %286 = vmatpush1.bf16.msra.mxu0 0
  %287 = vmatprep.subr.bf16.mxu0 0
  %288 = vmatpush1.bf16.msra.mxu0 0
  %289 = vmatprep.subr.bf16.mxu0 0
  %290 = vmatpush1.bf16.msra.mxu0 0
  %291 = vmatprep.subr.bf16.mxu0 0
  %292 = vmatpush1.bf16.msra.mxu0 0
  %293 = vmatprep.subr.bf16.mxu0 0
  %294 = vmatpush1.bf16.msra.mxu0 0
  %295 = vmatprep.subr.bf16.mxu0 0
  %296 = vmatpush1.bf16.msra.mxu0 0
  %297 = vmatprep.subr.bf16.mxu0 0
  %298 = vmatpush1.bf16.msra.mxu0 0
  %299 = vmatprep.subr.bf16.mxu0 0
  %300 = vmatpush1.bf16.msra.mxu0 0
  %301 = vmatprep.subr.bf16.mxu0 0
  %302 = vmatpush1.bf16.msra.mxu0 0
  %303 = vmatprep.subr.bf16.mxu0 0
  %304 = vmatpush1.bf16.msra.mxu0 0
  %305 = vmatprep.subr.bf16.mxu0 0
  %306 = vmatpush1.bf16.msra.mxu0 0
  %307 = vmatprep.subr.bf16.mxu0 0
  %308 = vmatpush1.bf16.msra.mxu0 0
  %309 = vmatprep.subr.bf16.mxu0 0
  %310 = vmatpush1.bf16.msra.mxu0 0
  %311 = vmatprep.mubr.bf16.mxu0 0
  %312 = vmatmul.mubr.bf16.gmra.mrb[0].mxu0 %v277
  %v313 = vpop.f32.mrb[0].mxu0
  %v314 = vadd.f32 0.0, %v313
  %v315 = vpop.f32.mrb[0].mxu0
  %v316 = vpop.f32.mrb[0].mxu0
  %v317 = vpop.f32.mrb[0].mxu0
  %318 = vdwg.mxu0
  %v319 = vadd.f32 %v91, %v314
  %v320 = vtanh.pop %v319
  %v321 = vmul.f32 %v320, %v165
  %v322 = vsel %vm52, %v321, 0.0
  %323 = vadd.xlane.f32.xlu0 %v322
  %v324 = vpop.xlane.xlu0 %323
  %v325 = vpack.c.bf16 %v97, %v97
  %v327 = vsel %vm52, %v325, 0
  %329 = vmatprep.subr.bf16.mxu0 0
  %330 = vmatpush1.bf16.msra.mxu0 %v112
  %331 = vmatprep.subr.bf16.mxu0 0
  %332 = vmatpush1.bf16.msra.mxu0 %v113
  %333 = vmatprep.subr.bf16.mxu0 0
  %334 = vmatpush1.bf16.msra.mxu0 0
  %335 = vmatprep.subr.bf16.mxu0 0
  %336 = vmatpush1.bf16.msra.mxu0 0
  %337 = vmatprep.subr.bf16.mxu0 0
  %338 = vmatpush1.bf16.msra.mxu0 0
  %339 = vmatprep.subr.bf16.mxu0 0
  %340 = vmatpush1.bf16.msra.mxu0 0
  %341 = vmatprep.subr.bf16.mxu0 0
  %342 = vmatpush1.bf16.msra.mxu0 0
  %343 = vmatprep.subr.bf16.mxu0 0
  %344 = vmatpush1.bf16.msra.mxu0 0
  %345 = vmatprep.subr.bf16.mxu0 0
  %346 = vmatpush1.bf16.msra.mxu0 0
  %347 = vmatprep.subr.bf16.mxu0 0
  %348 = vmatpush1.bf16.msra.mxu0 0
  %349 = vmatprep.subr.bf16.mxu0 0
  %350 = vmatpush1.bf16.msra.mxu0 0
  %351 = vmatprep.subr.bf16.mxu0 0
  %352 = vmatpush1.bf16.msra.mxu0 0
  %353 = vmatprep.subr.bf16.mxu0 0
  %354 = vmatpush1.bf16.msra.mxu0 0
  %355 = vmatprep.subr.bf16.mxu0 0
  %356 = vmatpush1.bf16.msra.mxu0 0
  %357 = vmatprep.subr.bf16.mxu0 0
  %358 = vmatpush1.bf16.msra.mxu0 0
  %359 = vmatprep.subr.bf16.mxu0 0
  %360 = vmatpush1.bf16.msra.mxu0 0
  %361 = vmatprep.mubr.bf16.mxu0 0
  %362 = vmatmul.mubr.bf16.gmra.mrb[0].mxu0 %v327
  %v363 = vpop.f32.mrb[0].mxu0
  %v364 = vadd.f32 0.0, %v363
  %v365 = vpop.f32.mrb[0].mxu0
  %v366 = vpop.f32.mrb[0].mxu0
  %v367 = vpop.f32.mrb[0].mxu0
  %368 = vdwg.mxu0
  %v369 = vadd.f32 %v91, %v364
  %v370 = vtanh.pop %v369
  %v371 = vmul.f32 %v370, %v165
  %v372 = vsel %vm52, %v371, 0.0
  %373 = vadd.xlane.f32.xlu0 %v372
  %v374 = vpop.xlane.xlu0 %373
  %376 = vrot.lane.b32.xlu0 %v325, 96
  %v377 = vpop.permute.xlu0 %376
  %v379 = vsel %vm52, %v377, 0
  %381 = vmatprep.subr.bf16.mxu0 0
  %382 = vmatpush1.bf16.msra.mxu0 %v112
  %383 = vmatprep.subr.bf16.mxu0 0
  %384 = vmatpush1.bf16.msra.mxu0 %v113
  %385 = vmatprep.subr.bf16.mxu0 0
  %386 = vmatpush1.bf16.msra.mxu0 0
  %387 = vmatprep.subr.bf16.mxu0 0
  %388 = vmatpush1.bf16.msra.mxu0 0
  %389 = vmatprep.subr.bf16.mxu0 0
  %390 = vmatpush1.bf16.msra.mxu0 0
  %391 = vmatprep.subr.bf16.mxu0 0
  %392 = vmatpush1.bf16.msra.mxu0 0
  %393 = vmatprep.subr.bf16.mxu0 0
  %394 = vmatpush1.bf16.msra.mxu0 0
  %395 = vmatprep.subr.bf16.mxu0 0
  %396 = vmatpush1.bf16.msra.mxu0 0
  %397 = vmatprep.subr.bf16.mxu0 0
  %398 = vmatpush1.bf16.msra.mxu0 0
  %399 = vmatprep.subr.bf16.mxu0 0
  %400 = vmatpush1.bf16.msra.mxu0 0
  %401 = vmatprep.subr.bf16.mxu0 0
  %402 = vmatpush1.bf16.msra.mxu0 0
  %403 = vmatprep.subr.bf16.mxu0 0
  %404 = vmatpush1.bf16.msra.mxu0 0
  %405 = vmatprep.subr.bf16.mxu0 0
  %406 = vmatpush1.bf16.msra.mxu0 0
  %407 = vmatprep.subr.bf16.mxu0 0
  %408 = vmatpush1.bf16.msra.mxu0 0
  %409 = vmatprep.subr.bf16.mxu0 0
  %410 = vmatpush1.bf16.msra.mxu0 0
  %411 = vmatprep.subr.bf16.mxu0 0
  %412 = vmatpush1.bf16.msra.mxu0 0
  %413 = vmatprep.mubr.bf16.mxu0 0
  %414 = vmatmul.mubr.bf16.gmra.mrb[0].mxu0 %v379
  %v415 = vpop.f32.mrb[0].mxu0
  %v416 = vadd.f32 0.0, %v415
  %v417 = vpop.f32.mrb[0].mxu0
  %v418 = vpop.f32.mrb[0].mxu0
  %v419 = vpop.f32.mrb[0].mxu0
  %420 = vdwg.mxu0
  %v421 = vadd.f32 %v91, %v416
  %v422 = vtanh.pop %v421
  %v423 = vmul.f32 %v422, %v165
  %v424 = vsel %vm52, %v423, 0.0
  %425 = vadd.xlane.f32.xlu0 %v424
  %v426 = vpop.xlane.xlu0 %425
  %vm427 = vcmask 7168
  %v428 = vsel %vm427, %v170, %v222
  %vm429 = vcmask 15360
  %v430 = vsel %vm429, %v428, %v273
  %vm431 = vcmask 23552
  %v432 = vsel %vm431, %v430, %v324
  %vm433 = vcmask 31744
  %v434 = vsel %vm433, %v432, %v374
  %vm435 = vcmask 39936
  %v436 = vsel %vm435, %v434, %v426
  %vm437 = vcmask 48128
  %v438 = vsel %vm437, %v436, -inf
  %439 = vmax.xlane.f32.xlu0 %v438
  %v440 = vpop.xlane.xlu0 %439
  %v441 = vsub.f32 %v436, %v440
  %v442 = vmul.f32 %v441, 1.442695
  %v443 = vpow.pop %v442
  %v444 = vsel %vm437, %v443, 0.0
  %445 = vadd.xlane.f32.xlu0 %v444
  %v446 = vpop.xlane.xlu0 %445
  %v447 = vrcp.pop %v446
  %v448 = vmul.f32 %v443, %v447
  %v449 = vld [vmem:[%s6] sm:$0xff]
  %v450 = vmul.f32 %v448, %v449
  %451 = vst.msk [vmem:[%s7] sm:$0xff] %vm437, %v450
  // Predicated region
  $region30: #{_lambda_.16} parent=0 // pred_check
    _
  $region31: #{_lambda_.16} parent=0 // pred_check_branch
    %453 = sbr.rel (0) target = $region33
  $region32: #{_lambda_.16} parent=0 // pred_region
    _
  $region33: #{_lambda_.16} parent=0 // pred_fallthru
    _
  // Predicated region
  $region34: #{_lambda_.16} parent=0 // pred_check
    _
  $region35: #{_lambda_.16} parent=0 // pred_check_branch
    %455 = sbr.rel (0) target = $region37
  $region36: #{_lambda_.16} parent=0 // pred_region
    _
  $region37: #{_lambda_.16} parent=0 // pred_fallthru
    _

// kernel: _lambda_.15
$region0: #{_lambda_.15}
  #allocation0 [shape = 'u32[]', space=smem, size = 0x4, offset = 0x4, fixed_abs, tag = 'smem constant byte address 0x4 - core index']
  #allocation1 [shape = 'u32[144,128]{1,0:T(1,128)}', space=vmem, size = 0x12000, scoped, tag = 'internal scratch']
  %s0 = inlined_call_operand.vmem [shape: f32[2,4,32], index: 0, kind: input, shape index: {}]
  %s1 = inlined_call_operand.vmem [shape: f32[8,32], index: 1, kind: input, shape index: {}]
  %s2 = inlined_call_operand.vmem [shape: f32[8,32], index: 2, kind: input, shape index: {}]
  %s3 = inlined_call_operand.vmem [shape: bf16[32,32], index: 3, kind: input, shape index: {}]
  %s4 = inlined_call_operand.vmem [shape: f32[1,32], index: 4, kind: input, shape index: {}]
  %s5 = inlined_call_operand.vmem [shape: bf16[32,32], index: 5, kind: input, shape index: {}]
  %s6 = inlined_call_operand.vmem [shape: f32[1,32], index: 6, kind: input, shape index: {}]
  %s7 = inlined_call_operand.vmem [shape: f32[2,4,32], index: 7, kind: output, shape index: {}]
  %s8 = sld [smem:[#allocation0]]
  $region61: #{_lambda_.15} parent=0
    _
  %s10 = ssub.s32 1, %s8
  %s11 = scalar_select 0, %s10, %s8
  loop: start=0, step=1, limit=4
  $region2: #{_lambda_.15} parent=0 // loop_pre_header
    _
  $region3: #{_lambda_.15} parent=0 // loop_header
    %s13 = sphi 0, %s17
    %p14 = scmp.ge.s32.totalorder %s13, 4
    %s23 = sphi 0, %s25
    %s26 = sphi 0, %s23
    %s27 = sphi 0, %s26
    %s43 = sphi 0, %s27
    %s47 = sphi 0, %s47
    %s49 = sphi 0, %s47
    %s50 = sphi 0, %s49
    %s64 = sphi 0, %s50
    %s68 = sphi 0, %s68
    %s70 = sphi 0, %s68
    %s71 = sphi 0, %s70
    %s85 = sphi 0, %s71
    %s89 = sphi 0, %s89
    %s91 = sphi 0, %s89
    %s92 = sphi 0, %s91
    %s106 = sphi 0, %s92
    %s110 = sphi 0, %s110
    %s112 = sphi 0, %s110
    %s113 = sphi 0, %s112
    %s127 = sphi 0, %s113
    %s131 = sphi 0, %s131
    %s133 = sphi 0, %s131
    %s134 = sphi 0, %s133
    %s148 = sphi 0, %s134
    %s152 = sphi 0, %s152
    %s154 = sphi 0, %s152
    %s155 = sphi 0, %s154
    %s169 = sphi 0, %s155
    %s175 = sphi 0, %s177
    %s178 = sphi 0, %s175
    %s179 = sphi 0, %s178
    %s195 = sphi 0, %s179
  $region4: #{_lambda_.15} parent=0 // loop_header_branch
    %16 = sbr.rel (%p14) target = $region8
  $region5: #{_lambda_.15} parent=0 // loop_body
    %s18 = ssub.s32 %s13, 1
    %s19 = ssub.s32 %s13, 2
    %s20 = sadd.s32 %s13, 1
    %s21 = ssub.s32 %s13, %s20
    %p22 = scmp.eq.s32.totalorder %s21, 0
    %s24 = sadd.s32 %s23, 1
    %s25 = scalar_select %p22, %s23, %s24
    %p28 = pneg %p22
    %p29 = scmp.eq.s32.totalorder %s13, 1
    %p30 = por %p28, %p29
    %p31 = scmp.ne.s32.totalorder %s23, %s26
    %p32 = scmp.eq.s32.totalorder %s13, 0
    %p33 = por %p31, %p32
    %p34 = scmp.ne.s32.totalorder %s23, %s26
    %p35 = scmp.eq.s32.totalorder %s18, 1
    %p36 = por %p34, %p35
    %p37 = scmp.ne.s32.totalorder %s26, %s27
    %p38 = scmp.eq.s32.totalorder %s18, 0
    %p39 = por %p37, %p38
    %p40 = scmp.ne.s32.totalorder %s26, %s27
    %p41 = scmp.eq.s32.totalorder %s19, 1
    %p42 = por %p40, %p41
    %p44 = scmp.ne.s32.totalorder %s27, %s43
    %p45 = scmp.eq.s32.totalorder %s19, 0
    %p46 = por %p44, %p45
    %s48 = sadd.s32 %s47, 1
    %p51 = scmp.eq.s32.totalorder %s13, 1
    %p52 = scmp.ne.s32.totalorder %s47, %s49
    %p53 = scmp.eq.s32.totalorder %s13, 0
    %p54 = por %p52, %p53
    %p55 = scmp.ne.s32.totalorder %s47, %s49
    %p56 = scmp.eq.s32.totalorder %s18, 1
    %p57 = por %p55, %p56
    %p58 = scmp.ne.s32.totalorder %s49, %s50
    %p59 = scmp.eq.s32.totalorder %s18, 0
    %p60 = por %p58, %p59
    %p61 = scmp.ne.s32.totalorder %s49, %s50
    %p62 = scmp.eq.s32.totalorder %s19, 1
    %p63 = por %p61, %p62
    %p65 = scmp.ne.s32.totalorder %s50, %s64
    %p66 = scmp.eq.s32.totalorder %s19, 0
    %p67 = por %p65, %p66
    %s69 = sadd.s32 %s68, 1
    %p72 = scmp.eq.s32.totalorder %s13, 1
    %p73 = scmp.ne.s32.totalorder %s68, %s70
    %p74 = scmp.eq.s32.totalorder %s13, 0
    %p75 = por %p73, %p74
    %p76 = scmp.ne.s32.totalorder %s68, %s70
    %p77 = scmp.eq.s32.totalorder %s18, 1
    %p78 = por %p76, %p77
    %p79 = scmp.ne.s32.totalorder %s70, %s71
    %p80 = scmp.eq.s32.totalorder %s18, 0
    %p81 = por %p79, %p80
    %p82 = scmp.ne.s32.totalorder %s70, %s71
    %p83 = scmp.eq.s32.totalorder %s19, 1
    %p84 = por %p82, %p83
    %p86 = scmp.ne.s32.totalorder %s71, %s85
    %p87 = scmp.eq.s32.totalorder %s19, 0
    %p88 = por %p86, %p87
    %s90 = sadd.s32 %s89, 1
    %p93 = scmp.eq.s32.totalorder %s13, 1
    %p94 = scmp.ne.s32.totalorder %s89, %s91
    %p95 = scmp.eq.s32.totalorder %s13, 0
    %p96 = por %p94, %p95
    %p97 = scmp.ne.s32.totalorder %s89, %s91
    %p98 = scmp.eq.s32.totalorder %s18, 1
    %p99 = por %p97, %p98
    %p100 = scmp.ne.s32.totalorder %s91, %s92
    %p101 = scmp.eq.s32.totalorder %s18, 0
    %p102 = por %p100, %p101
    %p103 = scmp.ne.s32.totalorder %s91, %s92
    %p104 = scmp.eq.s32.totalorder %s19, 1
    %p105 = por %p103, %p104
    %p107 = scmp.ne.s32.totalorder %s92, %s106
    %p108 = scmp.eq.s32.totalorder %s19, 0
    %p109 = por %p107, %p108
    %s111 = sadd.s32 %s110, 1
    %p114 = scmp.eq.s32.totalorder %s13, 1
    %p115 = scmp.ne.s32.totalorder %s110, %s112
    %p116 = scmp.eq.s32.totalorder %s13, 0
    %p117 = por %p115, %p116
    %p118 = scmp.ne.s32.totalorder %s110, %s112
    %p119 = scmp.eq.s32.totalorder %s18, 1
    %p120 = por %p118, %p119
    %p121 = scmp.ne.s32.totalorder %s112, %s113
    %p122 = scmp.eq.s32.totalorder %s18, 0
    %p123 = por %p121, %p122
    %p124 = scmp.ne.s32.totalorder %s112, %s113
    %p125 = scmp.eq.s32.totalorder %s19, 1
    %p126 = por %p124, %p125
    %p128 = scmp.ne.s32.totalorder %s113, %s127
    %p129 = scmp.eq.s32.totalorder %s19, 0
    %p130 = por %p128, %p129
    %s132 = sadd.s32 %s131, 1
    %p135 = scmp.eq.s32.totalorder %s13, 1
    %p136 = scmp.ne.s32.totalorder %s131, %s133
    %p137 = scmp.eq.s32.totalorder %s13, 0
    %p138 = por %p136, %p137
    %p139 = scmp.ne.s32.totalorder %s131, %s133
    %p140 = scmp.eq.s32.totalorder %s18, 1
    %p141 = por %p139, %p140
    %p142 = scmp.ne.s32.totalorder %s133, %s134
    %p143 = scmp.eq.s32.totalorder %s18, 0
    %p144 = por %p142, %p143
    %p145 = scmp.ne.s32.totalorder %s133, %s134
    %p146 = scmp.eq.s32.totalorder %s19, 1
    %p147 = por %p145, %p146
    %p149 = scmp.ne.s32.totalorder %s134, %s148
    %p150 = scmp.eq.s32.totalorder %s19, 0
    %p151 = por %p149, %p150
    %s153 = sadd.s32 %s152, 1
    %p156 = scmp.eq.s32.totalorder %s13, 1
    %p157 = scmp.ne.s32.totalorder %s152, %s154
    %p158 = scmp.eq.s32.totalorder %s13, 0
    %p159 = por %p157, %p158
    %p160 = scmp.ne.s32.totalorder %s152, %s154
    %p161 = scmp.eq.s32.totalorder %s18, 1
    %p162 = por %p160, %p161
    %p163 = scmp.ne.s32.totalorder %s154, %s155
    %p164 = scmp.eq.s32.totalorder %s18, 0
    %p165 = por %p163, %p164
    %p166 = scmp.ne.s32.totalorder %s154, %s155
    %p167 = scmp.eq.s32.totalorder %s19, 1
    %p168 = por %p166, %p167
    %p170 = scmp.ne.s32.totalorder %s155, %s169
    %p171 = scmp.eq.s32.totalorder %s19, 0
    %p172 = por %p170, %p171
    %s173 = ssub.s32 %s13, %s20
    %p174 = scmp.eq.s32.totalorder %s173, 0
    %s176 = sadd.s32 %s175, 1
    %s177 = scalar_select %p174, %s175, %s176
    %p180 = pneg %p174
    %p181 = scmp.eq.s32.totalorder %s13, 1
    %p182 = por %p180, %p181
    %p183 = scmp.ne.s32.totalorder %s175, %s178
    %p184 = scmp.eq.s32.totalorder %s13, 0
    %p185 = por %p183, %p184
    %p186 = scmp.ne.s32.totalorder %s175, %s178
    %p187 = scmp.eq.s32.totalorder %s18, 1
    %p188 = por %p186, %p187
    %p189 = scmp.ne.s32.totalorder %s178, %s179
    %p190 = scmp.eq.s32.totalorder %s18, 0
    %p191 = por %p189, %p190
    %p192 = scmp.ne.s32.totalorder %s178, %s179
    %p193 = scmp.eq.s32.totalorder %s19, 1
    %p194 = por %p192, %p193
    %p196 = scmp.ne.s32.totalorder %s179, %s195
    %p197 = scmp.eq.s32.totalorder %s19, 0
    %p198 = por %p196, %p197
    %p199 = scmp.le.s32.totalorder 1, %s13
    %p200 = scmp.lt.s32.totalorder %s13, 3
    %p201 = pnand %p199, %p200
    %p202 = pneg %p201
    // Predicated region
    $region9: #{_lambda_.15} parent=5 // pred_check
      _
    $region10: #{_lambda_.15} parent=5 // pred_check_branch
      %204 = sbr.rel (%p201) target = $region12
    $region11: #{_lambda_.15} parent=5 // pred_region
      %s205 = ssub.s32 %s13, 1
      // Predicated region
      $region13: #{_lambda_.15} parent=11 // pred_check
        %p206 = pneg %p60
      $region14: #{_lambda_.15} parent=11 // pred_check_branch
        %208 = sbr.rel (%p206) target = $region16
      $region15: #{_lambda_.15} parent=11 // pred_region
        _
      $region16: #{_lambda_.15} parent=11 // pred_fallthru
        _
      // Predicated region
      $region17: #{_lambda_.15} parent=11 // pred_check
        %p209 = pneg %p81
      $region18: #{_lambda_.15} parent=11 // pred_check_branch
        %211 = sbr.rel (%p209) target = $region20
      $region19: #{_lambda_.15} parent=11 // pred_region
        _
      $region20: #{_lambda_.15} parent=11 // pred_fallthru
        _
      // Predicated region
      $region21: #{_lambda_.15} parent=11 // pred_check
        %p212 = pneg %p102
      $region22: #{_lambda_.15} parent=11 // pred_check_branch
        %214 = sbr.rel (%p212) target = $region24
      $region23: #{_lambda_.15} parent=11 // pred_region
        _
      $region24: #{_lambda_.15} parent=11 // pred_fallthru
        _
      // Predicated region
      $region25: #{_lambda_.15} parent=11 // pred_check
        %p215 = pneg %p123
      $region26: #{_lambda_.15} parent=11 // pred_check_branch
        %217 = sbr.rel (%p215) target = $region28
      $region27: #{_lambda_.15} parent=11 // pred_region
        _
      $region28: #{_lambda_.15} parent=11 // pred_fallthru
        _
      // Predicated region
      $region29: #{_lambda_.15} parent=11 // pred_check
        %p218 = pneg %p144
      $region30: #{_lambda_.15} parent=11 // pred_check_branch
        %220 = sbr.rel (%p218) target = $region32
      $region31: #{_lambda_.15} parent=11 // pred_region
        _
      $region32: #{_lambda_.15} parent=11 // pred_fallthru
        _
      // Predicated region
      $region33: #{_lambda_.15} parent=11 // pred_check
        %p221 = pneg %p165
      $region34: #{_lambda_.15} parent=11 // pred_check_branch
        %223 = sbr.rel (%p221) target = $region36
      $region35: #{_lambda_.15} parent=11 // pred_region
        _
      $region36: #{_lambda_.15} parent=11 // pred_fallthru
        _
    $region12: #{_lambda_.15} parent=5 // pred_fallthru
      _
    %p224 = scmp.lt.s32.totalorder %s13, 2
    // Predicated region
    $region37: #{_lambda_.15} parent=5 // pred_check
      %p225 = pneg %p224
    $region38: #{_lambda_.15} parent=5 // pred_check_branch
      %227 = sbr.rel (%p225) target = $region40
    $region39: #{_lambda_.15} parent=5 // pred_region
      // Predicated region
      $region41: #{_lambda_.15} parent=39 // pred_check
        %p228 = pneg %p33
      $region42: #{_lambda_.15} parent=39 // pred_check_branch
        %230 = sbr.rel (%p228) target = $region44
      $region43: #{_lambda_.15} parent=39 // pred_region
        %p231 = scmp.lt.s32.totalorder %s13, 1
        %s232 = scalar_select %p231, %s13, 1
        %s233 = smul.addr %s232, 4
        %s234 = scalar_lea.vmem %s0, %s233
      $region44: #{_lambda_.15} parent=39 // pred_fallthru
        _
    $region40: #{_lambda_.15} parent=5 // pred_fallthru
      _
    %p235 = scmp.le.s32.totalorder 1, %s13
    %p236 = scmp.lt.s32.totalorder %s13, 3
    %p237 = pnand %p235, %p236
    %p238 = pneg %p237
    // Predicated region
    $region45: #{_lambda_.15} parent=5 // pred_check
      _
    $region46: #{_lambda_.15} parent=5 // pred_check_branch
      %240 = sbr.rel (%p237) target = $region48
    $region47: #{_lambda_.15} parent=5 // pred_region
      %s241 = ssub.s32 %s13, 1
      %p242 = scmp.lt.s32.totalorder %s18, 1
      %s243 = scalar_select %p242, %s18, 1
      %s244 = smul.addr %s243, 4
      %s245 = scalar_lea.vmem %s0, %s244
      %p246 = pneg %p39
      %p247 = pneg %p36
      %p248 = pneg %p60
      %p249 = pneg %p57
      %p250 = pneg %p81
      %p251 = pneg %p78
      %p252 = pneg %p102
      %p253 = pneg %p99
      %p254 = pneg %p123
      %p255 = pneg %p120
      %p256 = pneg %p144
      %p257 = pneg %p141
      %p258 = pneg %p165
      %p259 = pneg %p162
      %p260 = pneg %p191
      %p261 = pneg %p188
      %p262 = scmp.lt.s32.totalorder %s18, 1
      %s263 = scalar_select %p262, %s18, 1
      %s264 = smul.addr %s263, 4
      %s265 = scalar_lea.vmem %s7, %s264
      %p266 = scmp.lt.s32.totalorder %s18, 1
      %s267 = scalar_select %p266, %s18, 1
      %s268 = smul.addr %s267, 4
      %s269 = scalar_lea.vmem %s0, %s268
      %p270 = scmp.lt.s32.totalorder %s18, 1
      %s271 = scalar_select %p270, %s18, 1
      %s272 = smul.addr %s271, 4
      %s273 = scalar_lea.vmem %s7, %s272
      %v275 = vld [vmem:[%s269] sm:$0xf]
      %v276 = vpack.c.bf16 %v275, %v275
      %v277 = vld [vmem:[%s3] sm:$0xf]
      %v278 = vld [vmem:[%s3 + $0x4] sm:$0xf]
      %v279 = vld [vmem:[%s3 + $0x8] sm:$0xf]
      %v280 = vld [vmem:[%s3 + $0xc] sm:$0xf]
      %v281 = vld [vmem:[%s4] sm:$0x1]
      %v283 = vlaneseq
      %v284 = vshrl.u32 %v283, 7
      %v285 = vsub.s32 0, %v284
      %v286 = vrot.slane %v281, %v285
      %v292 = vunpack.c.l.b16 %v277
      %v293 = vunpack.c.l.b16 %v278
      %v294 = vunpack.c.l.b16 %v279
      %v295 = vunpack.c.l.b16 %v280
      %v296 = vpack.c.b16 %v293, %v292
      %v297 = vpack.c.b16 %v295, %v294
      %vm300 = vcmask 261120
      %v302 = vsel %vm300, %v276, 0
      %304 = vmatprep.subr.bf16.mxu0 0
      %305 = vmatpush1.bf16.msra.mxu0 %v296
      %306 = vmatprep.subr.bf16.mxu0 0
      %307 = vmatpush1.bf16.msra.mxu0 %v297
      %308 = vmatprep.subr.bf16.mxu0 0
      %309 = vmatpush1.bf16.msra.mxu0 0
      %310 = vmatprep.subr.bf16.mxu0 0
      %311 = vmatpush1.bf16.msra.mxu0 0
      %312 = vmatprep.subr.bf16.mxu0 0
      %313 = vmatpush1.bf16.msra.mxu0 0
      %314 = vmatprep.subr.bf16.mxu0 0
      %315 = vmatpush1.bf16.msra.mxu0 0
      %316 = vmatprep.subr.bf16.mxu0 0
      %317 = vmatpush1.bf16.msra.mxu0 0
      %318 = vmatprep.subr.bf16.mxu0 0
      %319 = vmatpush1.bf16.msra.mxu0 0
      %320 = vmatprep.subr.bf16.mxu0 0
      %321 = vmatpush1.bf16.msra.mxu0 0
      %322 = vmatprep.subr.bf16.mxu0 0
      %323 = vmatpush1.bf16.msra.mxu0 0
      %324 = vmatprep.subr.bf16.mxu0 0
      %325 = vmatpush1.bf16.msra.mxu0 0
      %326 = vmatprep.subr.bf16.mxu0 0
      %327 = vmatpush1.bf16.msra.mxu0 0
      %328 = vmatprep.subr.bf16.mxu0 0
      %329 = vmatpush1.bf16.msra.mxu0 0
      %330 = vmatprep.subr.bf16.mxu0 0
      %331 = vmatpush1.bf16.msra.mxu0 0
      %332 = vmatprep.subr.bf16.mxu0 0
      %333 = vmatpush1.bf16.msra.mxu0 0
      %334 = vmatprep.subr.bf16.mxu0 0
      %335 = vmatpush1.bf16.msra.mxu0 0
      %336 = vmatprep.mubr.bf16.mxu0 0
      %337 = vmatmul.mubr.bf16.gmra.mrb[0].mxu0 %v302
      %v338 = vpop.f32.mrb[0].mxu0
      %v339 = vadd.f32 %v286, %v338
      %v340 = vpop.f32.mrb[0].mxu0
      %v341 = vpop.f32.mrb[0].mxu0
      %v342 = vpop.f32.mrb[0].mxu0
      %343 = vdwg.mxu0
      %v344 = vld [vmem:[%s1] sm:$0xff]
      %v345 = vpack.c.bf16 %v344, %v344
      %v346 = vld [vmem:[%s2] sm:$0xff]
      %v347 = vpack.c.bf16 %v346, %v346
      %v348 = vpack.c.bf16 %v339, %v339
      %vm349 = vcmask 64512
      %v351 = vsel %vm349, %v348, 0
      %v354 = vsel %vm349, %v345, 0
      %356 = vmatprep.subr.bf16.mxu0 0
      %357 = vmatpush1.bf16.xpose.msra.mxu0 %v354
      %358 = vmatprep.subr.bf16.mxu0 0
      %359 = vmatpush1.bf16.xpose.msra.mxu0 0
      %360 = vmatprep.subr.bf16.mxu0 0
      %361 = vmatpush1.bf16.xpose.msra.mxu0 0
      %362 = vmatprep.subr.bf16.mxu0 0
      %363 = vmatpush1.bf16.xpose.msra.mxu0 0
      %364 = vmatprep.subr.bf16.mxu0 0
      %365 = vmatpush1.bf16.xpose.msra.mxu0 0
      %366 = vmatprep.subr.bf16.mxu0 0
      %367 = vmatpush1.bf16.xpose.msra.mxu0 0
      %368 = vmatprep.subr.bf16.mxu0 0
      %369 = vmatpush1.bf16.xpose.msra.mxu0 0
      %370 = vmatprep.subr.bf16.mxu0 0
      %371 = vmatpush1.bf16.xpose.msra.mxu0 0
      %372 = vmatprep.subr.bf16.mxu0 0
      %373 = vmatpush1.bf16.xpose.msra.mxu0 0
      %374 = vmatprep.subr.bf16.mxu0 0
      %375 = vmatpush1.bf16.xpose.msra.mxu0 0
      %376 = vmatprep.subr.bf16.mxu0 0
      %377 = vmatpush1.bf16.xpose.msra.mxu0 0
      %378 = vmatprep.subr.bf16.mxu0 0
      %379 = vmatpush1.bf16.xpose.msra.mxu0 0
      %380 = vmatprep.subr.bf16.mxu0 0
      %381 = vmatpush1.bf16.xpose.msra.mxu0 0
      %382 = vmatprep.subr.bf16.mxu0 0
      %383 = vmatpush1.bf16.xpose.msra.mxu0 0
      %384 = vmatprep.subr.bf16.mxu0 0
      %385 = vmatpush1.bf16.xpose.msra.mxu0 0
      %386 = vmatprep.subr.bf16.mxu0 0
      %387 = vmatpush1.bf16.xpose.msra.mxu0 0
      %388 = vmatprep.mubr.bf16.mxu0 0
      %389 = vmatmul.mubr.bf16.gmra.mrb[0].mxu0 %v351
      %v390 = vpop.f32.mrb[0].mxu0
      %v391 = vadd.f32 0.0, %v390
      %v392 = vpop.f32.mrb[0].mxu0
      %v393 = vpop.f32.mrb[0].mxu0
      %v394 = vpop.f32.mrb[0].mxu0
      %395 = vdwg.mxu0
      %v396 = vmul.f32 %v391, 0.35355338
      %vm397 = vcmask 60416
      %v398 = vsel %vm397, %v396, -inf
      %399 = vmax.xlane.f32.xlu0 %v398
      %v400 = vpop.xlane.xlu0 %399
      %v401 = vsub.f32 %v396, %v400
      %v402 = vmul.f32 %v401, 1.442695
      %v403 = vpow.pop %v402
      %v404 = vsel %vm397, %v403, 0.0
      %405 = vadd.xlane.f32.xlu0 %v404
      %v406 = vpop.xlane.xlu0 %405
      %v407 = vrcp.pop %v406
      %v408 = vmul.f32 %v403, %v407
      %v409 = vpack.c.bf16 %v408, %v408
      %v411 = vsel %vm349, %v409, 0
      %vm413 = vcmask 1043456
      %v415 = vsel %vm413, %v347, 0
      %417 = vmatprep.subr.bf16.mxu0 0
      %418 = vmatpush1.bf16.msra.mxu0 %v415
      %419 = vmatprep.subr.bf16.mxu0 0
      %420 = vmatpush1.bf16.msra.mxu0 0
      %421 = vmatprep.subr.bf16.mxu0 0
      %422 = vmatpush1.bf16.msra.mxu0 0
      %423 = vmatprep.subr.bf16.mxu0 0
      %424 = vmatpush1.bf16.msra.mxu0 0
      %425 = vmatprep.subr.bf16.mxu0 0
      %426 = vmatpush1.bf16.msra.mxu0 0
      %427 = vmatprep.subr.bf16.mxu0 0
      %428 = vmatpush1.bf16.msra.mxu0 0
      %429 = vmatprep.subr.bf16.mxu0 0
      %430 = vmatpush1.bf16.msra.mxu0 0
      %431 = vmatprep.subr.bf16.mxu0 0
      %432 = vmatpush1.bf16.msra.mxu0 0
      %433 = vmatprep.subr.bf16.mxu0 0
      %434 = vmatpush1.bf16.msra.mxu0 0
      %435 = vmatprep.subr.bf16.mxu0 0
      %436 = vmatpush1.bf16.msra.mxu0 0
      %437 = vmatprep.subr.bf16.mxu0 0
      %438 = vmatpush1.bf16.msra.mxu0 0
      %439 = vmatprep.subr.bf16.mxu0 0
      %440 = vmatpush1.bf16.msra.mxu0 0
      %441 = vmatprep.subr.bf16.mxu0 0
      %442 = vmatpush1.bf16.msra.mxu0 0
      %443 = vmatprep.subr.bf16.mxu0 0
      %444 = vmatpush1.bf16.msra.mxu0 0
      %445 = vmatprep.subr.bf16.mxu0 0
      %446 = vmatpush1.bf16.msra.mxu0 0
      %447 = vmatprep.subr.bf16.mxu0 0
      %448 = vmatpush1.bf16.msra.mxu0 0
      %449 = vmatprep.mubr.bf16.mxu0 0
      %450 = vmatmul.mubr.bf16.gmra.mrb[0].mxu0 %v411
      %v451 = vpop.f32.mrb[0].mxu0
      %v452 = vadd.f32 0.0, %v451
      %v453 = vpop.f32.mrb[0].mxu0
      %v454 = vpop.f32.mrb[0].mxu0
      %v455 = vpop.f32.mrb[0].mxu0
      %456 = vdwg.mxu0
      %v457 = vpack.c.bf16 %v452, %v452
      %v458 = vld [vmem:[%s5] sm:$0xf]
      %460 = vrot.lane.b32.xlu0 %v348, 120
      %v461 = vpop.permute.xlu0 %460
      %463 = vrot.lane.b32.xlu0 %v345, 120
      %v464 = vpop.permute.xlu0 %463
      %v466 = vsel %vm349, %v461, 0
      %v469 = vsel %vm349, %v464, 0
      %471 = vmatprep.subr.bf16.mxu0 0
      %472 = vmatpush1.bf16.xpose.msra.mxu0 %v469
      %473 = vmatprep.subr.bf16.mxu0 0
      %474 = vmatpush1.bf16.xpose.msra.mxu0 0
      %475 = vmatprep.subr.bf16.mxu0 0
      %476 = vmatpush1.bf16.xpose.msra.mxu0 0
      %477 = vmatprep.subr.bf16.mxu0 0
      %478 = vmatpush1.bf16.xpose.msra.mxu0 0
      %479 = vmatprep.subr.bf16.mxu0 0
      %480 = vmatpush1.bf16.xpose.msra.mxu0 0
      %481 = vmatprep.subr.bf16.mxu0 0
      %482 = vmatpush1.bf16.xpose.msra.mxu0 0
      %483 = vmatprep.subr.bf16.mxu0 0
      %484 = vmatpush1.bf16.xpose.msra.mxu0 0
      %485 = vmatprep.subr.bf16.mxu0 0
      %486 = vmatpush1.bf16.xpose.msra.mxu0 0
      %487 = vmatprep.subr.bf16.mxu0 0
      %488 = vmatpush1.bf16.xpose.msra.mxu0 0
      %489 = vmatprep.subr.bf16.mxu0 0
      %490 = vmatpush1.bf16.xpose.msra.mxu0 0
      %491 = vmatprep.subr.bf16.mxu0 0
      %492 = vmatpush1.bf16.xpose.msra.mxu0 0
      %493 = vmatprep.subr.bf16.mxu0 0
      %494 = vmatpush1.bf16.xpose.msra.mxu0 0
      %495 = vmatprep.subr.bf16.mxu0 0
      %496 = vmatpush1.bf16.xpose.msra.mxu0 0
      %497 = vmatprep.subr.bf16.mxu0 0
      %498 = vmatpush1.bf16.xpose.msra.mxu0 0
      %499 = vmatprep.subr.bf16.mxu0 0
      %500 = vmatpush1.bf16.xpose.msra.mxu0 0
      %501 = vmatprep.subr.bf16.mxu0 0
      %502 = vmatpush1.bf16.xpose.msra.mxu0 0
      %503 = vmatprep.mubr.bf16.mxu0 0
      %504 = vmatmul.mubr.bf16.gmra.mrb[0].mxu0 %v466
      %v505 = vpop.f32.mrb[0].mxu0
      %v506 = vadd.f32 0.0, %v505
      %v507 = vpop.f32.mrb[0].mxu0
      %v508 = vpop.f32.mrb[0].mxu0
      %v509 = vpop.f32.mrb[0].mxu0
      %510 = vdwg.mxu0
      %v511 = vmul.f32 %v506, 0.35355338
      %v512 = vsel %vm397, %v511, -inf
      %513 = vmax.xlane.f32.xlu0 %v512
      %v514 = vpop.xlane.xlu0 %513
      %v515 = vsub.f32 %v511, %v514
      %v516 = vmul.f32 %v515, 1.442695
      %v517 = vpow.pop %v516
      %v518 = vsel %vm397, %v517, 0.0
      %519 = vadd.xlane.f32.xlu0 %v518
      %v520 = vpop.xlane.xlu0 %519
      %v521 = vrcp.pop %v520
      %v522 = vmul.f32 %v517, %v521
      %v523 = vpack.c.bf16 %v522, %v522
      %525 = vrot.lane.b32.xlu0 %v347, 120
      %v526 = vpop.permute.xlu0 %525
      %v528 = vsel %vm349, %v523, 0
      %v531 = vsel %vm413, %v526, 0
      %533 = vmatprep.subr.bf16.mxu0 0
      %534 = vmatpush1.bf16.msra.mxu0 %v531
      %535 = vmatprep.subr.bf16.mxu0 0
      %536 = vmatpush1.bf16.msra.mxu0 0
      %537 = vmatprep.subr.bf16.mxu0 0
      %538 = vmatpush1.bf16.msra.mxu0 0
      %539 = vmatprep.subr.bf16.mxu0 0
      %540 = vmatpush1.bf16.msra.mxu0 0
      %541 = vmatprep.subr.bf16.mxu0 0
      %542 = vmatpush1.bf16.msra.mxu0 0
      %543 = vmatprep.subr.bf16.mxu0 0
      %544 = vmatpush1.bf16.msra.mxu0 0
      %545 = vmatprep.subr.bf16.mxu0 0
      %546 = vmatpush1.bf16.msra.mxu0 0
      %547 = vmatprep.subr.bf16.mxu0 0
      %548 = vmatpush1.bf16.msra.mxu0 0
      %549 = vmatprep.subr.bf16.mxu0 0
      %550 = vmatpush1.bf16.msra.mxu0 0
      %551 = vmatprep.subr.bf16.mxu0 0
      %552 = vmatpush1.bf16.msra.mxu0 0
      %553 = vmatprep.subr.bf16.mxu0 0
      %554 = vmatpush1.bf16.msra.mxu0 0
      %555 = vmatprep.subr.bf16.mxu0 0
      %556 = vmatpush1.bf16.msra.mxu0 0
      %557 = vmatprep.subr.bf16.mxu0 0
      %558 = vmatpush1.bf16.msra.mxu0 0
      %559 = vmatprep.subr.bf16.mxu0 0
      %560 = vmatpush1.bf16.msra.mxu0 0
      %561 = vmatprep.subr.bf16.mxu0 0
      %562 = vmatpush1.bf16.msra.mxu0 0
      %563 = vmatprep.subr.bf16.mxu0 0
      %564 = vmatpush1.bf16.msra.mxu0 0
      %565 = vmatprep.mubr.bf16.mxu0 0
      %566 = vmatmul.mubr.bf16.gmra.mrb[0].mxu0 %v528
      %v567 = vpop.f32.mrb[0].mxu0
      %v568 = vadd.f32 0.0, %v567
      %v569 = vpop.f32.mrb[0].mxu0
      %v570 = vpop.f32.mrb[0].mxu0
      %v571 = vpop.f32.mrb[0].mxu0
      %572 = vdwg.mxu0
      %v573 = vpack.c.bf16 %v568, %v568
      %v574 = vld [vmem:[%s5 + $0x4] sm:$0xf]
      %v576 = vsel %vm349, %v573, 0
      %v579 = vsel %vm413, %v574, 0
      %581 = vmatprep.subr.bf16.mxu0 0
      %582 = vmatpush1.bf16.msra.mxu0 %v579
      %583 = vmatprep.subr.bf16.mxu0 0
      %584 = vmatpush1.bf16.msra.mxu0 0
      %585 = vmatprep.subr.bf16.mxu0 0
      %586 = vmatpush1.bf16.msra.mxu0 0
      %587 = vmatprep.subr.bf16.mxu0 0
      %588 = vmatpush1.bf16.msra.mxu0 0
      %589 = vmatprep.subr.bf16.mxu0 0
      %590 = vmatpush1.bf16.msra.mxu0 0
      %591 = vmatprep.subr.bf16.mxu0 0
      %592 = vmatpush1.bf16.msra.mxu0 0
      %593 = vmatprep.subr.bf16.mxu0 0
      %594 = vmatpush1.bf16.msra.mxu0 0
      %595 = vmatprep.subr.bf16.mxu0 0
      %596 = vmatpush1.bf16.msra.mxu0 0
      %597 = vmatprep.subr.bf16.mxu0 0
      %598 = vmatpush1.bf16.msra.mxu0 0
      %599 = vmatprep.subr.bf16.mxu0 0
      %600 = vmatpush1.bf16.msra.mxu0 0
      %601 = vmatprep.subr.bf16.mxu0 0
      %602 = vmatpush1.bf16.msra.mxu0 0
      %603 = vmatprep.subr.bf16.mxu0 0
      %604 = vmatpush1.bf16.msra.mxu0 0
      %605 = vmatprep.subr.bf16.mxu0 0
      %606 = vmatpush1.bf16.msra.mxu0 0
      %607 = vmatprep.subr.bf16.mxu0 0
      %608 = vmatpush1.bf16.msra.mxu0 0
      %609 = vmatprep.subr.bf16.mxu0 0
      %610 = vmatpush1.bf16.msra.mxu0 0
      %611 = vmatprep.subr.bf16.mxu0 0
      %612 = vmatpush1.bf16.msra.mxu0 0
      %613 = vmatprep.mubr.bf16.mxu0 0
      %614 = vmatmul.mubr.bf16.gmra.mrb[0].mxu0 %v576
      %v615 = vpop.f32.mrb[0].mxu0
      %v616 = vadd.f32 0.0, %v615
      %v617 = vpop.f32.mrb[0].mxu0
      %v618 = vpop.f32.mrb[0].mxu0
      %v619 = vpop.f32.mrb[0].mxu0
      %620 = vdwg.mxu0
      %v622 = vsel %vm349, %v457, 0
      %v625 = vsel %vm413, %v458, 0
      %627 = vmatprep.subr.bf16.mxu0 0
      %628 = vmatpush1.bf16.msra.mxu0 %v625
      %629 = vmatprep.subr.bf16.mxu0 0
      %630 = vmatpush1.bf16.msra.mxu0 0
      %631 = vmatprep.subr.bf16.mxu0 0
      %632 = vmatpush1.bf16.msra.mxu0 0
      %633 = vmatprep.subr.bf16.mxu0 0
      %634 = vmatpush1.bf16.msra.mxu0 0
      %635 = vmatprep.subr.bf16.mxu0 0
      %636 = vmatpush1.bf16.msra.mxu0 0
      %637 = vmatprep.subr.bf16.mxu0 0
      %638 = vmatpush1.bf16.msra.mxu0 0
      %639 = vmatprep.subr.bf16.mxu0 0
      %640 = vmatpush1.bf16.msra.mxu0 0
      %641 = vmatprep.subr.bf16.mxu0 0
      %642 = vmatpush1.bf16.msra.mxu0 0
      %643 = vmatprep.subr.bf16.mxu0 0
      %644 = vmatpush1.bf16.msra.mxu0 0
      %645 = vmatprep.subr.bf16.mxu0 0
      %646 = vmatpush1.bf16.msra.mxu0 0
      %647 = vmatprep.subr.bf16.mxu0 0
      %648 = vmatpush1.bf16.msra.mxu0 0
      %649 = vmatprep.subr.bf16.mxu0 0
      %650 = vmatpush1.bf16.msra.mxu0 0
      %651 = vmatprep.subr.bf16.mxu0 0
      %652 = vmatpush1.bf16.msra.mxu0 0
      %653 = vmatprep.subr.bf16.mxu0 0
      %654 = vmatpush1.bf16.msra.mxu0 0
      %655 = vmatprep.subr.bf16.mxu0 0
      %656 = vmatpush1.bf16.msra.mxu0 0
      %657 = vmatprep.subr.bf16.mxu0 0
      %658 = vmatpush1.bf16.msra.mxu0 0
      %659 = vmatprep.mubr.bf16.mxu0 0
      %660 = vmatmul.mubr.bf16.gmra.mrb[0].mxu0 %v622
      %v661 = vpop.f32.mrb[0].mxu0
      %v662 = vadd.f32 %v616, %v661
      %v663 = vpop.f32.mrb[0].mxu0
      %v664 = vpop.f32.mrb[0].mxu0
      %v665 = vpop.f32.mrb[0].mxu0
      %666 = vdwg.mxu0
      %667 = vrot.lane.b32.xlu0 %v348, 112
      %v668 = vpop.permute.xlu0 %667
      %669 = vrot.lane.b32.xlu0 %v345, 112
      %v670 = vpop.permute.xlu0 %669
      %v672 = vsel %vm349, %v668, 0
      %v675 = vsel %vm349, %v670, 0
      %677 = vmatprep.subr.bf16.mxu0 0
      %678 = vmatpush1.bf16.xpose.msra.mxu0 %v675
      %679 = vmatprep.subr.bf16.mxu0 0
      %680 = vmatpush1.bf16.xpose.msra.mxu0 0
      %681 = vmatprep.subr.bf16.mxu0 0
      %682 = vmatpush1.bf16.xpose.msra.mxu0 0
      %683 = vmatprep.subr.bf16.mxu0 0
      %684 = vmatpush1.bf16.xpose.msra.mxu0 0
      %685 = vmatprep.subr.bf16.mxu0 0
      %686 = vmatpush1.bf16.xpose.msra.mxu0 0
      %687 = vmatprep.subr.bf16.mxu0 0
      %688 = vmatpush1.bf16.xpose.msra.mxu0 0
      %689 = vmatprep.subr.bf16.mxu0 0
      %690 = vmatpush1.bf16.xpose.msra.mxu0 0
      %691 = vmatprep.subr.bf16.mxu0 0
      %692 = vmatpush1.bf16.xpose.msra.mxu0 0
      %693 = vmatprep.subr.bf16.mxu0 0
      %694 = vmatpush1.bf16.xpose.msra.mxu0 0
      %695 = vmatprep.subr.bf16.mxu0 0
      %696 = vmatpush1.bf16.xpose.msra.mxu0 0
      %697 = vmatprep.subr.bf16.mxu0 0
      %698 = vmatpush1.bf16.xpose.msra.mxu0 0
      %699 = vmatprep.subr.bf16.mxu0 0
      %700 = vmatpush1.bf16.xpose.msra.mxu0 0
      %701 = vmatprep.subr.bf16.mxu0 0
      %702 = vmatpush1.bf16.xpose.msra.mxu0 0
      %703 = vmatprep.subr.bf16.mxu0 0
      %704 = vmatpush1.bf16.xpose.msra.mxu0 0
      %705 = vmatprep.subr.bf16.mxu0 0
      %706 = vmatpush1.bf16.xpose.msra.mxu0 0
      %707 = vmatprep.subr.bf16.mxu0 0
      %708 = vmatpush1.bf16.xpose.msra.mxu0 0
      %709 = vmatprep.mubr.bf16.mxu0 0
      %710 = vmatmul.mubr.bf16.gmra.mrb[0].mxu0 %v672
      %v711 = vpop.f32.mrb[0].mxu0
      %v712 = vadd.f32 0.0, %v711
      %v713 = vpop.f32.mrb[0].mxu0
      %v714 = vpop.f32.mrb[0].mxu0
      %v715 = vpop.f32.mrb[0].mxu0
      %716 = vdwg.mxu0
      %v717 = vmul.f32 %v712, 0.35355338
      %v718 = vsel %vm397, %v717, -inf
      %719 = vmax.xlane.f32.xlu0 %v718
      %v720 = vpop.xlane.xlu0 %719
      %v721 = vsub.f32 %v717, %v720
      %v722 = vmul.f32 %v721, 1.442695
      %v723 = vpow.pop %v722
      %v724 = vsel %vm397, %v723, 0.0
      %725 = vadd.xlane.f32.xlu0 %v724
      %v726 = vpop.xlane.xlu0 %725
      %v727 = vrcp.pop %v726
      %v728 = vmul.f32 %v723, %v727
      %v729 = vpack.c.bf16 %v728, %v728
      %730 = vrot.lane.b32.xlu0 %v347, 112
      %v731 = vpop.permute.xlu0 %730
      %v733 = vsel %vm349, %v729, 0
      %v736 = vsel %vm413, %v731, 0
      %738 = vmatprep.subr.bf16.mxu0 0
      %739 = vmatpush1.bf16.msra.mxu0 %v736
      %740 = vmatprep.subr.bf16.mxu0 0
      %741 = vmatpush1.bf16.msra.mxu0 0
      %742 = vmatprep.subr.bf16.mxu0 0
      %743 = vmatpush1.bf16.msra.mxu0 0
      %744 = vmatprep.subr.bf16.mxu0 0
      %745 = vmatpush1.bf16.msra.mxu0 0
      %746 = vmatprep.subr.bf16.mxu0 0
      %747 = vmatpush1.bf16.msra.mxu0 0
      %748 = vmatprep.subr.bf16.mxu0 0
      %749 = vmatpush1.bf16.msra.mxu0 0
      %750 = vmatprep.subr.bf16.mxu0 0
      %751 = vmatpush1.bf16.msra.mxu0 0
      %752 = vmatprep.subr.bf16.mxu0 0
      %753 = vmatpush1.bf16.msra.mxu0 0
      %754 = vmatprep.subr.bf16.mxu0 0
      %755 = vmatpush1.bf16.msra.mxu0 0
      %756 = vmatprep.subr.bf16.mxu0 0
      %757 = vmatpush1.bf16.msra.mxu0 0
      %758 = vmatprep.subr.bf16.mxu0 0
      %759 = vmatpush1.bf16.msra.mxu0 0
      %760 = vmatprep.subr.bf16.mxu0 0
      %761 = vmatpush1.bf16.msra.mxu0 0
      %762 = vmatprep.subr.bf16.mxu0 0
      %763 = vmatpush1.bf16.msra.mxu0 0
      %764 = vmatprep.subr.bf16.mxu0 0
      %765 = vmatpush1.bf16.msra.mxu0 0
      %766 = vmatprep.subr.bf16.mxu0 0
      %767 = vmatpush1.bf16.msra.mxu0 0
      %768 = vmatprep.subr.bf16.mxu0 0
      %769 = vmatpush1.bf16.msra.mxu0 0
      %770 = vmatprep.mubr.bf16.mxu0 0
      %771 = vmatmul.mubr.bf16.gmra.mrb[0].mxu0 %v733
      %v772 = vpop.f32.mrb[0].mxu0
      %v773 = vadd.f32 0.0, %v772
      %v774 = vpop.f32.mrb[0].mxu0
      %v775 = vpop.f32.mrb[0].mxu0
      %v776 = vpop.f32.mrb[0].mxu0
      %777 = vdwg.mxu0
      %v778 = vpack.c.bf16 %v773, %v773
      %v779 = vld [vmem:[%s5 + $0x8] sm:$0xf]
      %v781 = vsel %vm349, %v778, 0
      %v784 = vsel %vm413, %v779, 0
      %786 = vmatprep.subr.bf16.mxu0 0
      %787 = vmatpush1.bf16.msra.mxu0 %v784
      %788 = vmatprep.subr.bf16.mxu0 0
      %789 = vmatpush1.bf16.msra.mxu0 0
      %790 = vmatprep.subr.bf16.mxu0 0
      %791 = vmatpush1.bf16.msra.mxu0 0
      %792 = vmatprep.subr.bf16.mxu0 0
      %793 = vmatpush1.bf16.msra.mxu0 0
      %794 = vmatprep.subr.bf16.mxu0 0
      %795 = vmatpush1.bf16.msra.mxu0 0
      %796 = vmatprep.subr.bf16.mxu0 0
      %797 = vmatpush1.bf16.msra.mxu0 0
      %798 = vmatprep.subr.bf16.mxu0 0
      %799 = vmatpush1.bf16.msra.mxu0 0
      %800 = vmatprep.subr.bf16.mxu0 0
      %801 = vmatpush1.bf16.msra.mxu0 0
      %802 = vmatprep.subr.bf16.mxu0 0
      %803 = vmatpush1.bf16.msra.mxu0 0
      %804 = vmatprep.subr.bf16.mxu0 0
      %805 = vmatpush1.bf16.msra.mxu0 0
      %806 = vmatprep.subr.bf16.mxu0 0
      %807 = vmatpush1.bf16.msra.mxu0 0
      %808 = vmatprep.subr.bf16.mxu0 0
      %809 = vmatpush1.bf16.msra.mxu0 0
      %810 = vmatprep.subr.bf16.mxu0 0
      %811 = vmatpush1.bf16.msra.mxu0 0
      %812 = vmatprep.subr.bf16.mxu0 0
      %813 = vmatpush1.bf16.msra.mxu0 0
      %814 = vmatprep.subr.bf16.mxu0 0
      %815 = vmatpush1.bf16.msra.mxu0 0
      %816 = vmatprep.subr.bf16.mxu0 0
      %817 = vmatpush1.bf16.msra.mxu0 0
      %818 = vmatprep.mubr.bf16.mxu0 0
      %819 = vmatmul.mubr.bf16.gmra.mrb[0].mxu0 %v781
      %v820 = vpop.f32.mrb[0].mxu0
      %v821 = vadd.f32 0.0, %v820
      %v822 = vpop.f32.mrb[0].mxu0
      %v823 = vpop.f32.mrb[0].mxu0
      %v824 = vpop.f32.mrb[0].mxu0
      %825 = vdwg.mxu0
      %v826 = vadd.f32 %v662, %v821
      %827 = vrot.lane.b32.xlu0 %v348, 104
      %v828 = vpop.permute.xlu0 %827
      %829 = vrot.lane.b32.xlu0 %v345, 104
      %v830 = vpop.permute.xlu0 %829
      %v832 = vsel %vm349, %v828, 0
      %v835 = vsel %vm349, %v830, 0
      %837 = vmatprep.subr.bf16.mxu0 0
      %838 = vmatpush1.bf16.xpose.msra.mxu0 %v835
      %839 = vmatprep.subr.bf16.mxu0 0
      %840 = vmatpush1.bf16.xpose.msra.mxu0 0
      %841 = vmatprep.subr.bf16.mxu0 0
      %842 = vmatpush1.bf16.xpose.msra.mxu0 0
      %843 = vmatprep.subr.bf16.mxu0 0
      %844 = vmatpush1.bf16.xpose.msra.mxu0 0
      %845 = vmatprep.subr.bf16.mxu0 0
      %846 = vmatpush1.bf16.xpose.msra.mxu0 0
      %847 = vmatprep.subr.bf16.mxu0 0
      %848 = vmatpush1.bf16.xpose.msra.mxu0 0
      %849 = vmatprep.subr.bf16.mxu0 0
      %850 = vmatpush1.bf16.xpose.msra.mxu0 0
      %851 = vmatprep.subr.bf16.mxu0 0
      %852 = vmatpush1.bf16.xpose.msra.mxu0 0
      %853 = vmatprep.subr.bf16.mxu0 0
      %854 = vmatpush1.bf16.xpose.msra.mxu0 0
      %855 = vmatprep.subr.bf16.mxu0 0
      %856 = vmatpush1.bf16.xpose.msra.mxu0 0
      %857 = vmatprep.subr.bf16.mxu0 0
      %858 = vmatpush1.bf16.xpose.msra.mxu0 0
      %859 = vmatprep.subr.bf16.mxu0 0
      %860 = vmatpush1.bf16.xpose.msra.mxu0 0
      %861 = vmatprep.subr.bf16.mxu0 0
      %862 = vmatpush1.bf16.xpose.msra.mxu0 0
      %863 = vmatprep.subr.bf16.mxu0 0
      %864 = vmatpush1.bf16.xpose.msra.mxu0 0
      %865 = vmatprep.subr.bf16.mxu0 0
      %866 = vmatpush1.bf16.xpose.msra.mxu0 0
      %867 = vmatprep.subr.bf16.mxu0 0
      %868 = vmatpush1.bf16.xpose.msra.mxu0 0
      %869 = vmatprep.mubr.bf16.mxu0 0
      %870 = vmatmul.mubr.bf16.gmra.mrb[0].mxu0 %v832
      %v871 = vpop.f32.mrb[0].mxu0
      %v872 = vadd.f32 0.0, %v871
      %v873 = vpop.f32.mrb[0].mxu0
      %v874 = vpop.f32.mrb[0].mxu0
      %v875 = vpop.f32.mrb[0].mxu0
      %876 = vdwg.mxu0
      %v877 = vmul.f32 %v872, 0.35355338
      %v878 = vsel %vm397, %v877, -inf
      %879 = vmax.xlane.f32.xlu0 %v878
      %v880 = vpop.xlane.xlu0 %879
      %v881 = vsub.f32 %v877, %v880
      %v882 = vmul.f32 %v881, 1.442695
      %v883 = vpow.pop %v882
      %v884 = vsel %vm397, %v883, 0.0
      %885 = vadd.xlane.f32.xlu0 %v884
      %v886 = vpop.xlane.xlu0 %885
      %v887 = vrcp.pop %v886
      %v888 = vmul.f32 %v883, %v887
      %v889 = vpack.c.bf16 %v888, %v888
      %890 = vrot.lane.b32.xlu0 %v347, 104
      %v891 = vpop.permute.xlu0 %890
      %v893 = vsel %vm349, %v889, 0
      %v896 = vsel %vm413, %v891, 0
      %898 = vmatprep.subr.bf16.mxu0 0
      %899 = vmatpush1.bf16.msra.mxu0 %v896
      %900 = vmatprep.subr.bf16.mxu0 0
      %901 = vmatpush1.bf16.msra.mxu0 0
      %902 = vmatprep.subr.bf16.mxu0 0
      %903 = vmatpush1.bf16.msra.mxu0 0
      %904 = vmatprep.subr.bf16.mxu0 0
      %905 = vmatpush1.bf16.msra.mxu0 0
      %906 = vmatprep.subr.bf16.mxu0 0
      %907 = vmatpush1.bf16.msra.mxu0 0
      %908 = vmatprep.subr.bf16.mxu0 0
      %909 = vmatpush1.bf16.msra.mxu0 0
      %910 = vmatprep.subr.bf16.mxu0 0
      %911 = vmatpush1.bf16.msra.mxu0 0
      %912 = vmatprep.subr.bf16.mxu0 0
      %913 = vmatpush1.bf16.msra.mxu0 0
      %914 = vmatprep.subr.bf16.mxu0 0
      %915 = vmatpush1.bf16.msra.mxu0 0
      %916 = vmatprep.subr.bf16.mxu0 0
      %917 = vmatpush1.bf16.msra.mxu0 0
      %918 = vmatprep.subr.bf16.mxu0 0
      %919 = vmatpush1.bf16.msra.mxu0 0
      %920 = vmatprep.subr.bf16.mxu0 0
      %921 = vmatpush1.bf16.msra.mxu0 0
      %922 = vmatprep.subr.bf16.mxu0 0
      %923 = vmatpush1.bf16.msra.mxu0 0
      %924 = vmatprep.subr.bf16.mxu0 0
      %925 = vmatpush1.bf16.msra.mxu0 0
      %926 = vmatprep.subr.bf16.mxu0 0
      %927 = vmatpush1.bf16.msra.mxu0 0
      %928 = vmatprep.subr.bf16.mxu0 0
      %929 = vmatpush1.bf16.msra.mxu0 0
      %930 = vmatprep.mubr.bf16.mxu0 0
      %931 = vmatmul.mubr.bf16.gmra.mrb[0].mxu0 %v893
      %v932 = vpop.f32.mrb[0].mxu0
      %v933 = vadd.f32 0.0, %v932
      %v934 = vpop.f32.mrb[0].mxu0
      %v935 = vpop.f32.mrb[0].mxu0
      %v936 = vpop.f32.mrb[0].mxu0
      %937 = vdwg.mxu0
      %v938 = vpack.c.bf16 %v933, %v933
      %v939 = vld [vmem:[%s5 + $0xc] sm:$0xf]
      %v941 = vsel %vm349, %v938, 0
      %v944 = vsel %vm413, %v939, 0
      %946 = vmatprep.subr.bf16.mxu0 0
      %947 = vmatpush1.bf16.msra.mxu0 %v944
      %948 = vmatprep.subr.bf16.mxu0 0
      %949 = vmatpush1.bf16.msra.mxu0 0
      %950 = vmatprep.subr.bf16.mxu0 0
      %951 = vmatpush1.bf16.msra.mxu0 0
      %952 = vmatprep.subr.bf16.mxu0 0
      %953 = vmatpush1.bf16.msra.mxu0 0
      %954 = vmatprep.subr.bf16.mxu0 0
      %955 = vmatpush1.bf16.msra.mxu0 0
      %956 = vmatprep.subr.bf16.mxu0 0
      %957 = vmatpush1.bf16.msra.mxu0 0
      %958 = vmatprep.subr.bf16.mxu0 0
      %959 = vmatpush1.bf16.msra.mxu0 0
      %960 = vmatprep.subr.bf16.mxu0 0
      %961 = vmatpush1.bf16.msra.mxu0 0
      %962 = vmatprep.subr.bf16.mxu0 0
      %963 = vmatpush1.bf16.msra.mxu0 0
      %964 = vmatprep.subr.bf16.mxu0 0
      %965 = vmatpush1.bf16.msra.mxu0 0
      %966 = vmatprep.subr.bf16.mxu0 0
      %967 = vmatpush1.bf16.msra.mxu0 0
      %968 = vmatprep.subr.bf16.mxu0 0
      %969 = vmatpush1.bf16.msra.mxu0 0
      %970 = vmatprep.subr.bf16.mxu0 0
      %971 = vmatpush1.bf16.msra.mxu0 0
      %972 = vmatprep.subr.bf16.mxu0 0
      %973 = vmatpush1.bf16.msra.mxu0 0
      %974 = vmatprep.subr.bf16.mxu0 0
      %975 = vmatpush1.bf16.msra.mxu0 0
      %976 = vmatprep.subr.bf16.mxu0 0
      %977 = vmatpush1.bf16.msra.mxu0 0
      %978 = vmatprep.mubr.bf16.mxu0 0
      %979 = vmatmul.mubr.bf16.gmra.mrb[0].mxu0 %v941
      %v980 = vpop.f32.mrb[0].mxu0
      %v981 = vadd.f32 0.0, %v980
      %v982 = vpop.f32.mrb[0].mxu0
      %v983 = vpop.f32.mrb[0].mxu0
      %v984 = vpop.f32.mrb[0].mxu0
      %985 = vdwg.mxu0
      %v986 = vadd.f32 %v826, %v981
      %v987 = vld [vmem:[%s6] sm:$0x1]
      %v989 = vlaneseq
      %v990 = vshrl.u32 %v989, 7
      %v991 = vsub.s32 0, %v990
      %v992 = vrot.slane %v987, %v991
      %v994 = vadd.f32 %v986, %v992
      %vm995 = vcmask 257024
      %996 = vst.msk [vmem:[%s273] sm:$0xf] %vm995, %v994
      %p997 = scmp.lt.s32.totalorder %s18, 1
      %s998 = scalar_select %p997, %s18, 1
      %s999 = smul.addr %s998, 4
      %s1000 = scalar_lea.vmem %s7, %s999
      // Predicated region
      $region49: #{_lambda_.15} parent=47 // pred_check
        %p1001 = pneg %p188
      $region50: #{_lambda_.15} parent=47 // pred_check_branch
        %1003 = sbr.rel (%p1001) target = $region52
      $region51: #{_lambda_.15} parent=47 // pred_region
        _
      $region52: #{_lambda_.15} parent=47 // pred_fallthru
        _
    $region48: #{_lambda_.15} parent=5 // pred_fallthru
      _
    %p1004 = scmp.le.s32.totalorder 2, %s13
    // Predicated region
    $region53: #{_lambda_.15} parent=5 // pred_check
      %p1005 = pneg %p1004
    $region54: #{_lambda_.15} parent=5 // pred_check_branch
      %1007 = sbr.rel (%p1005) target = $region56
    $region55: #{_lambda_.15} parent=5 // pred_region
      %s1008 = ssub.s32 %s13, 2
      // Predicated region
      $region57: #{_lambda_.15} parent=55 // pred_check
        %p1009 = pneg %p194
      $region58: #{_lambda_.15} parent=55 // pred_check_branch
        %1011 = sbr.rel (%p1009) target = $region60
      $region59: #{_lambda_.15} parent=55 // pred_region
        %p1012 = scmp.lt.s32.totalorder %s19, 1
        %s1013 = scalar_select %p1012, %s19, 1
        %s1014 = smul.addr %s1013, 4
        %s1015 = scalar_lea.vmem %s7, %s1014
      $region60: #{_lambda_.15} parent=55 // pred_fallthru
        _
    $region56: #{_lambda_.15} parent=5 // pred_fallthru
      _
  $region6: #{_lambda_.15} parent=0 // loop_footer
    %s17 = sadd.s32 1, %s13
  $region7: #{_lambda_.15} parent=0 // loop_footer_branch
    %12 = sbr.rel target = $region3
  $region8: #{_lambda_.15} parent=0 // loop_exit
    _

// kernel: _lambda_.18
$region0: #{_lambda_.18}
  #allocation0 [shape = 'u32[]', space=smem, size = 0x4, offset = 0x4, fixed_abs, tag = 'smem constant byte address 0x4 - core index']
  #allocation1 [shape = 'u32[144,128]{1,0:T(1,128)}', space=vmem, size = 0x12000, scoped, tag = 'internal scratch']
  %s0 = inlined_call_operand.vmem [shape: f32[30,32], index: 0, kind: input, shape index: {}]
  %s1 = inlined_call_operand.vmem [shape: bf16[32,32], index: 1, kind: input, shape index: {}]
  %s2 = inlined_call_operand.vmem [shape: f32[30,32], index: 2, kind: output, shape index: {}]
  %s3 = sld [smem:[#allocation0]]
  $region18: #{_lambda_.18} parent=0
    _
  %s5 = ssub.s32 1, %s3
  %s6 = scalar_select 0, %s5, %s3
  // Predicated region
  $region2: #{_lambda_.18} parent=0 // pred_check
    _
  $region3: #{_lambda_.18} parent=0 // pred_check_branch
    %8 = sbr.rel (0) target = $region5
  $region4: #{_lambda_.18} parent=0 // pred_region
    _
  $region5: #{_lambda_.18} parent=0 // pred_fallthru
    _
  // Predicated region
  $region6: #{_lambda_.18} parent=0 // pred_check
    _
  $region7: #{_lambda_.18} parent=0 // pred_check_branch
    %10 = sbr.rel (0) target = $region9
  $region8: #{_lambda_.18} parent=0 // pred_region
    _
  $region9: #{_lambda_.18} parent=0 // pred_fallthru
    _
  %v12 = vld [vmem:[%s0] sm:$0xff]
  %v13 = vld [vmem:[%s0 + $0x8] sm:$0xff]
  %v14 = vld [vmem:[%s0 + $0x10] sm:$0xff]
  %v15 = vld [vmem:[%s0 + $0x18] sm:$0x3f]
  %v16 = vpack.c.bf16 %v13, %v12
  %v17 = vpack.c.bf16 %v15, %v14
  %v18 = vld [vmem:[%s1] sm:$0xf]
  %v19 = vld [vmem:[%s1 + $0x4] sm:$0xf]
  %v20 = vld [vmem:[%s1 + $0x8] sm:$0xf]
  %v21 = vld [vmem:[%s1 + $0xc] sm:$0xf]
  %v26 = vunpack.c.l.b16 %v18
  %v27 = vunpack.c.l.b16 %v19
  %v28 = vunpack.c.l.b16 %v20
  %v29 = vunpack.c.l.b16 %v21
  %v30 = vpack.c.b16 %v27, %v26
  %v31 = vpack.c.b16 %v29, %v28
  %vm34 = vcmask 261120
  %v36 = vsel %vm34, %v16, 0
  %v39 = vsel %vm34, %v17, 0
  %41 = vmatprep.subr.bf16.mxu0 0
  %42 = vmatpush1.bf16.msra.mxu0 %v30
  %43 = vmatprep.subr.bf16.mxu0 0
  %44 = vmatpush1.bf16.msra.mxu0 %v31
  %45 = vmatprep.subr.bf16.mxu0 0
  %46 = vmatpush1.bf16.msra.mxu0 0
  %47 = vmatprep.subr.bf16.mxu0 0
  %48 = vmatpush1.bf16.msra.mxu0 0
  %49 = vmatprep.subr.bf16.mxu0 0
  %50 = vmatpush1.bf16.msra.mxu0 0
  %51 = vmatprep.subr.bf16.mxu0 0
  %52 = vmatpush1.bf16.msra.mxu0 0
  %53 = vmatprep.subr.bf16.mxu0 0
  %54 = vmatpush1.bf16.msra.mxu0 0
  %55 = vmatprep.subr.bf16.mxu0 0
  %56 = vmatpush1.bf16.msra.mxu0 0
  %57 = vmatprep.subr.bf16.mxu0 0
  %58 = vmatpush1.bf16.msra.mxu0 0
  %59 = vmatprep.subr.bf16.mxu0 0
  %60 = vmatpush1.bf16.msra.mxu0 0
  %61 = vmatprep.subr.bf16.mxu0 0
  %62 = vmatpush1.bf16.msra.mxu0 0
  %63 = vmatprep.subr.bf16.mxu0 0
  %64 = vmatpush1.bf16.msra.mxu0 0
  %65 = vmatprep.subr.bf16.mxu0 0
  %66 = vmatpush1.bf16.msra.mxu0 0
  %67 = vmatprep.subr.bf16.mxu0 0
  %68 = vmatpush1.bf16.msra.mxu0 0
  %69 = vmatprep.subr.bf16.mxu0 0
  %70 = vmatpush1.bf16.msra.mxu0 0
  %71 = vmatprep.subr.bf16.mxu0 0
  %72 = vmatpush1.bf16.msra.mxu0 0
  %73 = vmatprep.mubr.bf16.mxu0 0
  %74 = vmatmul.mubr.bf16.gmra.mrb[0].mxu0 %v36
  %v75 = vpop.f32.mrb[0].mxu0
  %v76 = vadd.f32 0.0, %v75
  %v77 = vpop.f32.mrb[0].mxu0
  %v78 = vpop.f32.mrb[0].mxu0
  %v79 = vadd.f32 0.0, %v78
  %v80 = vpop.f32.mrb[0].mxu0
  %81 = vmatprep.mubr.bf16.mxu0 0
  %82 = vmatmul.mubr.bf16.gmra.mrb[0].mxu0 %v39
  %v83 = vpop.f32.mrb[0].mxu0
  %v84 = vadd.f32 0.0, %v83
  %v85 = vpop.f32.mrb[0].mxu0
  %v86 = vpop.f32.mrb[0].mxu0
  %v87 = vadd.f32 0.0, %v86
  %v88 = vpop.f32.mrb[0].mxu0
  %89 = vdwg.mxu0
  %90 = vst.msk [vmem:[%s2] sm:$0xff] %vm34, %v76
  %91 = vst.msk [vmem:[%s2 + $0x8] sm:$0xff] %vm34, %v79
  %92 = vst.msk [vmem:[%s2 + $0x10] sm:$0xff] %vm34, %v84
  %vm93 = vcmask 259072
  %94 = vst.msk [vmem:[%s2 + $0x18] sm:$0x3f] %vm93, %v87
  // Predicated region
  $region10: #{_lambda_.18} parent=0 // pred_check
    _
  $region11: #{_lambda_.18} parent=0 // pred_check_branch
    %96 = sbr.rel (0) target = $region13
  $region12: #{_lambda_.18} parent=0 // pred_region
    _
  $region13: #{_lambda_.18} parent=0 // pred_fallthru
    _
  // Predicated region
  $region14: #{_lambda_.18} parent=0 // pred_check
    _
  $region15: #{_lambda_.18} parent=0 // pred_check_branch
    %98 = sbr.rel (0) target = $region17
  $region16: #{_lambda_.18} parent=0 // pred_region
    _
  $region17: #{_lambda_.18} parent=0 // pred_fallthru
    _

// kernel: _lambda_.17
$region0: #{_lambda_.17}
  #allocation0 [shape = 'u32[]', space=smem, size = 0x4, offset = 0x4, fixed_abs, tag = 'smem constant byte address 0x4 - core index']
  #allocation1 [shape = 'u32[144,128]{1,0:T(1,128)}', space=vmem, size = 0x12000, scoped, tag = 'internal scratch']
  %s0 = inlined_call_operand.vmem [shape: f32[8,32], index: 0, kind: input, shape index: {}]
  %s1 = inlined_call_operand.vmem [shape: bf16[32,32], index: 1, kind: input, shape index: {}]
  %s2 = inlined_call_operand.vmem [shape: f32[8,32], index: 2, kind: output, shape index: {}]
  %s3 = sld [smem:[#allocation0]]
  $region18: #{_lambda_.17} parent=0
    _
  %s5 = ssub.s32 1, %s3
  %s6 = scalar_select 0, %s5, %s3
  // Predicated region
  $region2: #{_lambda_.17} parent=0 // pred_check
    _
  $region3: #{_lambda_.17} parent=0 // pred_check_branch
    %8 = sbr.rel (0) target = $region5
  $region4: #{_lambda_.17} parent=0 // pred_region
    _
  $region5: #{_lambda_.17} parent=0 // pred_fallthru
    _
  // Predicated region
  $region6: #{_lambda_.17} parent=0 // pred_check
    _
  $region7: #{_lambda_.17} parent=0 // pred_check_branch
    %10 = sbr.rel (0) target = $region9
  $region8: #{_lambda_.17} parent=0 // pred_region
    _
  $region9: #{_lambda_.17} parent=0 // pred_fallthru
    _
  %v12 = vld [vmem:[%s0] sm:$0xff]
  %v13 = vpack.c.bf16 %v12, %v12
  %v14 = vld [vmem:[%s1] sm:$0xf]
  %v15 = vld [vmem:[%s1 + $0x4] sm:$0xf]
  %v16 = vld [vmem:[%s1 + $0x8] sm:$0xf]
  %v17 = vld [vmem:[%s1 + $0xc] sm:$0xf]
  %v22 = vunpack.c.l.b16 %v14
  %v23 = vunpack.c.l.b16 %v15
  %v24 = vunpack.c.l.b16 %v16
  %v25 = vunpack.c.l.b16 %v17
  %v26 = vpack.c.b16 %v23, %v22
  %v27 = vpack.c.b16 %v25, %v24
  %vm30 = vcmask 261120
  %v32 = vsel %vm30, %v13, 0
  %34 = vmatprep.subr.bf16.mxu0 0
  %35 = vmatpush1.bf16.msra.mxu0 %v26
  %36 = vmatprep.subr.bf16.mxu0 0
  %37 = vmatpush1.bf16.msra.mxu0 %v27
  %38 = vmatprep.subr.bf16.mxu0 0
  %39 = vmatpush1.bf16.msra.mxu0 0
  %40 = vmatprep.subr.bf16.mxu0 0
  %41 = vmatpush1.bf16.msra.mxu0 0
  %42 = vmatprep.subr.bf16.mxu0 0
  %43 = vmatpush1.bf16.msra.mxu0 0
  %44 = vmatprep.subr.bf16.mxu0 0
  %45 = vmatpush1.bf16.msra.mxu0 0
  %46 = vmatprep.subr.bf16.mxu0 0
  %47 = vmatpush1.bf16.msra.mxu0 0
  %48 = vmatprep.subr.bf16.mxu0 0
  %49 = vmatpush1.bf16.msra.mxu0 0
  %50 = vmatprep.subr.bf16.mxu0 0
  %51 = vmatpush1.bf16.msra.mxu0 0
  %52 = vmatprep.subr.bf16.mxu0 0
  %53 = vmatpush1.bf16.msra.mxu0 0
  %54 = vmatprep.subr.bf16.mxu0 0
  %55 = vmatpush1.bf16.msra.mxu0 0
  %56 = vmatprep.subr.bf16.mxu0 0
  %57 = vmatpush1.bf16.msra.mxu0 0
  %58 = vmatprep.subr.bf16.mxu0 0
  %59 = vmatpush1.bf16.msra.mxu0 0
  %60 = vmatprep.subr.bf16.mxu0 0
  %61 = vmatpush1.bf16.msra.mxu0 0
  %62 = vmatprep.subr.bf16.mxu0 0
  %63 = vmatpush1.bf16.msra.mxu0 0
  %64 = vmatprep.subr.bf16.mxu0 0
  %65 = vmatpush1.bf16.msra.mxu0 0
  %66 = vmatprep.mubr.bf16.mxu0 0
  %67 = vmatmul.mubr.bf16.gmra.mrb[0].mxu0 %v32
  %v68 = vpop.f32.mrb[0].mxu0
  %v69 = vadd.f32 0.0, %v68
  %v70 = vpop.f32.mrb[0].mxu0
  %v71 = vpop.f32.mrb[0].mxu0
  %v72 = vpop.f32.mrb[0].mxu0
  %73 = vdwg.mxu0
  %74 = vst.msk [vmem:[%s2] sm:$0xff] %vm30, %v69
  // Predicated region
  $region10: #{_lambda_.17} parent=0 // pred_check
    _
  $region11: #{_lambda_.17} parent=0 // pred_check_branch
    %76 = sbr.rel (0) target = $region13
  $region12: #{_lambda_.17} parent=0 // pred_region
    _
  $region13: #{_lambda_.17} parent=0 // pred_fallthru
    _
  // Predicated region
  $region14: #{_lambda_.17} parent=0 // pred_check
    _
  $region15: #{_lambda_.17} parent=0 // pred_check_branch
    %78 = sbr.rel (0) target = $region17
  $region16: #{_lambda_.17} parent=0 // pred_region
    _
  $region17: #{_lambda_.17} parent=0 // pred_fallthru
    _

// kernel: _lambda_.19
$region0: #{_lambda_.19}
  #allocation0 [shape = 'u32[]', space=smem, size = 0x4, offset = 0x4, fixed_abs, tag = 'smem constant byte address 0x4 - core index']
  #allocation1 [shape = 'u32[144,128]{1,0:T(1,128)}', space=vmem, size = 0x12000, scoped, tag = 'internal scratch']
  %s0 = inlined_call_operand.vmem [shape: f32[2,4,32], index: 0, kind: input, shape index: {}]
  %s1 = inlined_call_operand.vmem [shape: f32[2,4], index: 1, kind: input, shape index: {}]
  %s2 = inlined_call_operand.vmem [shape: f32[2,3,32], index: 2, kind: input, shape index: {}]
  %s3 = inlined_call_operand.vmem [shape: f32[2,32], index: 3, kind: input, shape index: {}]
  %s4 = inlined_call_operand.vmem [shape: bf16[96,2], index: 4, kind: input, shape index: {}]
  %s5 = inlined_call_operand.vmem [shape: f32[1,2], index: 5, kind: input, shape index: {}]
  %s6 = inlined_call_operand.hbm [shape: f32[2,2], index: 6, kind: output, shape index: {}]
  %s7 = sld [smem:[#allocation0]]
  $region34: #{_lambda_.19} parent=0
    _
  %s9 = ssub.s32 1, %s7
  %s10 = scalar_select 0, %s9, %s7
  $region1: #{_lambda_.19} parent=0
    #allocation2 [shape = 'u8[1024]{0}', space=vmem, size = 0x400, scoped, tag = 'output window, operand 0, single buffered']
    #allocation3 [shape = 's32[1]{0}', space=sflag, size = 0x4, scoped, tag = 'scoped memory for _lambda_.19']
    %11 = vsyncpa [#allocation3], 0
    // Predicated region
    $region2: #{_lambda_.19} parent=1 // pred_check
      _
    $region3: #{_lambda_.19} parent=1 // pred_check_branch
      %13 = sbr.rel (0) target = $region5
    $region4: #{_lambda_.19} parent=1 // pred_region
      _
    $region5: #{_lambda_.19} parent=1 // pred_fallthru
      _
    // Predicated region
    $region6: #{_lambda_.19} parent=1 // pred_check
      _
    $region7: #{_lambda_.19} parent=1 // pred_check_branch
      %15 = sbr.rel (0) target = $region9
    $region8: #{_lambda_.19} parent=1 // pred_region
      _
    $region9: #{_lambda_.19} parent=1 // pred_fallthru
      _
    // Predicated region
    $region10: #{_lambda_.19} parent=1 // pred_check
      _
    $region11: #{_lambda_.19} parent=1 // pred_check_branch
      %17 = sbr.rel (0) target = $region13
    $region12: #{_lambda_.19} parent=1 // pred_region
      _
    $region13: #{_lambda_.19} parent=1 // pred_fallthru
      _
    // Predicated region
    $region14: #{_lambda_.19} parent=1 // pred_check
      _
    $region15: #{_lambda_.19} parent=1 // pred_check_branch
      %19 = sbr.rel (0) target = $region17
    $region16: #{_lambda_.19} parent=1 // pred_region
      _
    $region17: #{_lambda_.19} parent=1 // pred_fallthru
      _
    // Predicated region
    $region18: #{_lambda_.19} parent=1 // pred_check
      _
    $region19: #{_lambda_.19} parent=1 // pred_check_branch
      %21 = sbr.rel (0) target = $region21
    $region20: #{_lambda_.19} parent=1 // pred_region
      _
    $region21: #{_lambda_.19} parent=1 // pred_fallthru
      _
    // Predicated region
    $region22: #{_lambda_.19} parent=1 // pred_check
      _
    $region23: #{_lambda_.19} parent=1 // pred_check_branch
      %23 = sbr.rel (0) target = $region25
    $region24: #{_lambda_.19} parent=1 // pred_region
      _
    $region25: #{_lambda_.19} parent=1 // pred_fallthru
      _
    %v25 = vld [vmem:[%s0] sm:$0xf]
    %v26 = vld [vmem:[%s0 + $0x4] sm:$0xf]
    %v27 = vld [vmem:[%s1] sm:$0x3]
    %v28 = vlaneseq
    %v29 = vshrl.u32 %v28, 7
    %v30 = vsub.s32 0, %v29
    %v31 = vrot.slane %v27, %v30
    %33 = vbcast.lane.b32.xlu0 %v31, 256
    %v34 = vpop.permute.xlu0 %33
    %v35 = vlaneseq
    %v36 = vshrl.u32 %v35, 7
    %v37 = vsub.s32 1, %v36
    %v38 = vrot.slane %v27, %v37
    %40 = vbcast.lane.b32.xlu0 %v38, 256
    %v41 = vpop.permute.xlu0 %40
    %vm42 = vcmp.gt.f32.partialorder %v34, 0.0
    %vm43 = vcmp.gt.f32.partialorder %v41, 0.0
    %v44 = vsel %vm42, 1, 0
    %v45 = vsel %vm43, 1, 0
    %vm46 = vcmp.eq.s32.totalorder %v44, 1
    %vm47 = vcmp.eq.s32.totalorder %v45, 1
    %v48 = vsel %vm46, %v25, -1e+30
    %v49 = vsel %vm47, %v26, -1e+30
    %vm50 = vcmask 257024
    %v51 = vsel %vm50, %v48, -inf
    %v52 = vrot.slane %v51, 4
    %v53 = vmax.f32 %v51, %v52
    %v54 = vrot.slane %v53, 2
    %v55 = vmax.f32 %v53, %v54
    %v56 = vrot.slane %v55, 1
    %v57 = vmax.f32 %v55, %v56
    %v58 = vsel %vm50, %v49, -inf
    %v59 = vrot.slane %v58, 4
    %v60 = vmax.f32 %v58, %v59
    %v61 = vrot.slane %v60, 2
    %v62 = vmax.f32 %v60, %v61
    %v63 = vrot.slane %v62, 1
    %v64 = vmax.f32 %v62, %v63
    %v65 = vld [vmem:[%s2] sm:$0x7]
    %v66 = vld [vmem:[%s2 + $0x4] sm:$0x7]
    %vm67 = vcmask 256000
    %v68 = vsel %vm67, %v65, -inf
    %v69 = vrot.slane %v68, 4
    %v70 = vmax.f32 %v68, %v69
    %v71 = vrot.slane %v70, 2
    %v72 = vmax.f32 %v70, %v71
    %v73 = vrot.slane %v72, 1
    %v74 = vmax.f32 %v72, %v73
    %v75 = vsel %vm67, %v66, -inf
    %v76 = vrot.slane %v75, 4
    %v77 = vmax.f32 %v75, %v76
    %v78 = vrot.slane %v77, 2
    %v79 = vmax.f32 %v77, %v78
    %v80 = vrot.slane %v79, 1
    %v81 = vmax.f32 %v79, %v80
    %v82 = vld [vmem:[%s3] sm:$0x3]
    %vm85 = vcmask 1041409
    %v86 = vsel %vm85, %v64, %v57
    %v90 = vsel %vm85, %v81, %v74
    %91 = vrot.lane.b32.xlu0 %v90, 32
    %v92 = vpop.permute.xlu0 %91
    %95 = vrot.lane.b32.xlu0 %v82, 64
    %v96 = vpop.permute.xlu0 %95
    %vm98 = vcmask 261120
    %v99 = vsel %vm98, %v86, %v92
    %vm100 = vcmask 523264
    %v101 = vsel %vm100, %v99, %v96
    %v102 = vpack.c.bf16 %v101, %v101
    %v103 = vld [vmem:[%s4] sm:$0xf]
    %v104 = vld [vmem:[%s4 + $0x4] sm:$0xf]
    %v105 = vld [vmem:[%s4 + $0x8] sm:$0xf]
    %v106 = vld [vmem:[%s4 + $0xc] sm:$0xf]
    %v107 = vld [vmem:[%s4 + $0x10] sm:$0xf]
    %v108 = vld [vmem:[%s4 + $0x14] sm:$0xf]
    %v109 = vld [vmem:[%s4 + $0x18] sm:$0xf]
    %v110 = vld [vmem:[%s4 + $0x1c] sm:$0xf]
    %v111 = vld [vmem:[%s4 + $0x20] sm:$0xf]
    %v112 = vld [vmem:[%s4 + $0x24] sm:$0xf]
    %v113 = vld [vmem:[%s4 + $0x28] sm:$0xf]
    %v114 = vld [vmem:[%s4 + $0x2c] sm:$0xf]
    %v115 = vld [vmem:[%s5] sm:$0x1]
    %v117 = vlaneseq
    %v118 = vshrl.u32 %v117, 7
    %v119 = vsub.s32 0, %v118
    %v120 = vrot.slane %v115, %v119
    %v134 = vunpack.c.l.b16 %v103
    %v135 = vunpack.c.l.b16 %v104
    %v136 = vunpack.c.l.b16 %v105
    %v137 = vunpack.c.l.b16 %v106
    %v138 = vunpack.c.l.b16 %v107
    %v139 = vunpack.c.l.b16 %v108
    %v140 = vunpack.c.l.b16 %v109
    %v141 = vunpack.c.l.b16 %v110
    %v142 = vunpack.c.l.b16 %v111
    %v143 = vunpack.c.l.b16 %v112
    %v144 = vunpack.c.l.b16 %v113
    %v145 = vunpack.c.l.b16 %v114
    %v146 = vpack.c.b16 %v135, %v134
    %v147 = vpack.c.b16 %v137, %v136
    %v148 = vpack.c.b16 %v139, %v138
    %v149 = vpack.c.b16 %v141, %v140
    %v150 = vpack.c.b16 %v143, %v142
    %v151 = vpack.c.b16 %v145, %v144
    %vm158 = vcmask 785408
    %v160 = vsel %vm158, %v102, 0
    %162 = vmatprep.subr.bf16.mxu0 0
    %163 = vmatpush1.bf16.msra.mxu0 %v146
    %164 = vmatprep.subr.bf16.mxu0 0
    %165 = vmatpush1.bf16.msra.mxu0 %v147
    %166 = vmatprep.subr.bf16.mxu0 0
    %167 = vmatpush1.bf16.msra.mxu0 %v148
    %168 = vmatprep.subr.bf16.mxu0 0
    %169 = vmatpush1.bf16.msra.mxu0 %v149
    %170 = vmatprep.subr.bf16.mxu0 0
    %171 = vmatpush1.bf16.msra.mxu0 %v150
    %172 = vmatprep.subr.bf16.mxu0 0
    %173 = vmatpush1.bf16.msra.mxu0 %v151
    %174 = vmatprep.subr.bf16.mxu0 0
    %175 = vmatpush1.bf16.msra.mxu0 0
    %176 = vmatprep.subr.bf16.mxu0 0
    %177 = vmatpush1.bf16.msra.mxu0 0
    %178 = vmatprep.subr.bf16.mxu0 0
    %179 = vmatpush1.bf16.msra.mxu0 0
    %180 = vmatprep.subr.bf16.mxu0 0
    %181 = vmatpush1.bf16.msra.mxu0 0
    %182 = vmatprep.subr.bf16.mxu0 0
    %183 = vmatpush1.bf16.msra.mxu0 0
    %184 = vmatprep.subr.bf16.mxu0 0
    %185 = vmatpush1.bf16.msra.mxu0 0
    %186 = vmatprep.subr.bf16.mxu0 0
    %187 = vmatpush1.bf16.msra.mxu0 0
    %188 = vmatprep.subr.bf16.mxu0 0
    %189 = vmatpush1.bf16.msra.mxu0 0
    %190 = vmatprep.subr.bf16.mxu0 0
    %191 = vmatpush1.bf16.msra.mxu0 0
    %192 = vmatprep.subr.bf16.mxu0 0
    %193 = vmatpush1.bf16.msra.mxu0 0
    %194 = vmatprep.mubr.bf16.mxu0 0
    %195 = vmatmul.mubr.bf16.gmra.mrb[0].mxu0 %v160
    %v196 = vpop.f32.mrb[0].mxu0
    %v197 = vadd.f32 %v120, %v196
    %v198 = vpop.f32.mrb[0].mxu0
    %v199 = vpop.f32.mrb[0].mxu0
    %v200 = vpop.f32.mrb[0].mxu0
    %201 = vdwg.mxu0
    %vm202 = vcmask 9216
    %203 = vst.msk [vmem:[#allocation2] sm:$0x3] %vm202, %v197
    // Predicated region
    $region26: #{_lambda_.19} parent=1 // pred_check
      _
    $region27: #{_lambda_.19} parent=1 // pred_check_branch
      %205 = sbr.rel (0) target = $region29
    $region28: #{_lambda_.19} parent=1 // pred_region
      %s207 = ssub.s32 32, 32
      %208 = vsyncadd [#allocation3], %s207
      %s210 = sshll.u32 [#allocation2], 4
      %s211 = int_to_ptr.vmem [resolvable:$true] %s210
      %213 = dma.vmem_to_hbm [thread:$0]  %s211, 32, %s6, [#allocation3]
    $region29: #{_lambda_.19} parent=1 // pred_fallthru
      _
    // Predicated region
    $region30: #{_lambda_.19} parent=1 // pred_check
      _
    $region31: #{_lambda_.19} parent=1 // pred_check_branch
      %215 = sbr.rel (0) target = $region33
    $region32: #{_lambda_.19} parent=1 // pred_region
      %216 = dma.done [#allocation3], 32
    $region33: #{_lambda_.19} parent=1 // pred_fallthru
      _
    %217 = vsyncpa [#allocation3], 1

</llo_original>
